<compile_context>
chip_gen: v7x
topology: tpu7x:2x2x1
jax: 0.10.0
libtpu: 0.0.40
codegen_flags: <defaults>
</compile_context>

<pallas_src>
import math
import jax
import jax.numpy as jnp
from jax.experimental import pallas as pl
from jax.experimental.pallas import tpu as pltpu

D_MODEL = 32
N_HEADS = 4
D_K = D_MODEL // N_HEADS
D_FF = 64
EPS = 1e-6      # LayerNormalization.eps
ALPHA = 1.0     # LayerNormalization.alpha (init: torch.ones(1))
BETA = 0.0      # LayerNormalization.beta  (init: torch.zeros(1))
NEG_INF = -1e9

# 128-lane-aligned column offsets of each packed parameter group.  The same
# offsets are used for the weight slab (D_MODEL rows) and the bias slab
# (1 row), so every in-kernel slice starts on a vreg boundary.
COL_SA_QKV = 0      # width 3*D_MODEL   self-attn fused [Wq|Wk|Wv]
COL_SA_O   = 128    # width D_MODEL     self-attn Wo
COL_CA_Q   = 256    # width D_MODEL     cross-attn Wq
COL_CA_KV  = 384    # width 2*D_MODEL   cross-attn fused [Wk|Wv]
COL_CA_O   = 512    # width D_MODEL     cross-attn Wo
COL_FF1    = 640    # width D_FF        FFN first linear
COL_FF2    = 768    # width D_MODEL     FFN second linear (bias only)
W32_COLS   = 768    # weight-slab columns (groups whose in-dim is D_MODEL)
BIAS_COLS  = 896    # bias-slab columns


def _mm(a, b):
    """Plain NN matmul a:(m,k) @ b:(k,n) with f32 accumulation (weights are
    pre-transposed to (in, out) in the wrapper, so no in-kernel transpose)."""
    return jnp.dot(a, b, preferred_element_type=jnp.float32)


def _layer_norm(x):
    """Reference LayerNormalization exactly: alpha*(x-mean)/(std*eps)+beta,
    with torch's unbiased std (divide by D-1).  rsqrt goes to the EUP."""
    d = x.shape[-1]
    mean = jnp.mean(x, axis=-1, keepdims=True)
    var = jnp.sum((x - mean) ** 2, axis=-1, keepdims=True) * (1.0 / (d - 1))
    inv = jax.lax.rsqrt(var) * (1.0 / EPS)          # == 1 / (std * eps)
    return ALPHA * (x - mean) * inv + BETA


def _attention(q3, kv3, is_masked):
    """Multi-head attention with the reference's swapped K/V bug:
       scores = Q @ V^T / sqrt(dk);  out = softmax(scores) @ K.
    q3: (BB, Sq, D) projected queries; kv3: (BB, Sk, 2D) = [K_proj | V_proj];
    is_masked: (BB, Sq, Sk) int32, nonzero => masked_fill with -1e9.
    All heads run as ONE batched einsum over a merged (H*BB) leading dim and
    the per-head outputs stay register-resident (lane concat, no scratch).
    Returns the concatenated heads as (BB*Sq, D)."""
    BB, Sq, _ = q3.shape
    Sk = kv3.shape[1]
    scale = 1.0 / math.sqrt(D_K)

    # Head-major merged batch: row = h*BB + b.
    qh = jnp.concatenate(
        [q3[:, :, h * D_K:(h + 1) * D_K] for h in range(N_HEADS)], axis=0)
    kh = jnp.concatenate(
        [kv3[:, :, h * D_K:(h + 1) * D_K] for h in range(N_HEADS)], axis=0)
    vh = jnp.concatenate(
        [kv3[:, :, D_MODEL + h * D_K:D_MODEL + (h + 1) * D_K]
         for h in range(N_HEADS)], axis=0)

    s = jnp.einsum('bqd,bkd->bqk', qh, vh,
                   preferred_element_type=jnp.float32) * scale    # Q @ V^T (bug)
    mask_b = jnp.concatenate([is_masked] * N_HEADS, axis=0)       # (H*BB,Sq,Sk)
    s = jnp.where(mask_b != 0, NEG_INF, s)          # masked_fill (SET) semantics
    m = jnp.max(s, axis=-1, keepdims=True)
    e = jnp.exp(s - m)
    p = e / jnp.sum(e, axis=-1, keepdims=True)      # exact divide (review note)
    o = jnp.einsum('bqk,bkd->bqd', p, kh,
                   preferred_element_type=jnp.float32)            # @ K (bug)
    # Merge heads back along the lane axis; register-resident, no VMEM scratch.
    return jnp.concatenate(
        [o[h * BB:(h + 1) * BB].reshape(BB * Sq, D_K) for h in range(N_HEADS)],
        axis=-1)


def decoder_block_kernel(x_ref, enc_ref, smask_ref, tmask_ref,
                         w32_ref, w2t_ref, bias_ref, out_ref):
    BB, S_t, _ = smask_ref.shape
    S_s = tmask_ref.shape[2]

    def w(col, width):          # static, 128-aligned slice of the weight slab
        return w32_ref[:, col:col + width]

    def b(col, width):          # static, 128-aligned slice of the bias slab
        return bias_ref[:, col:col + width]

    x = x_ref[...]                              # (BB*S_t, D)
    enc = enc_ref[...]                          # (BB*S_s, D)
    smasked = smask_ref[...].astype(jnp.int32)  # (BB, S_t, S_t), 1 = masked
    tmasked = tmask_ref[...].astype(jnp.int32)  # (BB, S_t, S_s)

    # residual connection 0: self-attention (reference passes src_msk here)
    xn = _layer_norm(x)
    qkv = _mm(xn, w(COL_SA_QKV, 3 * D_MODEL)) + b(COL_SA_QKV, 3 * D_MODEL)
    q3 = qkv[:, :D_MODEL].reshape(BB, S_t, D_MODEL)
    kv3 = qkv[:, D_MODEL:].reshape(BB, S_t, 2 * D_MODEL)
    heads = _attention(q3, kv3, smasked)
    x = x + _mm(heads, w(COL_SA_O, D_MODEL)) + b(COL_SA_O, D_MODEL)

    # residual connection 1: cross-attention (reference passes tgt_msk here)
    xn = _layer_norm(x)
    q3 = (_mm(xn, w(COL_CA_Q, D_MODEL)) + b(COL_CA_Q, D_MODEL)
          ).reshape(BB, S_t, D_MODEL)
    kv3 = (_mm(enc, w(COL_CA_KV, 2 * D_MODEL)) + b(COL_CA_KV, 2 * D_MODEL)
           ).reshape(BB, S_s, 2 * D_MODEL)
    heads = _attention(q3, kv3, tmasked)
    x = x + _mm(heads, w(COL_CA_O, D_MODEL)) + b(COL_CA_O, D_MODEL)

    # residual connection 2: feed-forward (linear -> relu -> linear)
    # TODO(synk): nn.Dropout is a no-op here (p = 0.0); stochastic dropout not implemented.
    xn = _layer_norm(x)
    h1 = jnp.maximum(_mm(xn, w(COL_FF1, D_FF)) + b(COL_FF1, D_FF), 0.0)
    x = x + _mm(h1, w2t_ref[...]) + b(COL_FF2, D_MODEL)

    out_ref[...] = x                            # single contiguous (BB*S_t, D) store


def _pack_params(params):
    """Pre-transpose every weight to (in, out) and pack into three slabs:
         w32  : (D_MODEL, 768)  - all projections whose in-dim is D_MODEL
         w2t  : (D_FF, D_MODEL) - FFN second linear
         bias : (1, 896)        - every bias
       Each group starts on a 128-lane boundary (pure layout plumbing)."""
    saw, sab, caw, cab, w1, b1, w2, b2 = params

    def put(slab, col, m):
        return slab.at[:, col:col + m.shape[-1]].set(m)

    w32 = jnp.zeros((D_MODEL, W32_COLS), jnp.float32)
    w32 = put(w32, COL_SA_QKV, jnp.concatenate([saw[0].T, saw[1].T, saw[2].T], axis=1))
    w32 = put(w32, COL_SA_O, saw[3].T)
    w32 = put(w32, COL_CA_Q, caw[0].T)
    w32 = put(w32, COL_CA_KV, jnp.concatenate([caw[1].T, caw[2].T], axis=1))
    w32 = put(w32, COL_CA_O, caw[3].T)
    w32 = put(w32, COL_FF1, w1.T)

    bias = jnp.zeros((1, BIAS_COLS), jnp.float32)
    bias = put(bias, COL_SA_QKV, jnp.concatenate([sab[0], sab[1], sab[2]]).reshape(1, -1))
    bias = put(bias, COL_SA_O, sab[3].reshape(1, -1))
    bias = put(bias, COL_CA_Q, cab[0].reshape(1, -1))
    bias = put(bias, COL_CA_KV, jnp.concatenate([cab[1], cab[2]]).reshape(1, -1))
    bias = put(bias, COL_CA_O, cab[3].reshape(1, -1))
    bias = put(bias, COL_FF1, b1.reshape(1, -1))
    bias = put(bias, COL_FF2, b2.reshape(1, -1))

    return w32, w2.T, bias


def decoder_block(x, enc, src_msk, tgt_msk, params, *, batch_block=None):
    """Pallas forward pass of the DecoderBlock.

    batch_block = batch rows per grid step:
      * default (None) = whole batch in one step - right choice for the tiny
        test shapes and for single-TensorCore v5e/v6e.
      * v6e (and v5e) at real sizes: grow batch_block so batch_block*S_t is a
        few hundred rows (fills the MXU M dim, amortizes ~0.35us/step); on v5e
        raise vmem_limit_bytes if the mask tiles push past the 16 MiB default.
      * v7x: split across the two TensorCores (batch_block = B//2) only once
        each core gets >=~256 rows, and keep double-buffered tiles well under
        the 64 MiB physical VMEM (int8 masks quadruple the safe batch_block).
    """
    B, S_t, D = x.shape
    S_s = enc.shape[1]
    if batch_block is None:
        batch_block = B
    assert B % batch_block == 0
    n_steps = B // batch_block

    w32, w2t, bias = _pack_params(params)

    # Flatten activations into sublane-dense (rows, D) slabs; ship masks as
    # int8 "is_masked" tensors (1 = fill with -1e9): 4x less HBM traffic than
    # f32 at realistic S, and no float-equality compare inside the kernel.
    xf = x.reshape(B * S_t, D)
    encf = enc.reshape(B * S_s, D)
    smask = (src_msk[:, 0] == 0.0).astype(jnp.int8)   # (B, S_t, S_t)
    tmask = (tgt_msk[:, 0] == 0.0).astype(jnp.int8)   # (B, S_t, S_s)

    out_flat = pl.pallas_call(
        decoder_block_kernel,
        out_shape=jax.ShapeDtypeStruct((B * S_t, D), jnp.float32),
        grid=(n_steps,),
        in_specs=[
            pl.BlockSpec((batch_block * S_t, D), lambda i: (i, 0)),
            pl.BlockSpec((batch_block * S_s, D), lambda i: (i, 0)),
            pl.BlockSpec((batch_block, S_t, S_t), lambda i: (i, 0, 0)),
            pl.BlockSpec((batch_block, S_t, S_s), lambda i: (i, 0, 0)),
            pl.BlockSpec(w32.shape, lambda i: (0, 0)),
            pl.BlockSpec(w2t.shape, lambda i: (0, 0)),
            pl.BlockSpec(bias.shape, lambda i: (0, 0)),
        ],
        out_specs=pl.BlockSpec((batch_block * S_t, D), lambda i: (i, 0)),
        compiler_params=pltpu.CompilerParams(
            dimension_semantics=("parallel",)),
    )(xf, encf, smask, tmask, w32, w2t, bias)
    # TODO(synk): a lane-dense (rows*D//128, 128) output layout would use
    # full-width stores; only pays off at large batch_block*S_t (measure first).
    return out_flat.reshape(B, S_t, D)


def init_params(key):
    """PyTorch nn.Linear-style deterministic init (uniform +-1/sqrt(fan_in))."""
    def linear(k, out_f, in_f):
        k1, k2 = jax.random.split(k)
        bound = 1.0 / math.sqrt(in_f)
        w = jax.random.uniform(k1, (out_f, in_f), jnp.float32, -bound, bound)
        b = jax.random.uniform(k2, (out_f,), jnp.float32, -bound, bound)
        return w, b

    keys = jax.random.split(key, 10)
    sw, sb = zip(*[linear(keys[i], D_MODEL, D_MODEL) for i in range(4)])      # self: q,k,v,o
    cw, cb = zip(*[linear(keys[4 + i], D_MODEL, D_MODEL) for i in range(4)])  # cross: q,k,v,o
    w1, b1 = linear(keys[8], D_FF, D_MODEL)
    w2, b2 = linear(keys[9], D_MODEL, D_FF)
    return (jnp.stack(sw), jnp.stack(sb), jnp.stack(cw), jnp.stack(cb),
            w1, b1.reshape(1, D_FF), w2, b2.reshape(1, D_MODEL))


def reference(x, enc, src_msk, tgt_msk, params):
    """Pure-JAX re-implementation of the PyTorch module for verification."""
    saw, sab, caw, cab, w1, b1, w2, b2 = params

    def layer_norm(t):
        d = t.shape[-1]
        mean = t.mean(-1, keepdims=True)
        var = ((t - mean) ** 2).sum(-1, keepdims=True) / (d - 1)
        return ALPHA * (t - mean) / (jnp.sqrt(var) * EPS) + BETA

    def mha(q, k, v, w, b, mask):
        Qp = q @ w[0].T + b[0]
        Kp = k @ w[1].T + b[1]
        Vp = v @ w[2].T + b[2]
        B_, Sq, D = Qp.shape
        Sk = Kp.shape[1]
        Qh = Qp.reshape(B_, Sq, N_HEADS, D_K).transpose(0, 2, 1, 3)
        Kh = Kp.reshape(B_, Sk, N_HEADS, D_K).transpose(0, 2, 1, 3)
        Vh = Vp.reshape(B_, Sk, N_HEADS, D_K).transpose(0, 2, 1, 3)
        scores = jnp.einsum('bhqd,bhkd->bhqk', Qh, Vh) / math.sqrt(D_K)   # Q @ V^T (bug)
        scores = jnp.where(mask == 0.0, NEG_INF, scores)
        p = jax.nn.softmax(scores, axis=-1)
        o = jnp.einsum('bhqk,bhkd->bhqd', p, Kh)                          # @ K (bug)
        o = o.transpose(0, 2, 1, 3).reshape(B_, Sq, D)
        return o @ w[3].T + b[3]

    x = x + mha(layer_norm(x), layer_norm(x), layer_norm(x), saw, sab, src_msk)
    x = x + mha(layer_norm(x), enc, enc, caw, cab, tgt_msk)
    xn = layer_norm(x)
    h1 = jax.nn.relu(xn @ w1.T + b1)
    return x + h1 @ w2.T + b2


if __name__ == "__main__":
    key = jax.random.PRNGKey(0)
    kx, kenc, kp = jax.random.split(key, 3)
    B, S_T, S_S = 2, 8, 8

    x = jax.random.normal(kx, (B, S_T, D_MODEL), jnp.float32)
    enc = jax.random.normal(kenc, (B, S_S, D_MODEL), jnp.float32)

    causal = jnp.tril(jnp.ones((S_T, S_T), jnp.float32))
    src_msk = jnp.broadcast_to(causal, (B, 1, S_T, S_T)).astype(jnp.float32)
    cross = jnp.ones((S_T, S_S), jnp.float32).at[:, -2:].set(0.0)
    tgt_msk = jnp.broadcast_to(cross, (B, 1, S_T, S_S)).astype(jnp.float32)

    params = init_params(kp)

    out = decoder_block(x, enc, src_msk, tgt_msk, params)
    out = jax.block_until_ready(out)

    ref = reference(x, enc, src_msk, tgt_msk, params)
    rel_err = float(jnp.linalg.norm(out - ref) / jnp.linalg.norm(ref))

    assert out.shape == (B, S_T, D_MODEL)
    assert bool(jnp.isfinite(out).all())
    assert rel_err < 0.1, f"relative error too large: {rel_err}"
    print("KERNEL_OK")
</pallas_src>

<mosaic_0001>
module attributes {stable_mosaic.version = 11 : i64} {
  func.func @decoder_block_kernel(%arg0: i32, %arg1: memref<16x32xf32, #tpu.memory_space<vmem>>, %arg2: memref<16x32xf32, #tpu.memory_space<vmem>>, %arg3: memref<2x8x8xi8, #tpu.memory_space<vmem>>, %arg4: memref<2x8x8xi8, #tpu.memory_space<vmem>>, %arg5: memref<32x768xf32, #tpu.memory_space<vmem>>, %arg6: memref<64x32xf32, #tpu.memory_space<vmem>>, %arg7: memref<1x896xf32, #tpu.memory_space<vmem>>, %arg8: memref<16x32xf32, #tpu.memory_space<vmem>>) attributes {dimension_semantics = [#tpu.dimension_semantics<parallel>], iteration_bounds = array<i64: 1>, scalar_prefetch = 0 : i64, scratch_operands = 0 : i64, tpu.core_type = #tpu.core_type<tc>, window_params = [{transform_indices = @transform_0, window_bounds = array<i64: 16, 32>}, {transform_indices = @transform_1, window_bounds = array<i64: 16, 32>}, {transform_indices = @transform_2, window_bounds = array<i64: 2, 8, 8>}, {transform_indices = @transform_3, window_bounds = array<i64: 2, 8, 8>}, {pipeline_mode = #tpu.pipeline_mode<synchronous>, transform_indices = @transform_4, window_bounds = array<i64: 32, 768>}, {pipeline_mode = #tpu.pipeline_mode<synchronous>, transform_indices = @transform_5, window_bounds = array<i64: 64, 32>}, {pipeline_mode = #tpu.pipeline_mode<synchronous>, transform_indices = @transform_6, window_bounds = array<i64: 1, 896>}, {transform_indices = @transform_7, window_bounds = array<i64: 16, 32>}]} {
    %c0 = arith.constant 0 : index
    %c0_0 = arith.constant 0 : index
    %0 = vector.load %arg1[%c0, %c0_0] : memref<16x32xf32, #tpu.memory_space<vmem>>, vector<16x32xf32>
    %c0_1 = arith.constant 0 : index
    %c0_2 = arith.constant 0 : index
    %1 = vector.load %arg2[%c0_1, %c0_2] : memref<16x32xf32, #tpu.memory_space<vmem>>, vector<16x32xf32>
    %c0_3 = arith.constant 0 : index
    %c0_4 = arith.constant 0 : index
    %c0_5 = arith.constant 0 : index
    %2 = vector.load %arg3[%c0_3, %c0_4, %c0_5] : memref<2x8x8xi8, #tpu.memory_space<vmem>>, vector<2x8x8xi8>
    %3 = arith.extsi %2 : vector<2x8x8xi8> to vector<2x8x8xi32>
    %c0_6 = arith.constant 0 : index
    %c0_7 = arith.constant 0 : index
    %c0_8 = arith.constant 0 : index
    %4 = vector.load %arg4[%c0_6, %c0_7, %c0_8] : memref<2x8x8xi8, #tpu.memory_space<vmem>>, vector<2x8x8xi8>
    %5 = arith.extsi %4 : vector<2x8x8xi8> to vector<2x8x8xi32>
    %cst = arith.constant dense<0.000000e+00> : vector<16xf32>
    %6 = vector.multi_reduction <add>, %0, %cst [1] : vector<16x32xf32> to vector<16xf32>
    %7 = vector.shape_cast %6 : vector<16xf32> to vector<16x1xf32>
    %cst_9 = arith.constant 3.200000e+01 : f32
    %8 = vector.broadcast %cst_9 : f32 to vector<16x1xf32>
    %9 = arith.divf %7, %8 : vector<16x1xf32>
    %10 = vector.broadcast %9 : vector<16x1xf32> to vector<16x32xf32>
    %11 = arith.subf %0, %10 : vector<16x32xf32>
    %12 = arith.mulf %11, %11 : vector<16x32xf32>
    %cst_10 = arith.constant dense<0.000000e+00> : vector<16xf32>
    %13 = vector.multi_reduction <add>, %12, %cst_10 [1] : vector<16x32xf32> to vector<16xf32>
    %14 = vector.shape_cast %13 : vector<16xf32> to vector<16x1xf32>
    %cst_11 = arith.constant 0.0322580636 : f32
    %15 = vector.broadcast %cst_11 : f32 to vector<16x1xf32>
    %16 = arith.mulf %14, %15 : vector<16x1xf32>
    %17 = math.rsqrt %16 : vector<16x1xf32>
    %cst_12 = arith.constant 1.000000e+06 : f32
    %18 = vector.broadcast %cst_12 : f32 to vector<16x1xf32>
    %19 = arith.mulf %17, %18 : vector<16x1xf32>
    %20 = vector.broadcast %9 : vector<16x1xf32> to vector<16x32xf32>
    %21 = arith.subf %0, %20 : vector<16x32xf32>
    %cst_13 = arith.constant 1.000000e+00 : f32
    %22 = vector.broadcast %cst_13 : f32 to vector<16x32xf32>
    %23 = arith.mulf %22, %21 : vector<16x32xf32>
    %24 = vector.broadcast %19 : vector<16x1xf32> to vector<16x32xf32>
    %25 = arith.mulf %23, %24 : vector<16x32xf32>
    %cst_14 = arith.constant 0.000000e+00 : f32
    %26 = vector.broadcast %cst_14 : f32 to vector<16x32xf32>
    %27 = arith.addf %25, %26 : vector<16x32xf32>
    %c0_15 = arith.constant 0 : index
    %c0_16 = arith.constant 0 : index
    %28 = vector.load %arg5[%c0_15, %c0_16] : memref<32x768xf32, #tpu.memory_space<vmem>>, vector<32x96xf32>
    %cst_17 = arith.constant dense<0.000000e+00> : vector<16x96xf32>
    %29 = tpu.matmul %27, %28, %cst_17 {dimension_numbers = #tpu.dot_dimension_numbers<[1], [0], [0], [1], [0, 0, 1, 1], [], []>} : vector<16x32xf32>, vector<32x96xf32>, vector<16x96xf32> -> vector<16x96xf32>
    %c0_18 = arith.constant 0 : index
    %c0_19 = arith.constant 0 : index
    %30 = vector.load %arg7[%c0_18, %c0_19] : memref<1x896xf32, #tpu.memory_space<vmem>>, vector<1x96xf32>
    %31 = vector.broadcast %30 : vector<1x96xf32> to vector<16x96xf32>
    %32 = arith.addf %29, %31 : vector<16x96xf32>
    %33 = vector.extract_strided_slice %32 {offsets = [0, 0], sizes = [16, 32], strides = [1, 1]} : vector<16x96xf32> to vector<16x32xf32>
    %34 = vector.shape_cast %33 : vector<16x32xf32> to vector<2x8x32xf32>
    %35 = vector.extract_strided_slice %32 {offsets = [0, 32], sizes = [16, 64], strides = [1, 1]} : vector<16x96xf32> to vector<16x64xf32>
    %36 = vector.shape_cast %35 : vector<16x64xf32> to vector<2x8x64xf32>
    %37 = vector.extract_strided_slice %34 {offsets = [0, 0, 0], sizes = [2, 8, 8], strides = [1, 1, 1]} : vector<2x8x32xf32> to vector<2x8x8xf32>
    %38 = vector.extract_strided_slice %34 {offsets = [0, 0, 8], sizes = [2, 8, 8], strides = [1, 1, 1]} : vector<2x8x32xf32> to vector<2x8x8xf32>
    %39 = vector.extract_strided_slice %34 {offsets = [0, 0, 16], sizes = [2, 8, 8], strides = [1, 1, 1]} : vector<2x8x32xf32> to vector<2x8x8xf32>
    %40 = vector.extract_strided_slice %34 {offsets = [0, 0, 24], sizes = [2, 8, 8], strides = [1, 1, 1]} : vector<2x8x32xf32> to vector<2x8x8xf32>
    %41 = tpu.concatenate %37, %38, %39, %40 in 0 : vector<2x8x8xf32>, vector<2x8x8xf32>, vector<2x8x8xf32>, vector<2x8x8xf32> -> vector<8x8x8xf32>
    %42 = vector.extract_strided_slice %36 {offsets = [0, 0, 0], sizes = [2, 8, 8], strides = [1, 1, 1]} : vector<2x8x64xf32> to vector<2x8x8xf32>
    %43 = vector.extract_strided_slice %36 {offsets = [0, 0, 8], sizes = [2, 8, 8], strides = [1, 1, 1]} : vector<2x8x64xf32> to vector<2x8x8xf32>
    %44 = vector.extract_strided_slice %36 {offsets = [0, 0, 16], sizes = [2, 8, 8], strides = [1, 1, 1]} : vector<2x8x64xf32> to vector<2x8x8xf32>
    %45 = vector.extract_strided_slice %36 {offsets = [0, 0, 24], sizes = [2, 8, 8], strides = [1, 1, 1]} : vector<2x8x64xf32> to vector<2x8x8xf32>
    %46 = tpu.concatenate %42, %43, %44, %45 in 0 : vector<2x8x8xf32>, vector<2x8x8xf32>, vector<2x8x8xf32>, vector<2x8x8xf32> -> vector<8x8x8xf32>
    %47 = vector.extract_strided_slice %36 {offsets = [0, 0, 32], sizes = [2, 8, 8], strides = [1, 1, 1]} : vector<2x8x64xf32> to vector<2x8x8xf32>
    %48 = vector.extract_strided_slice %36 {offsets = [0, 0, 40], sizes = [2, 8, 8], strides = [1, 1, 1]} : vector<2x8x64xf32> to vector<2x8x8xf32>
    %49 = vector.extract_strided_slice %36 {offsets = [0, 0, 48], sizes = [2, 8, 8], strides = [1, 1, 1]} : vector<2x8x64xf32> to vector<2x8x8xf32>
    %50 = vector.extract_strided_slice %36 {offsets = [0, 0, 56], sizes = [2, 8, 8], strides = [1, 1, 1]} : vector<2x8x64xf32> to vector<2x8x8xf32>
    %51 = tpu.concatenate %47, %48, %49, %50 in 0 : vector<2x8x8xf32>, vector<2x8x8xf32>, vector<2x8x8xf32>, vector<2x8x8xf32> -> vector<8x8x8xf32>
    "tpu.trace_start"() <{level = 10 : i32, message = "bqd,bkd->bqk"}> : () -> ()
    %cst_20 = arith.constant dense<0.000000e+00> : vector<8x8x8xf32>
    %52 = tpu.matmul %41, %51, %cst_20 {dimension_numbers = #tpu.dot_dimension_numbers<[2], [2], [1], [1], [0, 0, 0, 1, 1, 1], [0], [0]>} : vector<8x8x8xf32>, vector<8x8x8xf32>, vector<8x8x8xf32> -> vector<8x8x8xf32>
    "tpu.trace_stop"() : () -> ()
    %cst_21 = arith.constant 0.353553385 : f32
    %53 = vector.broadcast %cst_21 : f32 to vector<8x8x8xf32>
    %54 = arith.mulf %52, %53 : vector<8x8x8xf32>
    %55 = tpu.concatenate %3, %3, %3, %3 in 0 : vector<2x8x8xi32>, vector<2x8x8xi32>, vector<2x8x8xi32>, vector<2x8x8xi32> -> vector<8x8x8xi32>
    %c0_i32 = arith.constant 0 : i32
    %56 = vector.broadcast %c0_i32 : i32 to vector<8x8x8xi32>
    %57 = arith.cmpi ne, %55, %56 : vector<8x8x8xi32>
    %cst_22 = arith.constant -1.000000e+09 : f32
    %58 = vector.broadcast %cst_22 : f32 to vector<8x8x8xf32>
    %59 = arith.select %57, %58, %54 : vector<8x8x8xi1>, vector<8x8x8xf32>
    %cst_23 = arith.constant dense<0xFF800000> : vector<8x8xf32>
    %60 = vector.multi_reduction <maximumf>, %59, %cst_23 [2] : vector<8x8x8xf32> to vector<8x8xf32>
    %61 = vector.shape_cast %60 : vector<8x8xf32> to vector<8x8x1xf32>
    %62 = vector.broadcast %61 : vector<8x8x1xf32> to vector<8x8x8xf32>
    %63 = arith.subf %59, %62 : vector<8x8x8xf32>
    %64 = math.exp %63 : vector<8x8x8xf32>
    %cst_24 = arith.constant dense<0.000000e+00> : vector<8x8xf32>
    %65 = vector.multi_reduction <add>, %64, %cst_24 [2] : vector<8x8x8xf32> to vector<8x8xf32>
    %66 = vector.shape_cast %65 : vector<8x8xf32> to vector<8x8x1xf32>
    %67 = vector.broadcast %66 : vector<8x8x1xf32> to vector<8x8x8xf32>
    %68 = arith.divf %64, %67 : vector<8x8x8xf32>
    "tpu.trace_start"() <{level = 10 : i32, message = "bqk,bkd->bqd"}> : () -> ()
    %cst_25 = arith.constant dense<0.000000e+00> : vector<8x8x8xf32>
    %69 = tpu.matmul %68, %46, %cst_25 {dimension_numbers = #tpu.dot_dimension_numbers<[2], [1], [1], [2], [0, 0, 0, 1, 1, 2], [0], [0]>} : vector<8x8x8xf32>, vector<8x8x8xf32>, vector<8x8x8xf32> -> vector<8x8x8xf32>
    "tpu.trace_stop"() : () -> ()
    %70 = vector.extract_strided_slice %69 {offsets = [0, 0, 0], sizes = [2, 8, 8], strides = [1, 1, 1]} : vector<8x8x8xf32> to vector<2x8x8xf32>
    %71 = vector.shape_cast %70 : vector<2x8x8xf32> to vector<16x8xf32>
    %72 = vector.extract_strided_slice %69 {offsets = [2, 0, 0], sizes = [2, 8, 8], strides = [1, 1, 1]} : vector<8x8x8xf32> to vector<2x8x8xf32>
    %73 = vector.shape_cast %72 : vector<2x8x8xf32> to vector<16x8xf32>
    %74 = vector.extract_strided_slice %69 {offsets = [4, 0, 0], sizes = [2, 8, 8], strides = [1, 1, 1]} : vector<8x8x8xf32> to vector<2x8x8xf32>
    %75 = vector.shape_cast %74 : vector<2x8x8xf32> to vector<16x8xf32>
    %76 = vector.extract_strided_slice %69 {offsets = [6, 0, 0], sizes = [2, 8, 8], strides = [1, 1, 1]} : vector<8x8x8xf32> to vector<2x8x8xf32>
    %77 = vector.shape_cast %76 : vector<2x8x8xf32> to vector<16x8xf32>
    %78 = tpu.concatenate %71, %73, %75, %77 in 1 : vector<16x8xf32>, vector<16x8xf32>, vector<16x8xf32>, vector<16x8xf32> -> vector<16x32xf32>
    %c0_26 = arith.constant 0 : index
    %c128 = arith.constant 128 : index
    %79 = vector.load %arg5[%c0_26, %c128] : memref<32x768xf32, #tpu.memory_space<vmem>>, vector<32x32xf32>
    %cst_27 = arith.constant dense<0.000000e+00> : vector<16x32xf32>
    %80 = tpu.matmul %78, %79, %cst_27 {dimension_numbers = #tpu.dot_dimension_numbers<[1], [0], [0], [1], [0, 0, 1, 1], [], []>} : vector<16x32xf32>, vector<32x32xf32>, vector<16x32xf32> -> vector<16x32xf32>
    %81 = arith.addf %0, %80 : vector<16x32xf32>
    %c0_28 = arith.constant 0 : index
    %c128_29 = arith.constant 128 : index
    %82 = vector.load %arg7[%c0_28, %c128_29] : memref<1x896xf32, #tpu.memory_space<vmem>>, vector<1x32xf32>
    %83 = vector.broadcast %82 : vector<1x32xf32> to vector<16x32xf32>
    %84 = arith.addf %81, %83 : vector<16x32xf32>
    %cst_30 = arith.constant dense<0.000000e+00> : vector<16xf32>
    %85 = vector.multi_reduction <add>, %84, %cst_30 [1] : vector<16x32xf32> to vector<16xf32>
    %86 = vector.shape_cast %85 : vector<16xf32> to vector<16x1xf32>
    %cst_31 = arith.constant 3.200000e+01 : f32
    %87 = vector.broadcast %cst_31 : f32 to vector<16x1xf32>
    %88 = arith.divf %86, %87 : vector<16x1xf32>
    %89 = vector.broadcast %88 : vector<16x1xf32> to vector<16x32xf32>
    %90 = arith.subf %84, %89 : vector<16x32xf32>
    %91 = arith.mulf %90, %90 : vector<16x32xf32>
    %cst_32 = arith.constant dense<0.000000e+00> : vector<16xf32>
    %92 = vector.multi_reduction <add>, %91, %cst_32 [1] : vector<16x32xf32> to vector<16xf32>
    %93 = vector.shape_cast %92 : vector<16xf32> to vector<16x1xf32>
    %cst_33 = arith.constant 0.0322580636 : f32
    %94 = vector.broadcast %cst_33 : f32 to vector<16x1xf32>
    %95 = arith.mulf %93, %94 : vector<16x1xf32>
    %96 = math.rsqrt %95 : vector<16x1xf32>
    %cst_34 = arith.constant 1.000000e+06 : f32
    %97 = vector.broadcast %cst_34 : f32 to vector<16x1xf32>
    %98 = arith.mulf %96, %97 : vector<16x1xf32>
    %99 = vector.broadcast %88 : vector<16x1xf32> to vector<16x32xf32>
    %100 = arith.subf %84, %99 : vector<16x32xf32>
    %cst_35 = arith.constant 1.000000e+00 : f32
    %101 = vector.broadcast %cst_35 : f32 to vector<16x32xf32>
    %102 = arith.mulf %101, %100 : vector<16x32xf32>
    %103 = vector.broadcast %98 : vector<16x1xf32> to vector<16x32xf32>
    %104 = arith.mulf %102, %103 : vector<16x32xf32>
    %cst_36 = arith.constant 0.000000e+00 : f32
    %105 = vector.broadcast %cst_36 : f32 to vector<16x32xf32>
    %106 = arith.addf %104, %105 : vector<16x32xf32>
    %c0_37 = arith.constant 0 : index
    %c256 = arith.constant 256 : index
    %107 = vector.load %arg5[%c0_37, %c256] : memref<32x768xf32, #tpu.memory_space<vmem>>, vector<32x32xf32>
    %cst_38 = arith.constant dense<0.000000e+00> : vector<16x32xf32>
    %108 = tpu.matmul %106, %107, %cst_38 {dimension_numbers = #tpu.dot_dimension_numbers<[1], [0], [0], [1], [0, 0, 1, 1], [], []>} : vector<16x32xf32>, vector<32x32xf32>, vector<16x32xf32> -> vector<16x32xf32>
    %c0_39 = arith.constant 0 : index
    %c256_40 = arith.constant 256 : index
    %109 = vector.load %arg7[%c0_39, %c256_40] : memref<1x896xf32, #tpu.memory_space<vmem>>, vector<1x32xf32>
    %110 = vector.broadcast %109 : vector<1x32xf32> to vector<16x32xf32>
    %111 = arith.addf %108, %110 : vector<16x32xf32>
    %112 = vector.shape_cast %111 : vector<16x32xf32> to vector<2x8x32xf32>
    %c0_41 = arith.constant 0 : index
    %c384 = arith.constant 384 : index
    %113 = vector.load %arg5[%c0_41, %c384] : memref<32x768xf32, #tpu.memory_space<vmem>>, vector<32x64xf32>
    %cst_42 = arith.constant dense<0.000000e+00> : vector<16x64xf32>
    %114 = tpu.matmul %1, %113, %cst_42 {dimension_numbers = #tpu.dot_dimension_numbers<[1], [0], [0], [1], [0, 0, 1, 1], [], []>} : vector<16x32xf32>, vector<32x64xf32>, vector<16x64xf32> -> vector<16x64xf32>
    %c0_43 = arith.constant 0 : index
    %c384_44 = arith.constant 384 : index
    %115 = vector.load %arg7[%c0_43, %c384_44] : memref<1x896xf32, #tpu.memory_space<vmem>>, vector<1x64xf32>
    %116 = vector.broadcast %115 : vector<1x64xf32> to vector<16x64xf32>
    %117 = arith.addf %114, %116 : vector<16x64xf32>
    %118 = vector.shape_cast %117 : vector<16x64xf32> to vector<2x8x64xf32>
    %119 = vector.extract_strided_slice %112 {offsets = [0, 0, 0], sizes = [2, 8, 8], strides = [1, 1, 1]} : vector<2x8x32xf32> to vector<2x8x8xf32>
    %120 = vector.extract_strided_slice %112 {offsets = [0, 0, 8], sizes = [2, 8, 8], strides = [1, 1, 1]} : vector<2x8x32xf32> to vector<2x8x8xf32>
    %121 = vector.extract_strided_slice %112 {offsets = [0, 0, 16], sizes = [2, 8, 8], strides = [1, 1, 1]} : vector<2x8x32xf32> to vector<2x8x8xf32>
    %122 = vector.extract_strided_slice %112 {offsets = [0, 0, 24], sizes = [2, 8, 8], strides = [1, 1, 1]} : vector<2x8x32xf32> to vector<2x8x8xf32>
    %123 = tpu.concatenate %119, %120, %121, %122 in 0 : vector<2x8x8xf32>, vector<2x8x8xf32>, vector<2x8x8xf32>, vector<2x8x8xf32> -> vector<8x8x8xf32>
    %124 = vector.extract_strided_slice %118 {offsets = [0, 0, 0], sizes = [2, 8, 8], strides = [1, 1, 1]} : vector<2x8x64xf32> to vector<2x8x8xf32>
    %125 = vector.extract_strided_slice %118 {offsets = [0, 0, 8], sizes = [2, 8, 8], strides = [1, 1, 1]} : vector<2x8x64xf32> to vector<2x8x8xf32>
    %126 = vector.extract_strided_slice %118 {offsets = [0, 0, 16], sizes = [2, 8, 8], strides = [1, 1, 1]} : vector<2x8x64xf32> to vector<2x8x8xf32>
    %127 = vector.extract_strided_slice %118 {offsets = [0, 0, 24], sizes = [2, 8, 8], strides = [1, 1, 1]} : vector<2x8x64xf32> to vector<2x8x8xf32>
    %128 = tpu.concatenate %124, %125, %126, %127 in 0 : vector<2x8x8xf32>, vector<2x8x8xf32>, vector<2x8x8xf32>, vector<2x8x8xf32> -> vector<8x8x8xf32>
    %129 = vector.extract_strided_slice %118 {offsets = [0, 0, 32], sizes = [2, 8, 8], strides = [1, 1, 1]} : vector<2x8x64xf32> to vector<2x8x8xf32>
    %130 = vector.extract_strided_slice %118 {offsets = [0, 0, 40], sizes = [2, 8, 8], strides = [1, 1, 1]} : vector<2x8x64xf32> to vector<2x8x8xf32>
    %131 = vector.extract_strided_slice %118 {offsets = [0, 0, 48], sizes = [2, 8, 8], strides = [1, 1, 1]} : vector<2x8x64xf32> to vector<2x8x8xf32>
    %132 = vector.extract_strided_slice %118 {offsets = [0, 0, 56], sizes = [2, 8, 8], strides = [1, 1, 1]} : vector<2x8x64xf32> to vector<2x8x8xf32>
    %133 = tpu.concatenate %129, %130, %131, %132 in 0 : vector<2x8x8xf32>, vector<2x8x8xf32>, vector<2x8x8xf32>, vector<2x8x8xf32> -> vector<8x8x8xf32>
    "tpu.trace_start"() <{level = 10 : i32, message = "bqd,bkd->bqk"}> : () -> ()
    %cst_45 = arith.constant dense<0.000000e+00> : vector<8x8x8xf32>
    %134 = tpu.matmul %123, %133, %cst_45 {dimension_numbers = #tpu.dot_dimension_numbers<[2], [2], [1], [1], [0, 0, 0, 1, 1, 1], [0], [0]>} : vector<8x8x8xf32>, vector<8x8x8xf32>, vector<8x8x8xf32> -> vector<8x8x8xf32>
    "tpu.trace_stop"() : () -> ()
    %cst_46 = arith.constant 0.353553385 : f32
    %135 = vector.broadcast %cst_46 : f32 to vector<8x8x8xf32>
    %136 = arith.mulf %134, %135 : vector<8x8x8xf32>
    %137 = tpu.concatenate %5, %5, %5, %5 in 0 : vector<2x8x8xi32>, vector<2x8x8xi32>, vector<2x8x8xi32>, vector<2x8x8xi32> -> vector<8x8x8xi32>
    %c0_i32_47 = arith.constant 0 : i32
    %138 = vector.broadcast %c0_i32_47 : i32 to vector<8x8x8xi32>
    %139 = arith.cmpi ne, %137, %138 : vector<8x8x8xi32>
    %cst_48 = arith.constant -1.000000e+09 : f32
    %140 = vector.broadcast %cst_48 : f32 to vector<8x8x8xf32>
    %141 = arith.select %139, %140, %136 : vector<8x8x8xi1>, vector<8x8x8xf32>
    %cst_49 = arith.constant dense<0xFF800000> : vector<8x8xf32>
    %142 = vector.multi_reduction <maximumf>, %141, %cst_49 [2] : vector<8x8x8xf32> to vector<8x8xf32>
    %143 = vector.shape_cast %142 : vector<8x8xf32> to vector<8x8x1xf32>
    %144 = vector.broadcast %143 : vector<8x8x1xf32> to vector<8x8x8xf32>
    %145 = arith.subf %141, %144 : vector<8x8x8xf32>
    %146 = math.exp %145 : vector<8x8x8xf32>
    %cst_50 = arith.constant dense<0.000000e+00> : vector<8x8xf32>
    %147 = vector.multi_reduction <add>, %146, %cst_50 [2] : vector<8x8x8xf32> to vector<8x8xf32>
    %148 = vector.shape_cast %147 : vector<8x8xf32> to vector<8x8x1xf32>
    %149 = vector.broadcast %148 : vector<8x8x1xf32> to vector<8x8x8xf32>
    %150 = arith.divf %146, %149 : vector<8x8x8xf32>
    "tpu.trace_start"() <{level = 10 : i32, message = "bqk,bkd->bqd"}> : () -> ()
    %cst_51 = arith.constant dense<0.000000e+00> : vector<8x8x8xf32>
    %151 = tpu.matmul %150, %128, %cst_51 {dimension_numbers = #tpu.dot_dimension_numbers<[2], [1], [1], [2], [0, 0, 0, 1, 1, 2], [0], [0]>} : vector<8x8x8xf32>, vector<8x8x8xf32>, vector<8x8x8xf32> -> vector<8x8x8xf32>
    "tpu.trace_stop"() : () -> ()
    %152 = vector.extract_strided_slice %151 {offsets = [0, 0, 0], sizes = [2, 8, 8], strides = [1, 1, 1]} : vector<8x8x8xf32> to vector<2x8x8xf32>
    %153 = vector.shape_cast %152 : vector<2x8x8xf32> to vector<16x8xf32>
    %154 = vector.extract_strided_slice %151 {offsets = [2, 0, 0], sizes = [2, 8, 8], strides = [1, 1, 1]} : vector<8x8x8xf32> to vector<2x8x8xf32>
    %155 = vector.shape_cast %154 : vector<2x8x8xf32> to vector<16x8xf32>
    %156 = vector.extract_strided_slice %151 {offsets = [4, 0, 0], sizes = [2, 8, 8], strides = [1, 1, 1]} : vector<8x8x8xf32> to vector<2x8x8xf32>
    %157 = vector.shape_cast %156 : vector<2x8x8xf32> to vector<16x8xf32>
    %158 = vector.extract_strided_slice %151 {offsets = [6, 0, 0], sizes = [2, 8, 8], strides = [1, 1, 1]} : vector<8x8x8xf32> to vector<2x8x8xf32>
    %159 = vector.shape_cast %158 : vector<2x8x8xf32> to vector<16x8xf32>
    %160 = tpu.concatenate %153, %155, %157, %159 in 1 : vector<16x8xf32>, vector<16x8xf32>, vector<16x8xf32>, vector<16x8xf32> -> vector<16x32xf32>
    %c0_52 = arith.constant 0 : index
    %c512 = arith.constant 512 : index
    %161 = vector.load %arg5[%c0_52, %c512] : memref<32x768xf32, #tpu.memory_space<vmem>>, vector<32x32xf32>
    %cst_53 = arith.constant dense<0.000000e+00> : vector<16x32xf32>
    %162 = tpu.matmul %160, %161, %cst_53 {dimension_numbers = #tpu.dot_dimension_numbers<[1], [0], [0], [1], [0, 0, 1, 1], [], []>} : vector<16x32xf32>, vector<32x32xf32>, vector<16x32xf32> -> vector<16x32xf32>
    %163 = arith.addf %84, %162 : vector<16x32xf32>
    %c0_54 = arith.constant 0 : index
    %c512_55 = arith.constant 512 : index
    %164 = vector.load %arg7[%c0_54, %c512_55] : memref<1x896xf32, #tpu.memory_space<vmem>>, vector<1x32xf32>
    %165 = vector.broadcast %164 : vector<1x32xf32> to vector<16x32xf32>
    %166 = arith.addf %163, %165 : vector<16x32xf32>
    %cst_56 = arith.constant dense<0.000000e+00> : vector<16xf32>
    %167 = vector.multi_reduction <add>, %166, %cst_56 [1] : vector<16x32xf32> to vector<16xf32>
    %168 = vector.shape_cast %167 : vector<16xf32> to vector<16x1xf32>
    %cst_57 = arith.constant 3.200000e+01 : f32
    %169 = vector.broadcast %cst_57 : f32 to vector<16x1xf32>
    %170 = arith.divf %168, %169 : vector<16x1xf32>
    %171 = vector.broadcast %170 : vector<16x1xf32> to vector<16x32xf32>
    %172 = arith.subf %166, %171 : vector<16x32xf32>
    %173 = arith.mulf %172, %172 : vector<16x32xf32>
    %cst_58 = arith.constant dense<0.000000e+00> : vector<16xf32>
    %174 = vector.multi_reduction <add>, %173, %cst_58 [1] : vector<16x32xf32> to vector<16xf32>
    %175 = vector.shape_cast %174 : vector<16xf32> to vector<16x1xf32>
    %cst_59 = arith.constant 0.0322580636 : f32
    %176 = vector.broadcast %cst_59 : f32 to vector<16x1xf32>
    %177 = arith.mulf %175, %176 : vector<16x1xf32>
    %178 = math.rsqrt %177 : vector<16x1xf32>
    %cst_60 = arith.constant 1.000000e+06 : f32
    %179 = vector.broadcast %cst_60 : f32 to vector<16x1xf32>
    %180 = arith.mulf %178, %179 : vector<16x1xf32>
    %181 = vector.broadcast %170 : vector<16x1xf32> to vector<16x32xf32>
    %182 = arith.subf %166, %181 : vector<16x32xf32>
    %cst_61 = arith.constant 1.000000e+00 : f32
    %183 = vector.broadcast %cst_61 : f32 to vector<16x32xf32>
    %184 = arith.mulf %183, %182 : vector<16x32xf32>
    %185 = vector.broadcast %180 : vector<16x1xf32> to vector<16x32xf32>
    %186 = arith.mulf %184, %185 : vector<16x32xf32>
    %cst_62 = arith.constant 0.000000e+00 : f32
    %187 = vector.broadcast %cst_62 : f32 to vector<16x32xf32>
    %188 = arith.addf %186, %187 : vector<16x32xf32>
    %c0_63 = arith.constant 0 : index
    %c640 = arith.constant 640 : index
    %189 = vector.load %arg5[%c0_63, %c640] : memref<32x768xf32, #tpu.memory_space<vmem>>, vector<32x64xf32>
    %cst_64 = arith.constant dense<0.000000e+00> : vector<16x64xf32>
    %190 = tpu.matmul %188, %189, %cst_64 {dimension_numbers = #tpu.dot_dimension_numbers<[1], [0], [0], [1], [0, 0, 1, 1], [], []>} : vector<16x32xf32>, vector<32x64xf32>, vector<16x64xf32> -> vector<16x64xf32>
    %c0_65 = arith.constant 0 : index
    %c640_66 = arith.constant 640 : index
    %191 = vector.load %arg7[%c0_65, %c640_66] : memref<1x896xf32, #tpu.memory_space<vmem>>, vector<1x64xf32>
    %192 = vector.broadcast %191 : vector<1x64xf32> to vector<16x64xf32>
    %193 = arith.addf %190, %192 : vector<16x64xf32>
    %cst_67 = arith.constant 0.000000e+00 : f32
    %194 = vector.broadcast %cst_67 : f32 to vector<16x64xf32>
    %195 = arith.maximumf %193, %194 : vector<16x64xf32>
    %c0_68 = arith.constant 0 : index
    %c0_69 = arith.constant 0 : index
    %196 = vector.load %arg6[%c0_68, %c0_69] : memref<64x32xf32, #tpu.memory_space<vmem>>, vector<64x32xf32>
    %cst_70 = arith.constant dense<0.000000e+00> : vector<16x32xf32>
    %197 = tpu.matmul %195, %196, %cst_70 {dimension_numbers = #tpu.dot_dimension_numbers<[1], [0], [0], [1], [0, 0, 1, 1], [], []>} : vector<16x64xf32>, vector<64x32xf32>, vector<16x32xf32> -> vector<16x32xf32>
    %198 = arith.addf %166, %197 : vector<16x32xf32>
    %c0_71 = arith.constant 0 : index
    %c768 = arith.constant 768 : index
    %199 = vector.load %arg7[%c0_71, %c768] : memref<1x896xf32, #tpu.memory_space<vmem>>, vector<1x32xf32>
    %200 = vector.broadcast %199 : vector<1x32xf32> to vector<16x32xf32>
    %201 = arith.addf %198, %200 : vector<16x32xf32>
    %c0_72 = arith.constant 0 : index
    %c0_73 = arith.constant 0 : index
    %202 = vector.load %arg8[%c0_72, %c0_73] : memref<16x32xf32, #tpu.memory_space<vmem>>, vector<16x32xf32>
    tpu.vector_store %arg8[%c0_72, %c0_73], %201 {strides = array<i32>} : memref<16x32xf32, #tpu.memory_space<vmem>>, vector<16x32xf32>,
    return
  }
  func.func @transform_0(%arg0: i32) -> (i32, i32) {
    %c0_i32 = arith.constant 0 : i32
    %c0_i32_0 = arith.constant 0 : i32
    return %arg0, %c0_i32 : i32, i32
  }
  func.func @transform_1(%arg0: i32) -> (i32, i32) {
    %c0_i32 = arith.constant 0 : i32
    %c0_i32_0 = arith.constant 0 : i32
    return %arg0, %c0_i32 : i32, i32
  }
  func.func @transform_2(%arg0: i32) -> (i32, i32, i32) {
    %c0_i32 = arith.constant 0 : i32
    %c0_i32_0 = arith.constant 0 : i32
    %c0_i32_1 = arith.constant 0 : i32
    return %arg0, %c0_i32, %c0_i32_0 : i32, i32, i32
  }
  func.func @transform_3(%arg0: i32) -> (i32, i32, i32) {
    %c0_i32 = arith.constant 0 : i32
    %c0_i32_0 = arith.constant 0 : i32
    %c0_i32_1 = arith.constant 0 : i32
    return %arg0, %c0_i32, %c0_i32_0 : i32, i32, i32
  }
  func.func @transform_4(%arg0: i32) -> (i32, i32) {
    %c0_i32 = arith.constant 0 : i32
    %c0_i32_0 = arith.constant 0 : i32
    %c0_i32_1 = arith.constant 0 : i32
    return %c0_i32, %c0_i32_0 : i32, i32
  }
  func.func @transform_5(%arg0: i32) -> (i32, i32) {
    %c0_i32 = arith.constant 0 : i32
    %c0_i32_0 = arith.constant 0 : i32
    %c0_i32_1 = arith.constant 0 : i32
    return %c0_i32, %c0_i32_0 : i32, i32
  }
  func.func @transform_6(%arg0: i32) -> (i32, i32) {
    %c0_i32 = arith.constant 0 : i32
    %c0_i32_0 = arith.constant 0 : i32
    %c0_i32_1 = arith.constant 0 : i32
    return %c0_i32, %c0_i32_0 : i32, i32
  }
  func.func @transform_7(%arg0: i32) -> (i32, i32) {
    %c0_i32 = arith.constant 0 : i32
    %c0_i32_0 = arith.constant 0 : i32
    return %arg0, %c0_i32 : i32, i32
  }
}

</mosaic_0001>

<llo_original>
// kernel: tpu_custom_call.1
$region0: #{tpu_custom_call.1}
  #allocation0 [shape = 'u32[]', space=smem, size = 0x4, offset = 0x4, fixed_abs, tag = 'smem constant byte address 0x4 - core index']
  #allocation1 [shape = 'u32[144,128]{1,0:T(1,128)}', space=vmem, size = 0x12000, scoped, tag = 'internal scratch']
  %s0 = inlined_call_operand.vmem [shape: f32[16,32], index: 0, kind: input, shape index: {}]
  %s1 = inlined_call_operand.vmem [shape: f32[16,32], index: 1, kind: input, shape index: {}]
  %s2 = inlined_call_operand.vmem [shape: s8[2,8,8], index: 2, kind: input, shape index: {}]
  %s3 = inlined_call_operand.vmem [shape: s8[2,8,8], index: 3, kind: input, shape index: {}]
  %s4 = inlined_call_operand.hbm [shape: f32[32,768], index: 4, kind: input, shape index: {}]
  %s5 = inlined_call_operand.vmem [shape: f32[64,32], index: 5, kind: input, shape index: {}]
  %s6 = inlined_call_operand.vmem [shape: f32[1,896], index: 6, kind: input, shape index: {}]
  %s7 = inlined_call_operand.hbm [shape: f32[16,32], index: 7, kind: output, shape index: {}]
  %s8 = sld [smem:[#allocation0]]
  $region42: #{tpu_custom_call.1} parent=0
    _
  %s10 = ssub.s32 1, %s8
  %s11 = scalar_select 0, %s10, %s8
  $region1: #{tpu_custom_call.1} parent=0
    #allocation2 [shape = 'u8[98304]{0}', space=vmem, size = 0x18000, scoped, tag = 'input window, operand 4, single buffered']
    #allocation3 [shape = 's32[1]{0}', space=sflag, size = 0x4, scoped, tag = 'scoped memory for tpu_custom_call.1']
    #allocation4 [shape = 's32[1]{0}', space=sflag, size = 0x4, scoped, tag = 'scoped memory for tpu_custom_call.1']
    #allocation5 [shape = 'u8[8192]{0}', space=vmem, size = 0x2000, scoped, tag = 'output window, operand 0, single buffered']
    %12 = vsyncpa [#allocation3], 0
    %13 = vsyncpa [#allocation4], 0
    // Predicated region
    $region2: #{tpu_custom_call.1} parent=1 // pred_check
      _
    $region3: #{tpu_custom_call.1} parent=1 // pred_check_branch
      %15 = sbr.rel (0) target = $region5
    $region4: #{tpu_custom_call.1} parent=1 // pred_region
      _
    $region5: #{tpu_custom_call.1} parent=1 // pred_fallthru
      _
    // Predicated region
    $region6: #{tpu_custom_call.1} parent=1 // pred_check
      _
    $region7: #{tpu_custom_call.1} parent=1 // pred_check_branch
      %17 = sbr.rel (0) target = $region9
    $region8: #{tpu_custom_call.1} parent=1 // pred_region
      _
    $region9: #{tpu_custom_call.1} parent=1 // pred_fallthru
      _
    // Predicated region
    $region10: #{tpu_custom_call.1} parent=1 // pred_check
      _
    $region11: #{tpu_custom_call.1} parent=1 // pred_check_branch
      %19 = sbr.rel (0) target = $region13
    $region12: #{tpu_custom_call.1} parent=1 // pred_region
      _
    $region13: #{tpu_custom_call.1} parent=1 // pred_fallthru
      _
    // Predicated region
    $region14: #{tpu_custom_call.1} parent=1 // pred_check
      _
    $region15: #{tpu_custom_call.1} parent=1 // pred_check_branch
      %21 = sbr.rel (0) target = $region17
    $region16: #{tpu_custom_call.1} parent=1 // pred_region
      _
    $region17: #{tpu_custom_call.1} parent=1 // pred_fallthru
      _
    // Predicated region
    $region18: #{tpu_custom_call.1} parent=1 // pred_check
      _
    $region19: #{tpu_custom_call.1} parent=1 // pred_check_branch
      %23 = sbr.rel (0) target = $region21
    $region20: #{tpu_custom_call.1} parent=1 // pred_region
      %s25 = ssub.s32 3072, 3072
      %26 = vsyncadd [#allocation3], %s25
      %s27 = sshll.u32 [#allocation2], 4
      %s28 = int_to_ptr.vmem [resolvable:$true] %s27
      %33 = dma.hbm_to_vmem [thread:$0]  %s4, 3072, %s28, [#allocation3], 768, 768, 48
    $region21: #{tpu_custom_call.1} parent=1 // pred_fallthru
      _
    // Predicated region
    $region22: #{tpu_custom_call.1} parent=1 // pred_check
      _
    $region23: #{tpu_custom_call.1} parent=1 // pred_check_branch
      %35 = sbr.rel (0) target = $region25
    $region24: #{tpu_custom_call.1} parent=1 // pred_region
      _
    $region25: #{tpu_custom_call.1} parent=1 // pred_fallthru
      _
    // Predicated region
    $region26: #{tpu_custom_call.1} parent=1 // pred_check
      _
    $region27: #{tpu_custom_call.1} parent=1 // pred_check_branch
      %37 = sbr.rel (0) target = $region29
    $region28: #{tpu_custom_call.1} parent=1 // pred_region
      _
    $region29: #{tpu_custom_call.1} parent=1 // pred_fallthru
      _
    // Predicated region
    $region30: #{tpu_custom_call.1} parent=1 // pred_check
      _
    $region31: #{tpu_custom_call.1} parent=1 // pred_check_branch
      %39 = sbr.rel (0) target = $region33
    $region32: #{tpu_custom_call.1} parent=1 // pred_region
      %40 = dma.done [#allocation3], 3072
    $region33: #{tpu_custom_call.1} parent=1 // pred_fallthru
      _
    %v41 = vld [vmem:[%s0] sm:$0xff]
    %v42 = vld [vmem:[%s0 + $0x8] sm:$0xff]
    %v43 = vld [vmem:[%s1] sm:$0xff]
    %v44 = vld [vmem:[%s1 + $0x8] sm:$0xff]
    %v45 = vld [vmem:[%s2] sm:$0x3]
    %v46 = vld [vmem:[%s2 + $0x2] sm:$0x3]
    %v47 = vunpack.c.0.s8 %v45
    %v48 = vunpack.c.0.s8 %v46
    %v49 = vld [vmem:[%s3] sm:$0x3]
    %v50 = vld [vmem:[%s3 + $0x2] sm:$0x3]
    %v51 = vunpack.c.0.s8 %v49
    %v52 = vunpack.c.0.s8 %v50
    %vm53 = vcmask 261120
    %v54 = vsel %vm53, %v41, 0.0
    %55 = vadd.xlane.f32.xlu0 %v54
    %v56 = vpop.xlane.xlu0 %55
    %v57 = vsel %vm53, %v42, 0.0
    %58 = vadd.xlane.f32.xlu0 %v57
    %v59 = vpop.xlane.xlu0 %58
    %v60 = vrcp.pop 32.0
    %v61 = vmul.f32 %v56, %v60
    %v62 = vmul.f32 %v59, %v60
    %v63 = vsub.f32 %v41, %v61
    %v64 = vsub.f32 %v42, %v62
    %v65 = vmul.f32 %v63, %v63
    %v66 = vmul.f32 %v64, %v64
    %v67 = vsel %vm53, %v65, 0.0
    %68 = vadd.xlane.f32.xlu0 %v67
    %v69 = vpop.xlane.xlu0 %68
    %v70 = vsel %vm53, %v66, 0.0
    %71 = vadd.xlane.f32.xlu0 %v70
    %v72 = vpop.xlane.xlu0 %71
    %v73 = vmul.f32 %v69, 0.032258064
    %v74 = vmul.f32 %v72, 0.032258064
    %v75 = vrsqrt.pop %v73
    %v76 = vrsqrt.pop %v74
    %v77 = vmul.f32 %v75, 1000000.0
    %v78 = vmul.f32 %v76, 1000000.0
    %v79 = vmul.f32 %v63, %v77
    %v80 = vmul.f32 %v64, %v78
    %v81 = vadd.f32 %v79, 0.0
    %v82 = vadd.f32 %v80, 0.0
    %v83 = vld [vmem:[#allocation2] sm:$0xff]
    %v84 = vld [vmem:[#allocation2 + $0x30] sm:$0xff]
    %v85 = vld [vmem:[#allocation2 + $0x60] sm:$0xff]
    %v86 = vld [vmem:[#allocation2 + $0x90] sm:$0xff]
    %v87 = vld [vmem:[%s6] sm:$0x1]
    %v89 = vlaneseq
    %v90 = vshrl.u32 %v89, 7
    %v91 = vsub.s32 0, %v90
    %v92 = vrot.slane %v87, %v91
    %v95 = vsel %vm53, %v81, 0
    %v98 = vsel %vm53, %v82, 0
    %100 = vmatprep.subr.mxu0 0.0
    %101 = vmatpush1.msra.mxu0 %v83
    %102 = vmatprep.subr.mxu0 0.0
    %103 = vmatpush1.msra.mxu0 %v84
    %104 = vmatprep.subr.mxu0 0.0
    %105 = vmatpush1.msra.mxu0 %v85
    %106 = vmatprep.subr.mxu0 0.0
    %107 = vmatpush1.msra.mxu0 %v86
    %108 = vmatprep.subr.mxu0 0.0
    %109 = vmatpush1.msra.mxu0 0.0
    %110 = vmatprep.subr.mxu0 0.0
    %111 = vmatpush1.msra.mxu0 0.0
    %112 = vmatprep.subr.mxu0 0.0
    %113 = vmatpush1.msra.mxu0 0.0
    %114 = vmatprep.subr.mxu0 0.0
    %115 = vmatpush1.msra.mxu0 0.0
    %116 = vmatprep.subr.mxu0 0.0
    %117 = vmatpush1.msra.mxu0 0.0
    %118 = vmatprep.subr.mxu0 0.0
    %119 = vmatpush1.msra.mxu0 0.0
    %120 = vmatprep.subr.mxu0 0.0
    %121 = vmatpush1.msra.mxu0 0.0
    %122 = vmatprep.subr.mxu0 0.0
    %123 = vmatpush1.msra.mxu0 0.0
    %124 = vmatprep.subr.mxu0 0.0
    %125 = vmatpush1.msra.mxu0 0.0
    %126 = vmatprep.subr.mxu0 0.0
    %127 = vmatpush1.msra.mxu0 0.0
    %128 = vmatprep.subr.mxu0 0.0
    %129 = vmatpush1.msra.mxu0 0.0
    %130 = vmatprep.subr.mxu0 0.0
    %131 = vmatpush1.msra.mxu0 0.0
    %132 = vmatprep.subr.mxu0 0.0
    %133 = vmatpush1.msra.mxu0 0.0
    %134 = vmatprep.subr.mxu0 0.0
    %135 = vmatpush1.msra.mxu0 0.0
    %136 = vmatprep.subr.mxu0 0.0
    %137 = vmatpush1.msra.mxu0 0.0
    %138 = vmatprep.subr.mxu0 0.0
    %139 = vmatpush1.msra.mxu0 0.0
    %140 = vmatprep.subr.mxu0 0.0
    %141 = vmatpush1.msra.mxu0 0.0
    %142 = vmatprep.subr.mxu0 0.0
    %143 = vmatpush1.msra.mxu0 0.0
    %144 = vmatprep.subr.mxu0 0.0
    %145 = vmatpush1.msra.mxu0 0.0
    %146 = vmatprep.subr.mxu0 0.0
    %147 = vmatpush1.msra.mxu0 0.0
    %148 = vmatprep.subr.mxu0 0.0
    %149 = vmatpush1.msra.mxu0 0.0
    %150 = vmatprep.subr.mxu0 0.0
    %151 = vmatpush1.msra.mxu0 0.0
    %152 = vmatprep.subr.mxu0 0.0
    %153 = vmatpush1.msra.mxu0 0.0
    %154 = vmatprep.subr.mxu0 0.0
    %155 = vmatpush1.msra.mxu0 0.0
    %156 = vmatprep.subr.mxu0 0.0
    %157 = vmatpush1.msra.mxu0 0.0
    %158 = vmatprep.subr.mxu0 0.0
    %159 = vmatpush1.msra.mxu0 0.0
    %160 = vmatprep.subr.mxu0 0.0
    %161 = vmatpush1.msra.mxu0 0.0
    %162 = vmatprep.subr.mxu0 0.0
    %163 = vmatpush1.msra.mxu0 0.0
    %164 = vmatprep.mubr.f32.mxu0 0.0
    %165 = vmatmul.mubr.f32.gmra.mrb[0].mxu0 %v95
    %v166 = vpop.f32.mrb[0].mxu0
    %v167 = vadd.f32 %v92, %v166
    %v168 = vpop.f32.mrb[0].mxu0
    %169 = vmatprep.mubr.f32.mxu0 0.0
    %170 = vmatmul.mubr.f32.gmra.mrb[0].mxu0 %v98
    %v171 = vpop.f32.mrb[0].mxu0
    %v172 = vadd.f32 %v92, %v171
    %v173 = vpop.f32.mrb[0].mxu0
    %174 = vdwg.mxu0
    %177 = vrot.lane.b32.xlu0 %v167, 120
    %v178 = vpop.permute.xlu0 %177
    %179 = vrot.lane.b32.xlu0 %v172, 120
    %v180 = vpop.permute.xlu0 %179
    %181 = vrot.lane.b32.xlu0 %v167, 112
    %v182 = vpop.permute.xlu0 %181
    %183 = vrot.lane.b32.xlu0 %v172, 112
    %v184 = vpop.permute.xlu0 %183
    %185 = vrot.lane.b32.xlu0 %v167, 104
    %v186 = vpop.permute.xlu0 %185
    %187 = vrot.lane.b32.xlu0 %v172, 104
    %v188 = vpop.permute.xlu0 %187
    %189 = vrot.lane.b32.xlu0 %v167, 64
    %v190 = vpop.permute.xlu0 %189
    %vm191 = vcmask 64512
    %v192 = vsel %vm191, %v167, 0
    %v194 = vsel %vm191, %v190, 0
    %196 = vmatprep.subr.mxu0 0.0
    %197 = vmatpush1.xpose.msra.mxu0 %v194
    %198 = vmatprep.subr.mxu0 0.0
    %199 = vmatpush1.xpose.msra.mxu0 0.0
    %200 = vmatprep.subr.mxu0 0.0
    %201 = vmatpush1.xpose.msra.mxu0 0.0
    %202 = vmatprep.subr.mxu0 0.0
    %203 = vmatpush1.xpose.msra.mxu0 0.0
    %204 = vmatprep.subr.mxu0 0.0
    %205 = vmatpush1.xpose.msra.mxu0 0.0
    %206 = vmatprep.subr.mxu0 0.0
    %207 = vmatpush1.xpose.msra.mxu0 0.0
    %208 = vmatprep.subr.mxu0 0.0
    %209 = vmatpush1.xpose.msra.mxu0 0.0
    %210 = vmatprep.subr.mxu0 0.0
    %211 = vmatpush1.xpose.msra.mxu0 0.0
    %212 = vmatprep.subr.mxu0 0.0
    %213 = vmatpush1.xpose.msra.mxu0 0.0
    %214 = vmatprep.subr.mxu0 0.0
    %215 = vmatpush1.xpose.msra.mxu0 0.0
    %216 = vmatprep.subr.mxu0 0.0
    %217 = vmatpush1.xpose.msra.mxu0 0.0
    %218 = vmatprep.subr.mxu0 0.0
    %219 = vmatpush1.xpose.msra.mxu0 0.0
    %220 = vmatprep.subr.mxu0 0.0
    %221 = vmatpush1.xpose.msra.mxu0 0.0
    %222 = vmatprep.subr.mxu0 0.0
    %223 = vmatpush1.xpose.msra.mxu0 0.0
    %224 = vmatprep.subr.mxu0 0.0
    %225 = vmatpush1.xpose.msra.mxu0 0.0
    %226 = vmatprep.subr.mxu0 0.0
    %227 = vmatpush1.xpose.msra.mxu0 0.0
    %228 = vmatprep.subr.mxu0 0.0
    %229 = vmatpush1.xpose.msra.mxu0 0.0
    %230 = vmatprep.subr.mxu0 0.0
    %231 = vmatpush1.xpose.msra.mxu0 0.0
    %232 = vmatprep.subr.mxu0 0.0
    %233 = vmatpush1.xpose.msra.mxu0 0.0
    %234 = vmatprep.subr.mxu0 0.0
    %235 = vmatpush1.xpose.msra.mxu0 0.0
    %236 = vmatprep.subr.mxu0 0.0
    %237 = vmatpush1.xpose.msra.mxu0 0.0
    %238 = vmatprep.subr.mxu0 0.0
    %239 = vmatpush1.xpose.msra.mxu0 0.0
    %240 = vmatprep.subr.mxu0 0.0
    %241 = vmatpush1.xpose.msra.mxu0 0.0
    %242 = vmatprep.subr.mxu0 0.0
    %243 = vmatpush1.xpose.msra.mxu0 0.0
    %244 = vmatprep.subr.mxu0 0.0
    %245 = vmatpush1.xpose.msra.mxu0 0.0
    %246 = vmatprep.subr.mxu0 0.0
    %247 = vmatpush1.xpose.msra.mxu0 0.0
    %248 = vmatprep.subr.mxu0 0.0
    %249 = vmatpush1.xpose.msra.mxu0 0.0
    %250 = vmatprep.subr.mxu0 0.0
    %251 = vmatpush1.xpose.msra.mxu0 0.0
    %252 = vmatprep.subr.mxu0 0.0
    %253 = vmatpush1.xpose.msra.mxu0 0.0
    %254 = vmatprep.subr.mxu0 0.0
    %255 = vmatpush1.xpose.msra.mxu0 0.0
    %256 = vmatprep.subr.mxu0 0.0
    %257 = vmatpush1.xpose.msra.mxu0 0.0
    %258 = vmatprep.subr.mxu0 0.0
    %259 = vmatpush1.xpose.msra.mxu0 0.0
    %260 = vmatprep.mubr.f32.mxu0 0.0
    %261 = vmatmul.mubr.f32.gmra.mrb[0].mxu0 %v192
    %v262 = vpop.f32.mrb[0].mxu0
    %v263 = vadd.f32 0.0, %v262
    %v264 = vpop.f32.mrb[0].mxu0
    %265 = vdwg.mxu0
    %266 = vrot.lane.b32.xlu0 %v172, 64
    %v267 = vpop.permute.xlu0 %266
    %v268 = vsel %vm191, %v172, 0
    %v270 = vsel %vm191, %v267, 0
    %272 = vmatprep.subr.mxu0 0.0
    %273 = vmatpush1.xpose.msra.mxu0 %v270
    %274 = vmatprep.subr.mxu0 0.0
    %275 = vmatpush1.xpose.msra.mxu0 0.0
    %276 = vmatprep.subr.mxu0 0.0
    %277 = vmatpush1.xpose.msra.mxu0 0.0
    %278 = vmatprep.subr.mxu0 0.0
    %279 = vmatpush1.xpose.msra.mxu0 0.0
    %280 = vmatprep.subr.mxu0 0.0
    %281 = vmatpush1.xpose.msra.mxu0 0.0
    %282 = vmatprep.subr.mxu0 0.0
    %283 = vmatpush1.xpose.msra.mxu0 0.0
    %284 = vmatprep.subr.mxu0 0.0
    %285 = vmatpush1.xpose.msra.mxu0 0.0
    %286 = vmatprep.subr.mxu0 0.0
    %287 = vmatpush1.xpose.msra.mxu0 0.0
    %288 = vmatprep.subr.mxu0 0.0
    %289 = vmatpush1.xpose.msra.mxu0 0.0
    %290 = vmatprep.subr.mxu0 0.0
    %291 = vmatpush1.xpose.msra.mxu0 0.0
    %292 = vmatprep.subr.mxu0 0.0
    %293 = vmatpush1.xpose.msra.mxu0 0.0
    %294 = vmatprep.subr.mxu0 0.0
    %295 = vmatpush1.xpose.msra.mxu0 0.0
    %296 = vmatprep.subr.mxu0 0.0
    %297 = vmatpush1.xpose.msra.mxu0 0.0
    %298 = vmatprep.subr.mxu0 0.0
    %299 = vmatpush1.xpose.msra.mxu0 0.0
    %300 = vmatprep.subr.mxu0 0.0
    %301 = vmatpush1.xpose.msra.mxu0 0.0
    %302 = vmatprep.subr.mxu0 0.0
    %303 = vmatpush1.xpose.msra.mxu0 0.0
    %304 = vmatprep.subr.mxu0 0.0
    %305 = vmatpush1.xpose.msra.mxu0 0.0
    %306 = vmatprep.subr.mxu0 0.0
    %307 = vmatpush1.xpose.msra.mxu0 0.0
    %308 = vmatprep.subr.mxu0 0.0
    %309 = vmatpush1.xpose.msra.mxu0 0.0
    %310 = vmatprep.subr.mxu0 0.0
    %311 = vmatpush1.xpose.msra.mxu0 0.0
    %312 = vmatprep.subr.mxu0 0.0
    %313 = vmatpush1.xpose.msra.mxu0 0.0
    %314 = vmatprep.subr.mxu0 0.0
    %315 = vmatpush1.xpose.msra.mxu0 0.0
    %316 = vmatprep.subr.mxu0 0.0
    %317 = vmatpush1.xpose.msra.mxu0 0.0
    %318 = vmatprep.subr.mxu0 0.0
    %319 = vmatpush1.xpose.msra.mxu0 0.0
    %320 = vmatprep.subr.mxu0 0.0
    %321 = vmatpush1.xpose.msra.mxu0 0.0
    %322 = vmatprep.subr.mxu0 0.0
    %323 = vmatpush1.xpose.msra.mxu0 0.0
    %324 = vmatprep.subr.mxu0 0.0
    %325 = vmatpush1.xpose.msra.mxu0 0.0
    %326 = vmatprep.subr.mxu0 0.0
    %327 = vmatpush1.xpose.msra.mxu0 0.0
    %328 = vmatprep.subr.mxu0 0.0
    %329 = vmatpush1.xpose.msra.mxu0 0.0
    %330 = vmatprep.subr.mxu0 0.0
    %331 = vmatpush1.xpose.msra.mxu0 0.0
    %332 = vmatprep.subr.mxu0 0.0
    %333 = vmatpush1.xpose.msra.mxu0 0.0
    %334 = vmatprep.subr.mxu0 0.0
    %335 = vmatpush1.xpose.msra.mxu0 0.0
    %336 = vmatprep.mubr.f32.mxu0 0.0
    %337 = vmatmul.mubr.f32.gmra.mrb[0].mxu0 %v268
    %v338 = vpop.f32.mrb[0].mxu0
    %v339 = vadd.f32 0.0, %v338
    %v340 = vpop.f32.mrb[0].mxu0
    %341 = vdwg.mxu0
    %342 = vrot.lane.b32.xlu0 %v178, 64
    %v343 = vpop.permute.xlu0 %342
    %v344 = vsel %vm191, %v178, 0
    %v346 = vsel %vm191, %v343, 0
    %348 = vmatprep.subr.mxu0 0.0
    %349 = vmatpush1.xpose.msra.mxu0 %v346
    %350 = vmatprep.subr.mxu0 0.0
    %351 = vmatpush1.xpose.msra.mxu0 0.0
    %352 = vmatprep.subr.mxu0 0.0
    %353 = vmatpush1.xpose.msra.mxu0 0.0
    %354 = vmatprep.subr.mxu0 0.0
    %355 = vmatpush1.xpose.msra.mxu0 0.0
    %356 = vmatprep.subr.mxu0 0.0
    %357 = vmatpush1.xpose.msra.mxu0 0.0
    %358 = vmatprep.subr.mxu0 0.0
    %359 = vmatpush1.xpose.msra.mxu0 0.0
    %360 = vmatprep.subr.mxu0 0.0
    %361 = vmatpush1.xpose.msra.mxu0 0.0
    %362 = vmatprep.subr.mxu0 0.0
    %363 = vmatpush1.xpose.msra.mxu0 0.0
    %364 = vmatprep.subr.mxu0 0.0
    %365 = vmatpush1.xpose.msra.mxu0 0.0
    %366 = vmatprep.subr.mxu0 0.0
    %367 = vmatpush1.xpose.msra.mxu0 0.0
    %368 = vmatprep.subr.mxu0 0.0
    %369 = vmatpush1.xpose.msra.mxu0 0.0
    %370 = vmatprep.subr.mxu0 0.0
    %371 = vmatpush1.xpose.msra.mxu0 0.0
    %372 = vmatprep.subr.mxu0 0.0
    %373 = vmatpush1.xpose.msra.mxu0 0.0
    %374 = vmatprep.subr.mxu0 0.0
    %375 = vmatpush1.xpose.msra.mxu0 0.0
    %376 = vmatprep.subr.mxu0 0.0
    %377 = vmatpush1.xpose.msra.mxu0 0.0
    %378 = vmatprep.subr.mxu0 0.0
    %379 = vmatpush1.xpose.msra.mxu0 0.0
    %380 = vmatprep.subr.mxu0 0.0
    %381 = vmatpush1.xpose.msra.mxu0 0.0
    %382 = vmatprep.subr.mxu0 0.0
    %383 = vmatpush1.xpose.msra.mxu0 0.0
    %384 = vmatprep.subr.mxu0 0.0
    %385 = vmatpush1.xpose.msra.mxu0 0.0
    %386 = vmatprep.subr.mxu0 0.0
    %387 = vmatpush1.xpose.msra.mxu0 0.0
    %388 = vmatprep.subr.mxu0 0.0
    %389 = vmatpush1.xpose.msra.mxu0 0.0
    %390 = vmatprep.subr.mxu0 0.0
    %391 = vmatpush1.xpose.msra.mxu0 0.0
    %392 = vmatprep.subr.mxu0 0.0
    %393 = vmatpush1.xpose.msra.mxu0 0.0
    %394 = vmatprep.subr.mxu0 0.0
    %395 = vmatpush1.xpose.msra.mxu0 0.0
    %396 = vmatprep.subr.mxu0 0.0
    %397 = vmatpush1.xpose.msra.mxu0 0.0
    %398 = vmatprep.subr.mxu0 0.0
    %399 = vmatpush1.xpose.msra.mxu0 0.0
    %400 = vmatprep.subr.mxu0 0.0
    %401 = vmatpush1.xpose.msra.mxu0 0.0
    %402 = vmatprep.subr.mxu0 0.0
    %403 = vmatpush1.xpose.msra.mxu0 0.0
    %404 = vmatprep.subr.mxu0 0.0
    %405 = vmatpush1.xpose.msra.mxu0 0.0
    %406 = vmatprep.subr.mxu0 0.0
    %407 = vmatpush1.xpose.msra.mxu0 0.0
    %408 = vmatprep.subr.mxu0 0.0
    %409 = vmatpush1.xpose.msra.mxu0 0.0
    %410 = vmatprep.subr.mxu0 0.0
    %411 = vmatpush1.xpose.msra.mxu0 0.0
    %412 = vmatprep.mubr.f32.mxu0 0.0
    %413 = vmatmul.mubr.f32.gmra.mrb[0].mxu0 %v344
    %v414 = vpop.f32.mrb[0].mxu0
    %v415 = vadd.f32 0.0, %v414
    %v416 = vpop.f32.mrb[0].mxu0
    %417 = vdwg.mxu0
    %418 = vrot.lane.b32.xlu0 %v180, 64
    %v419 = vpop.permute.xlu0 %418
    %v420 = vsel %vm191, %v180, 0
    %v422 = vsel %vm191, %v419, 0
    %424 = vmatprep.subr.mxu0 0.0
    %425 = vmatpush1.xpose.msra.mxu0 %v422
    %426 = vmatprep.subr.mxu0 0.0
    %427 = vmatpush1.xpose.msra.mxu0 0.0
    %428 = vmatprep.subr.mxu0 0.0
    %429 = vmatpush1.xpose.msra.mxu0 0.0
    %430 = vmatprep.subr.mxu0 0.0
    %431 = vmatpush1.xpose.msra.mxu0 0.0
    %432 = vmatprep.subr.mxu0 0.0
    %433 = vmatpush1.xpose.msra.mxu0 0.0
    %434 = vmatprep.subr.mxu0 0.0
    %435 = vmatpush1.xpose.msra.mxu0 0.0
    %436 = vmatprep.subr.mxu0 0.0
    %437 = vmatpush1.xpose.msra.mxu0 0.0
    %438 = vmatprep.subr.mxu0 0.0
    %439 = vmatpush1.xpose.msra.mxu0 0.0
    %440 = vmatprep.subr.mxu0 0.0
    %441 = vmatpush1.xpose.msra.mxu0 0.0
    %442 = vmatprep.subr.mxu0 0.0
    %443 = vmatpush1.xpose.msra.mxu0 0.0
    %444 = vmatprep.subr.mxu0 0.0
    %445 = vmatpush1.xpose.msra.mxu0 0.0
    %446 = vmatprep.subr.mxu0 0.0
    %447 = vmatpush1.xpose.msra.mxu0 0.0
    %448 = vmatprep.subr.mxu0 0.0
    %449 = vmatpush1.xpose.msra.mxu0 0.0
    %450 = vmatprep.subr.mxu0 0.0
    %451 = vmatpush1.xpose.msra.mxu0 0.0
    %452 = vmatprep.subr.mxu0 0.0
    %453 = vmatpush1.xpose.msra.mxu0 0.0
    %454 = vmatprep.subr.mxu0 0.0
    %455 = vmatpush1.xpose.msra.mxu0 0.0
    %456 = vmatprep.subr.mxu0 0.0
    %457 = vmatpush1.xpose.msra.mxu0 0.0
    %458 = vmatprep.subr.mxu0 0.0
    %459 = vmatpush1.xpose.msra.mxu0 0.0
    %460 = vmatprep.subr.mxu0 0.0
    %461 = vmatpush1.xpose.msra.mxu0 0.0
    %462 = vmatprep.subr.mxu0 0.0
    %463 = vmatpush1.xpose.msra.mxu0 0.0
    %464 = vmatprep.subr.mxu0 0.0
    %465 = vmatpush1.xpose.msra.mxu0 0.0
    %466 = vmatprep.subr.mxu0 0.0
    %467 = vmatpush1.xpose.msra.mxu0 0.0
    %468 = vmatprep.subr.mxu0 0.0
    %469 = vmatpush1.xpose.msra.mxu0 0.0
    %470 = vmatprep.subr.mxu0 0.0
    %471 = vmatpush1.xpose.msra.mxu0 0.0
    %472 = vmatprep.subr.mxu0 0.0
    %473 = vmatpush1.xpose.msra.mxu0 0.0
    %474 = vmatprep.subr.mxu0 0.0
    %475 = vmatpush1.xpose.msra.mxu0 0.0
    %476 = vmatprep.subr.mxu0 0.0
    %477 = vmatpush1.xpose.msra.mxu0 0.0
    %478 = vmatprep.subr.mxu0 0.0
    %479 = vmatpush1.xpose.msra.mxu0 0.0
    %480 = vmatprep.subr.mxu0 0.0
    %481 = vmatpush1.xpose.msra.mxu0 0.0
    %482 = vmatprep.subr.mxu0 0.0
    %483 = vmatpush1.xpose.msra.mxu0 0.0
    %484 = vmatprep.subr.mxu0 0.0
    %485 = vmatpush1.xpose.msra.mxu0 0.0
    %486 = vmatprep.subr.mxu0 0.0
    %487 = vmatpush1.xpose.msra.mxu0 0.0
    %488 = vmatprep.mubr.f32.mxu0 0.0
    %489 = vmatmul.mubr.f32.gmra.mrb[0].mxu0 %v420
    %v490 = vpop.f32.mrb[0].mxu0
    %v491 = vadd.f32 0.0, %v490
    %v492 = vpop.f32.mrb[0].mxu0
    %493 = vdwg.mxu0
    %494 = vrot.lane.b32.xlu0 %v182, 64
    %v495 = vpop.permute.xlu0 %494
    %v496 = vsel %vm191, %v182, 0
    %v498 = vsel %vm191, %v495, 0
    %500 = vmatprep.subr.mxu0 0.0
    %501 = vmatpush1.xpose.msra.mxu0 %v498
    %502 = vmatprep.subr.mxu0 0.0
    %503 = vmatpush1.xpose.msra.mxu0 0.0
    %504 = vmatprep.subr.mxu0 0.0
    %505 = vmatpush1.xpose.msra.mxu0 0.0
    %506 = vmatprep.subr.mxu0 0.0
    %507 = vmatpush1.xpose.msra.mxu0 0.0
    %508 = vmatprep.subr.mxu0 0.0
    %509 = vmatpush1.xpose.msra.mxu0 0.0
    %510 = vmatprep.subr.mxu0 0.0
    %511 = vmatpush1.xpose.msra.mxu0 0.0
    %512 = vmatprep.subr.mxu0 0.0
    %513 = vmatpush1.xpose.msra.mxu0 0.0
    %514 = vmatprep.subr.mxu0 0.0
    %515 = vmatpush1.xpose.msra.mxu0 0.0
    %516 = vmatprep.subr.mxu0 0.0
    %517 = vmatpush1.xpose.msra.mxu0 0.0
    %518 = vmatprep.subr.mxu0 0.0
    %519 = vmatpush1.xpose.msra.mxu0 0.0
    %520 = vmatprep.subr.mxu0 0.0
    %521 = vmatpush1.xpose.msra.mxu0 0.0
    %522 = vmatprep.subr.mxu0 0.0
    %523 = vmatpush1.xpose.msra.mxu0 0.0
    %524 = vmatprep.subr.mxu0 0.0
    %525 = vmatpush1.xpose.msra.mxu0 0.0
    %526 = vmatprep.subr.mxu0 0.0
    %527 = vmatpush1.xpose.msra.mxu0 0.0
    %528 = vmatprep.subr.mxu0 0.0
    %529 = vmatpush1.xpose.msra.mxu0 0.0
    %530 = vmatprep.subr.mxu0 0.0
    %531 = vmatpush1.xpose.msra.mxu0 0.0
    %532 = vmatprep.subr.mxu0 0.0
    %533 = vmatpush1.xpose.msra.mxu0 0.0
    %534 = vmatprep.subr.mxu0 0.0
    %535 = vmatpush1.xpose.msra.mxu0 0.0
    %536 = vmatprep.subr.mxu0 0.0
    %537 = vmatpush1.xpose.msra.mxu0 0.0
    %538 = vmatprep.subr.mxu0 0.0
    %539 = vmatpush1.xpose.msra.mxu0 0.0
    %540 = vmatprep.subr.mxu0 0.0
    %541 = vmatpush1.xpose.msra.mxu0 0.0
    %542 = vmatprep.subr.mxu0 0.0
    %543 = vmatpush1.xpose.msra.mxu0 0.0
    %544 = vmatprep.subr.mxu0 0.0
    %545 = vmatpush1.xpose.msra.mxu0 0.0
    %546 = vmatprep.subr.mxu0 0.0
    %547 = vmatpush1.xpose.msra.mxu0 0.0
    %548 = vmatprep.subr.mxu0 0.0
    %549 = vmatpush1.xpose.msra.mxu0 0.0
    %550 = vmatprep.subr.mxu0 0.0
    %551 = vmatpush1.xpose.msra.mxu0 0.0
    %552 = vmatprep.subr.mxu0 0.0
    %553 = vmatpush1.xpose.msra.mxu0 0.0
    %554 = vmatprep.subr.mxu0 0.0
    %555 = vmatpush1.xpose.msra.mxu0 0.0
    %556 = vmatprep.subr.mxu0 0.0
    %557 = vmatpush1.xpose.msra.mxu0 0.0
    %558 = vmatprep.subr.mxu0 0.0
    %559 = vmatpush1.xpose.msra.mxu0 0.0
    %560 = vmatprep.subr.mxu0 0.0
    %561 = vmatpush1.xpose.msra.mxu0 0.0
    %562 = vmatprep.subr.mxu0 0.0
    %563 = vmatpush1.xpose.msra.mxu0 0.0
    %564 = vmatprep.mubr.f32.mxu0 0.0
    %565 = vmatmul.mubr.f32.gmra.mrb[0].mxu0 %v496
    %v566 = vpop.f32.mrb[0].mxu0
    %v567 = vadd.f32 0.0, %v566
    %v568 = vpop.f32.mrb[0].mxu0
    %569 = vdwg.mxu0
    %570 = vrot.lane.b32.xlu0 %v184, 64
    %v571 = vpop.permute.xlu0 %570
    %v572 = vsel %vm191, %v184, 0
    %v574 = vsel %vm191, %v571, 0
    %576 = vmatprep.subr.mxu0 0.0
    %577 = vmatpush1.xpose.msra.mxu0 %v574
    %578 = vmatprep.subr.mxu0 0.0
    %579 = vmatpush1.xpose.msra.mxu0 0.0
    %580 = vmatprep.subr.mxu0 0.0
    %581 = vmatpush1.xpose.msra.mxu0 0.0
    %582 = vmatprep.subr.mxu0 0.0
    %583 = vmatpush1.xpose.msra.mxu0 0.0
    %584 = vmatprep.subr.mxu0 0.0
    %585 = vmatpush1.xpose.msra.mxu0 0.0
    %586 = vmatprep.subr.mxu0 0.0
    %587 = vmatpush1.xpose.msra.mxu0 0.0
    %588 = vmatprep.subr.mxu0 0.0
    %589 = vmatpush1.xpose.msra.mxu0 0.0
    %590 = vmatprep.subr.mxu0 0.0
    %591 = vmatpush1.xpose.msra.mxu0 0.0
    %592 = vmatprep.subr.mxu0 0.0
    %593 = vmatpush1.xpose.msra.mxu0 0.0
    %594 = vmatprep.subr.mxu0 0.0
    %595 = vmatpush1.xpose.msra.mxu0 0.0
    %596 = vmatprep.subr.mxu0 0.0
    %597 = vmatpush1.xpose.msra.mxu0 0.0
    %598 = vmatprep.subr.mxu0 0.0
    %599 = vmatpush1.xpose.msra.mxu0 0.0
    %600 = vmatprep.subr.mxu0 0.0
    %601 = vmatpush1.xpose.msra.mxu0 0.0
    %602 = vmatprep.subr.mxu0 0.0
    %603 = vmatpush1.xpose.msra.mxu0 0.0
    %604 = vmatprep.subr.mxu0 0.0
    %605 = vmatpush1.xpose.msra.mxu0 0.0
    %606 = vmatprep.subr.mxu0 0.0
    %607 = vmatpush1.xpose.msra.mxu0 0.0
    %608 = vmatprep.subr.mxu0 0.0
    %609 = vmatpush1.xpose.msra.mxu0 0.0
    %610 = vmatprep.subr.mxu0 0.0
    %611 = vmatpush1.xpose.msra.mxu0 0.0
    %612 = vmatprep.subr.mxu0 0.0
    %613 = vmatpush1.xpose.msra.mxu0 0.0
    %614 = vmatprep.subr.mxu0 0.0
    %615 = vmatpush1.xpose.msra.mxu0 0.0
    %616 = vmatprep.subr.mxu0 0.0
    %617 = vmatpush1.xpose.msra.mxu0 0.0
    %618 = vmatprep.subr.mxu0 0.0
    %619 = vmatpush1.xpose.msra.mxu0 0.0
    %620 = vmatprep.subr.mxu0 0.0
    %621 = vmatpush1.xpose.msra.mxu0 0.0
    %622 = vmatprep.subr.mxu0 0.0
    %623 = vmatpush1.xpose.msra.mxu0 0.0
    %624 = vmatprep.subr.mxu0 0.0
    %625 = vmatpush1.xpose.msra.mxu0 0.0
    %626 = vmatprep.subr.mxu0 0.0
    %627 = vmatpush1.xpose.msra.mxu0 0.0
    %628 = vmatprep.subr.mxu0 0.0
    %629 = vmatpush1.xpose.msra.mxu0 0.0
    %630 = vmatprep.subr.mxu0 0.0
    %631 = vmatpush1.xpose.msra.mxu0 0.0
    %632 = vmatprep.subr.mxu0 0.0
    %633 = vmatpush1.xpose.msra.mxu0 0.0
    %634 = vmatprep.subr.mxu0 0.0
    %635 = vmatpush1.xpose.msra.mxu0 0.0
    %636 = vmatprep.subr.mxu0 0.0
    %637 = vmatpush1.xpose.msra.mxu0 0.0
    %638 = vmatprep.subr.mxu0 0.0
    %639 = vmatpush1.xpose.msra.mxu0 0.0
    %640 = vmatprep.mubr.f32.mxu0 0.0
    %641 = vmatmul.mubr.f32.gmra.mrb[0].mxu0 %v572
    %v642 = vpop.f32.mrb[0].mxu0
    %v643 = vadd.f32 0.0, %v642
    %v644 = vpop.f32.mrb[0].mxu0
    %645 = vdwg.mxu0
    %646 = vrot.lane.b32.xlu0 %v186, 64
    %v647 = vpop.permute.xlu0 %646
    %v648 = vsel %vm191, %v186, 0
    %v650 = vsel %vm191, %v647, 0
    %652 = vmatprep.subr.mxu0 0.0
    %653 = vmatpush1.xpose.msra.mxu0 %v650
    %654 = vmatprep.subr.mxu0 0.0
    %655 = vmatpush1.xpose.msra.mxu0 0.0
    %656 = vmatprep.subr.mxu0 0.0
    %657 = vmatpush1.xpose.msra.mxu0 0.0
    %658 = vmatprep.subr.mxu0 0.0
    %659 = vmatpush1.xpose.msra.mxu0 0.0
    %660 = vmatprep.subr.mxu0 0.0
    %661 = vmatpush1.xpose.msra.mxu0 0.0
    %662 = vmatprep.subr.mxu0 0.0
    %663 = vmatpush1.xpose.msra.mxu0 0.0
    %664 = vmatprep.subr.mxu0 0.0
    %665 = vmatpush1.xpose.msra.mxu0 0.0
    %666 = vmatprep.subr.mxu0 0.0
    %667 = vmatpush1.xpose.msra.mxu0 0.0
    %668 = vmatprep.subr.mxu0 0.0
    %669 = vmatpush1.xpose.msra.mxu0 0.0
    %670 = vmatprep.subr.mxu0 0.0
    %671 = vmatpush1.xpose.msra.mxu0 0.0
    %672 = vmatprep.subr.mxu0 0.0
    %673 = vmatpush1.xpose.msra.mxu0 0.0
    %674 = vmatprep.subr.mxu0 0.0
    %675 = vmatpush1.xpose.msra.mxu0 0.0
    %676 = vmatprep.subr.mxu0 0.0
    %677 = vmatpush1.xpose.msra.mxu0 0.0
    %678 = vmatprep.subr.mxu0 0.0
    %679 = vmatpush1.xpose.msra.mxu0 0.0
    %680 = vmatprep.subr.mxu0 0.0
    %681 = vmatpush1.xpose.msra.mxu0 0.0
    %682 = vmatprep.subr.mxu0 0.0
    %683 = vmatpush1.xpose.msra.mxu0 0.0
    %684 = vmatprep.subr.mxu0 0.0
    %685 = vmatpush1.xpose.msra.mxu0 0.0
    %686 = vmatprep.subr.mxu0 0.0
    %687 = vmatpush1.xpose.msra.mxu0 0.0
    %688 = vmatprep.subr.mxu0 0.0
    %689 = vmatpush1.xpose.msra.mxu0 0.0
    %690 = vmatprep.subr.mxu0 0.0
    %691 = vmatpush1.xpose.msra.mxu0 0.0
    %692 = vmatprep.subr.mxu0 0.0
    %693 = vmatpush1.xpose.msra.mxu0 0.0
    %694 = vmatprep.subr.mxu0 0.0
    %695 = vmatpush1.xpose.msra.mxu0 0.0
    %696 = vmatprep.subr.mxu0 0.0
    %697 = vmatpush1.xpose.msra.mxu0 0.0
    %698 = vmatprep.subr.mxu0 0.0
    %699 = vmatpush1.xpose.msra.mxu0 0.0
    %700 = vmatprep.subr.mxu0 0.0
    %701 = vmatpush1.xpose.msra.mxu0 0.0
    %702 = vmatprep.subr.mxu0 0.0
    %703 = vmatpush1.xpose.msra.mxu0 0.0
    %704 = vmatprep.subr.mxu0 0.0
    %705 = vmatpush1.xpose.msra.mxu0 0.0
    %706 = vmatprep.subr.mxu0 0.0
    %707 = vmatpush1.xpose.msra.mxu0 0.0
    %708 = vmatprep.subr.mxu0 0.0
    %709 = vmatpush1.xpose.msra.mxu0 0.0
    %710 = vmatprep.subr.mxu0 0.0
    %711 = vmatpush1.xpose.msra.mxu0 0.0
    %712 = vmatprep.subr.mxu0 0.0
    %713 = vmatpush1.xpose.msra.mxu0 0.0
    %714 = vmatprep.subr.mxu0 0.0
    %715 = vmatpush1.xpose.msra.mxu0 0.0
    %716 = vmatprep.mubr.f32.mxu0 0.0
    %717 = vmatmul.mubr.f32.gmra.mrb[0].mxu0 %v648
    %v718 = vpop.f32.mrb[0].mxu0
    %v719 = vadd.f32 0.0, %v718
    %v720 = vpop.f32.mrb[0].mxu0
    %721 = vdwg.mxu0
    %722 = vrot.lane.b32.xlu0 %v188, 64
    %v723 = vpop.permute.xlu0 %722
    %v724 = vsel %vm191, %v188, 0
    %v726 = vsel %vm191, %v723, 0
    %728 = vmatprep.subr.mxu0 0.0
    %729 = vmatpush1.xpose.msra.mxu0 %v726
    %730 = vmatprep.subr.mxu0 0.0
    %731 = vmatpush1.xpose.msra.mxu0 0.0
    %732 = vmatprep.subr.mxu0 0.0
    %733 = vmatpush1.xpose.msra.mxu0 0.0
    %734 = vmatprep.subr.mxu0 0.0
    %735 = vmatpush1.xpose.msra.mxu0 0.0
    %736 = vmatprep.subr.mxu0 0.0
    %737 = vmatpush1.xpose.msra.mxu0 0.0
    %738 = vmatprep.subr.mxu0 0.0
    %739 = vmatpush1.xpose.msra.mxu0 0.0
    %740 = vmatprep.subr.mxu0 0.0
    %741 = vmatpush1.xpose.msra.mxu0 0.0
    %742 = vmatprep.subr.mxu0 0.0
    %743 = vmatpush1.xpose.msra.mxu0 0.0
    %744 = vmatprep.subr.mxu0 0.0
    %745 = vmatpush1.xpose.msra.mxu0 0.0
    %746 = vmatprep.subr.mxu0 0.0
    %747 = vmatpush1.xpose.msra.mxu0 0.0
    %748 = vmatprep.subr.mxu0 0.0
    %749 = vmatpush1.xpose.msra.mxu0 0.0
    %750 = vmatprep.subr.mxu0 0.0
    %751 = vmatpush1.xpose.msra.mxu0 0.0
    %752 = vmatprep.subr.mxu0 0.0
    %753 = vmatpush1.xpose.msra.mxu0 0.0
    %754 = vmatprep.subr.mxu0 0.0
    %755 = vmatpush1.xpose.msra.mxu0 0.0
    %756 = vmatprep.subr.mxu0 0.0
    %757 = vmatpush1.xpose.msra.mxu0 0.0
    %758 = vmatprep.subr.mxu0 0.0
    %759 = vmatpush1.xpose.msra.mxu0 0.0
    %760 = vmatprep.subr.mxu0 0.0
    %761 = vmatpush1.xpose.msra.mxu0 0.0
    %762 = vmatprep.subr.mxu0 0.0
    %763 = vmatpush1.xpose.msra.mxu0 0.0
    %764 = vmatprep.subr.mxu0 0.0
    %765 = vmatpush1.xpose.msra.mxu0 0.0
    %766 = vmatprep.subr.mxu0 0.0
    %767 = vmatpush1.xpose.msra.mxu0 0.0
    %768 = vmatprep.subr.mxu0 0.0
    %769 = vmatpush1.xpose.msra.mxu0 0.0
    %770 = vmatprep.subr.mxu0 0.0
    %771 = vmatpush1.xpose.msra.mxu0 0.0
    %772 = vmatprep.subr.mxu0 0.0
    %773 = vmatpush1.xpose.msra.mxu0 0.0
    %774 = vmatprep.subr.mxu0 0.0
    %775 = vmatpush1.xpose.msra.mxu0 0.0
    %776 = vmatprep.subr.mxu0 0.0
    %777 = vmatpush1.xpose.msra.mxu0 0.0
    %778 = vmatprep.subr.mxu0 0.0
    %779 = vmatpush1.xpose.msra.mxu0 0.0
    %780 = vmatprep.subr.mxu0 0.0
    %781 = vmatpush1.xpose.msra.mxu0 0.0
    %782 = vmatprep.subr.mxu0 0.0
    %783 = vmatpush1.xpose.msra.mxu0 0.0
    %784 = vmatprep.subr.mxu0 0.0
    %785 = vmatpush1.xpose.msra.mxu0 0.0
    %786 = vmatprep.subr.mxu0 0.0
    %787 = vmatpush1.xpose.msra.mxu0 0.0
    %788 = vmatprep.subr.mxu0 0.0
    %789 = vmatpush1.xpose.msra.mxu0 0.0
    %790 = vmatprep.subr.mxu0 0.0
    %791 = vmatpush1.xpose.msra.mxu0 0.0
    %792 = vmatprep.mubr.f32.mxu0 0.0
    %793 = vmatmul.mubr.f32.gmra.mrb[0].mxu0 %v724
    %v794 = vpop.f32.mrb[0].mxu0
    %v795 = vadd.f32 0.0, %v794
    %v796 = vpop.f32.mrb[0].mxu0
    %797 = vdwg.mxu0
    %v798 = vmul.f32 %v263, 0.35355338
    %v799 = vmul.f32 %v339, 0.35355338
    %v800 = vmul.f32 %v415, 0.35355338
    %v801 = vmul.f32 %v491, 0.35355338
    %v802 = vmul.f32 %v567, 0.35355338
    %v803 = vmul.f32 %v643, 0.35355338
    %v804 = vmul.f32 %v719, 0.35355338
    %v805 = vmul.f32 %v795, 0.35355338
    %vm806 = vcmp.ne.s32.totalorder %v47, 0
    %vm807 = vcmp.ne.s32.totalorder %v48, 0
    %v808 = vsel %vm806, -1e+09, %v798
    %v809 = vsel %vm807, -1e+09, %v799
    %v810 = vsel %vm806, -1e+09, %v800
    %v811 = vsel %vm807, -1e+09, %v801
    %v812 = vsel %vm806, -1e+09, %v802
    %v813 = vsel %vm807, -1e+09, %v803
    %v814 = vsel %vm806, -1e+09, %v804
    %v815 = vsel %vm807, -1e+09, %v805
    %v816 = vsel %vm191, %v808, -inf
    %817 = vmax.xlane.f32.xlu0 %v816
    %v818 = vpop.xlane.xlu0 %817
    %v819 = vsel %vm191, %v809, -inf
    %820 = vmax.xlane.f32.xlu0 %v819
    %v821 = vpop.xlane.xlu0 %820
    %v822 = vsel %vm191, %v810, -inf
    %823 = vmax.xlane.f32.xlu0 %v822
    %v824 = vpop.xlane.xlu0 %823
    %v825 = vsel %vm191, %v811, -inf
    %826 = vmax.xlane.f32.xlu0 %v825
    %v827 = vpop.xlane.xlu0 %826
    %v828 = vsel %vm191, %v812, -inf
    %829 = vmax.xlane.f32.xlu0 %v828
    %v830 = vpop.xlane.xlu0 %829
    %v831 = vsel %vm191, %v813, -inf
    %832 = vmax.xlane.f32.xlu0 %v831
    %v833 = vpop.xlane.xlu0 %832
    %v834 = vsel %vm191, %v814, -inf
    %835 = vmax.xlane.f32.xlu0 %v834
    %v836 = vpop.xlane.xlu0 %835
    %v837 = vsel %vm191, %v815, -inf
    %838 = vmax.xlane.f32.xlu0 %v837
    %v839 = vpop.xlane.xlu0 %838
    %v840 = vsub.f32 %v808, %v818
    %v841 = vsub.f32 %v809, %v821
    %v842 = vsub.f32 %v810, %v824
    %v843 = vsub.f32 %v811, %v827
    %v844 = vsub.f32 %v812, %v830
    %v845 = vsub.f32 %v813, %v833
    %v846 = vsub.f32 %v814, %v836
    %v847 = vsub.f32 %v815, %v839
    %v848 = vmul.f32 %v840, 1.442695
    %v849 = vpow.pop %v848
    %v850 = vmul.f32 %v841, 1.442695
    %v851 = vpow.pop %v850
    %v852 = vmul.f32 %v842, 1.442695
    %v853 = vpow.pop %v852
    %v854 = vmul.f32 %v843, 1.442695
    %v855 = vpow.pop %v854
    %v856 = vmul.f32 %v844, 1.442695
    %v857 = vpow.pop %v856
    %v858 = vmul.f32 %v845, 1.442695
    %v859 = vpow.pop %v858
    %v860 = vmul.f32 %v846, 1.442695
    %v861 = vpow.pop %v860
    %v862 = vmul.f32 %v847, 1.442695
    %v863 = vpow.pop %v862
    %v864 = vsel %vm191, %v849, 0.0
    %865 = vadd.xlane.f32.xlu0 %v864
    %v866 = vpop.xlane.xlu0 %865
    %v867 = vsel %vm191, %v851, 0.0
    %868 = vadd.xlane.f32.xlu0 %v867
    %v869 = vpop.xlane.xlu0 %868
    %v870 = vsel %vm191, %v853, 0.0
    %871 = vadd.xlane.f32.xlu0 %v870
    %v872 = vpop.xlane.xlu0 %871
    %v873 = vsel %vm191, %v855, 0.0
    %874 = vadd.xlane.f32.xlu0 %v873
    %v875 = vpop.xlane.xlu0 %874
    %v876 = vsel %vm191, %v857, 0.0
    %877 = vadd.xlane.f32.xlu0 %v876
    %v878 = vpop.xlane.xlu0 %877
    %v879 = vsel %vm191, %v859, 0.0
    %880 = vadd.xlane.f32.xlu0 %v879
    %v881 = vpop.xlane.xlu0 %880
    %v882 = vsel %vm191, %v861, 0.0
    %883 = vadd.xlane.f32.xlu0 %v882
    %v884 = vpop.xlane.xlu0 %883
    %v885 = vsel %vm191, %v863, 0.0
    %886 = vadd.xlane.f32.xlu0 %v885
    %v887 = vpop.xlane.xlu0 %886
    %v888 = vrcp.pop %v866
    %v889 = vmul.f32 %v849, %v888
    %v890 = vrcp.pop %v869
    %v891 = vmul.f32 %v851, %v890
    %v892 = vrcp.pop %v872
    %v893 = vmul.f32 %v853, %v892
    %v894 = vrcp.pop %v875
    %v895 = vmul.f32 %v855, %v894
    %v896 = vrcp.pop %v878
    %v897 = vmul.f32 %v857, %v896
    %v898 = vrcp.pop %v881
    %v899 = vmul.f32 %v859, %v898
    %v900 = vrcp.pop %v884
    %v901 = vmul.f32 %v861, %v900
    %v902 = vrcp.pop %v887
    %v903 = vmul.f32 %v863, %v902
    %904 = vrot.lane.b32.xlu0 %v167, 96
    %v905 = vpop.permute.xlu0 %904
    %v908 = vsel %vm191, %v889, 0
    %910 = vmatprep.subr.mxu0 0.0
    %911 = vmatpush1.msra.mxu0 %v905
    %912 = vmatprep.subr.mxu0 0.0
    %913 = vmatpush1.msra.mxu0 0.0
    %914 = vmatprep.subr.mxu0 0.0
    %915 = vmatpush1.msra.mxu0 0.0
    %916 = vmatprep.subr.mxu0 0.0
    %917 = vmatpush1.msra.mxu0 0.0
    %918 = vmatprep.subr.mxu0 0.0
    %919 = vmatpush1.msra.mxu0 0.0
    %920 = vmatprep.subr.mxu0 0.0
    %921 = vmatpush1.msra.mxu0 0.0
    %922 = vmatprep.subr.mxu0 0.0
    %923 = vmatpush1.msra.mxu0 0.0
    %924 = vmatprep.subr.mxu0 0.0
    %925 = vmatpush1.msra.mxu0 0.0
    %926 = vmatprep.subr.mxu0 0.0
    %927 = vmatpush1.msra.mxu0 0.0
    %928 = vmatprep.subr.mxu0 0.0
    %929 = vmatpush1.msra.mxu0 0.0
    %930 = vmatprep.subr.mxu0 0.0
    %931 = vmatpush1.msra.mxu0 0.0
    %932 = vmatprep.subr.mxu0 0.0
    %933 = vmatpush1.msra.mxu0 0.0
    %934 = vmatprep.subr.mxu0 0.0
    %935 = vmatpush1.msra.mxu0 0.0
    %936 = vmatprep.subr.mxu0 0.0
    %937 = vmatpush1.msra.mxu0 0.0
    %938 = vmatprep.subr.mxu0 0.0
    %939 = vmatpush1.msra.mxu0 0.0
    %940 = vmatprep.subr.mxu0 0.0
    %941 = vmatpush1.msra.mxu0 0.0
    %942 = vmatprep.subr.mxu0 0.0
    %943 = vmatpush1.msra.mxu0 0.0
    %944 = vmatprep.subr.mxu0 0.0
    %945 = vmatpush1.msra.mxu0 0.0
    %946 = vmatprep.subr.mxu0 0.0
    %947 = vmatpush1.msra.mxu0 0.0
    %948 = vmatprep.subr.mxu0 0.0
    %949 = vmatpush1.msra.mxu0 0.0
    %950 = vmatprep.subr.mxu0 0.0
    %951 = vmatpush1.msra.mxu0 0.0
    %952 = vmatprep.subr.mxu0 0.0
    %953 = vmatpush1.msra.mxu0 0.0
    %954 = vmatprep.subr.mxu0 0.0
    %955 = vmatpush1.msra.mxu0 0.0
    %956 = vmatprep.subr.mxu0 0.0
    %957 = vmatpush1.msra.mxu0 0.0
    %958 = vmatprep.subr.mxu0 0.0
    %959 = vmatpush1.msra.mxu0 0.0
    %960 = vmatprep.subr.mxu0 0.0
    %961 = vmatpush1.msra.mxu0 0.0
    %962 = vmatprep.subr.mxu0 0.0
    %963 = vmatpush1.msra.mxu0 0.0
    %964 = vmatprep.subr.mxu0 0.0
    %965 = vmatpush1.msra.mxu0 0.0
    %966 = vmatprep.subr.mxu0 0.0
    %967 = vmatpush1.msra.mxu0 0.0
    %968 = vmatprep.subr.mxu0 0.0
    %969 = vmatpush1.msra.mxu0 0.0
    %970 = vmatprep.subr.mxu0 0.0
    %971 = vmatpush1.msra.mxu0 0.0
    %972 = vmatprep.subr.mxu0 0.0
    %973 = vmatpush1.msra.mxu0 0.0
    %974 = vmatprep.mubr.f32.mxu0 0.0
    %975 = vmatmul.mubr.f32.gmra.mrb[0].mxu0 %v908
    %v976 = vpop.f32.mrb[0].mxu0
    %v977 = vadd.f32 0.0, %v976
    %v978 = vpop.f32.mrb[0].mxu0
    %979 = vdwg.mxu0
    %980 = vrot.lane.b32.xlu0 %v172, 96
    %v981 = vpop.permute.xlu0 %980
    %v984 = vsel %vm191, %v891, 0
    %986 = vmatprep.subr.mxu0 0.0
    %987 = vmatpush1.msra.mxu0 %v981
    %988 = vmatprep.subr.mxu0 0.0
    %989 = vmatpush1.msra.mxu0 0.0
    %990 = vmatprep.subr.mxu0 0.0
    %991 = vmatpush1.msra.mxu0 0.0
    %992 = vmatprep.subr.mxu0 0.0
    %993 = vmatpush1.msra.mxu0 0.0
    %994 = vmatprep.subr.mxu0 0.0
    %995 = vmatpush1.msra.mxu0 0.0
    %996 = vmatprep.subr.mxu0 0.0
    %997 = vmatpush1.msra.mxu0 0.0
    %998 = vmatprep.subr.mxu0 0.0
    %999 = vmatpush1.msra.mxu0 0.0
    %1000 = vmatprep.subr.mxu0 0.0
    %1001 = vmatpush1.msra.mxu0 0.0
    %1002 = vmatprep.subr.mxu0 0.0
    %1003 = vmatpush1.msra.mxu0 0.0
    %1004 = vmatprep.subr.mxu0 0.0
    %1005 = vmatpush1.msra.mxu0 0.0
    %1006 = vmatprep.subr.mxu0 0.0
    %1007 = vmatpush1.msra.mxu0 0.0
    %1008 = vmatprep.subr.mxu0 0.0
    %1009 = vmatpush1.msra.mxu0 0.0
    %1010 = vmatprep.subr.mxu0 0.0
    %1011 = vmatpush1.msra.mxu0 0.0
    %1012 = vmatprep.subr.mxu0 0.0
    %1013 = vmatpush1.msra.mxu0 0.0
    %1014 = vmatprep.subr.mxu0 0.0
    %1015 = vmatpush1.msra.mxu0 0.0
    %1016 = vmatprep.subr.mxu0 0.0
    %1017 = vmatpush1.msra.mxu0 0.0
    %1018 = vmatprep.subr.mxu0 0.0
    %1019 = vmatpush1.msra.mxu0 0.0
    %1020 = vmatprep.subr.mxu0 0.0
    %1021 = vmatpush1.msra.mxu0 0.0
    %1022 = vmatprep.subr.mxu0 0.0
    %1023 = vmatpush1.msra.mxu0 0.0
    %1024 = vmatprep.subr.mxu0 0.0
    %1025 = vmatpush1.msra.mxu0 0.0
    %1026 = vmatprep.subr.mxu0 0.0
    %1027 = vmatpush1.msra.mxu0 0.0
    %1028 = vmatprep.subr.mxu0 0.0
    %1029 = vmatpush1.msra.mxu0 0.0
    %1030 = vmatprep.subr.mxu0 0.0
    %1031 = vmatpush1.msra.mxu0 0.0
    %1032 = vmatprep.subr.mxu0 0.0
    %1033 = vmatpush1.msra.mxu0 0.0
    %1034 = vmatprep.subr.mxu0 0.0
    %1035 = vmatpush1.msra.mxu0 0.0
    %1036 = vmatprep.subr.mxu0 0.0
    %1037 = vmatpush1.msra.mxu0 0.0
    %1038 = vmatprep.subr.mxu0 0.0
    %1039 = vmatpush1.msra.mxu0 0.0
    %1040 = vmatprep.subr.mxu0 0.0
    %1041 = vmatpush1.msra.mxu0 0.0
    %1042 = vmatprep.subr.mxu0 0.0
    %1043 = vmatpush1.msra.mxu0 0.0
    %1044 = vmatprep.subr.mxu0 0.0
    %1045 = vmatpush1.msra.mxu0 0.0
    %1046 = vmatprep.subr.mxu0 0.0
    %1047 = vmatpush1.msra.mxu0 0.0
    %1048 = vmatprep.subr.mxu0 0.0
    %1049 = vmatpush1.msra.mxu0 0.0
    %1050 = vmatprep.mubr.f32.mxu0 0.0
    %1051 = vmatmul.mubr.f32.gmra.mrb[0].mxu0 %v984
    %v1052 = vpop.f32.mrb[0].mxu0
    %v1053 = vadd.f32 0.0, %v1052
    %v1054 = vpop.f32.mrb[0].mxu0
    %1055 = vdwg.mxu0
    %1056 = vrot.lane.b32.xlu0 %v178, 96
    %v1057 = vpop.permute.xlu0 %1056
    %v1060 = vsel %vm191, %v893, 0
    %1062 = vmatprep.subr.mxu0 0.0
    %1063 = vmatpush1.msra.mxu0 %v1057
    %1064 = vmatprep.subr.mxu0 0.0
    %1065 = vmatpush1.msra.mxu0 0.0
    %1066 = vmatprep.subr.mxu0 0.0
    %1067 = vmatpush1.msra.mxu0 0.0
    %1068 = vmatprep.subr.mxu0 0.0
    %1069 = vmatpush1.msra.mxu0 0.0
    %1070 = vmatprep.subr.mxu0 0.0
    %1071 = vmatpush1.msra.mxu0 0.0
    %1072 = vmatprep.subr.mxu0 0.0
    %1073 = vmatpush1.msra.mxu0 0.0
    %1074 = vmatprep.subr.mxu0 0.0
    %1075 = vmatpush1.msra.mxu0 0.0
    %1076 = vmatprep.subr.mxu0 0.0
    %1077 = vmatpush1.msra.mxu0 0.0
    %1078 = vmatprep.subr.mxu0 0.0
    %1079 = vmatpush1.msra.mxu0 0.0
    %1080 = vmatprep.subr.mxu0 0.0
    %1081 = vmatpush1.msra.mxu0 0.0
    %1082 = vmatprep.subr.mxu0 0.0
    %1083 = vmatpush1.msra.mxu0 0.0
    %1084 = vmatprep.subr.mxu0 0.0
    %1085 = vmatpush1.msra.mxu0 0.0
    %1086 = vmatprep.subr.mxu0 0.0
    %1087 = vmatpush1.msra.mxu0 0.0
    %1088 = vmatprep.subr.mxu0 0.0
    %1089 = vmatpush1.msra.mxu0 0.0
    %1090 = vmatprep.subr.mxu0 0.0
    %1091 = vmatpush1.msra.mxu0 0.0
    %1092 = vmatprep.subr.mxu0 0.0
    %1093 = vmatpush1.msra.mxu0 0.0
    %1094 = vmatprep.subr.mxu0 0.0
    %1095 = vmatpush1.msra.mxu0 0.0
    %1096 = vmatprep.subr.mxu0 0.0
    %1097 = vmatpush1.msra.mxu0 0.0
    %1098 = vmatprep.subr.mxu0 0.0
    %1099 = vmatpush1.msra.mxu0 0.0
    %1100 = vmatprep.subr.mxu0 0.0
    %1101 = vmatpush1.msra.mxu0 0.0
    %1102 = vmatprep.subr.mxu0 0.0
    %1103 = vmatpush1.msra.mxu0 0.0
    %1104 = vmatprep.subr.mxu0 0.0
    %1105 = vmatpush1.msra.mxu0 0.0
    %1106 = vmatprep.subr.mxu0 0.0
    %1107 = vmatpush1.msra.mxu0 0.0
    %1108 = vmatprep.subr.mxu0 0.0
    %1109 = vmatpush1.msra.mxu0 0.0
    %1110 = vmatprep.subr.mxu0 0.0
    %1111 = vmatpush1.msra.mxu0 0.0
    %1112 = vmatprep.subr.mxu0 0.0
    %1113 = vmatpush1.msra.mxu0 0.0
    %1114 = vmatprep.subr.mxu0 0.0
    %1115 = vmatpush1.msra.mxu0 0.0
    %1116 = vmatprep.subr.mxu0 0.0
    %1117 = vmatpush1.msra.mxu0 0.0
    %1118 = vmatprep.subr.mxu0 0.0
    %1119 = vmatpush1.msra.mxu0 0.0
    %1120 = vmatprep.subr.mxu0 0.0
    %1121 = vmatpush1.msra.mxu0 0.0
    %1122 = vmatprep.subr.mxu0 0.0
    %1123 = vmatpush1.msra.mxu0 0.0
    %1124 = vmatprep.subr.mxu0 0.0
    %1125 = vmatpush1.msra.mxu0 0.0
    %1126 = vmatprep.mubr.f32.mxu0 0.0
    %1127 = vmatmul.mubr.f32.gmra.mrb[0].mxu0 %v1060
    %v1128 = vpop.f32.mrb[0].mxu0
    %v1129 = vadd.f32 0.0, %v1128
    %v1130 = vpop.f32.mrb[0].mxu0
    %1131 = vdwg.mxu0
    %1132 = vrot.lane.b32.xlu0 %v180, 96
    %v1133 = vpop.permute.xlu0 %1132
    %v1136 = vsel %vm191, %v895, 0
    %1138 = vmatprep.subr.mxu0 0.0
    %1139 = vmatpush1.msra.mxu0 %v1133
    %1140 = vmatprep.subr.mxu0 0.0
    %1141 = vmatpush1.msra.mxu0 0.0
    %1142 = vmatprep.subr.mxu0 0.0
    %1143 = vmatpush1.msra.mxu0 0.0
    %1144 = vmatprep.subr.mxu0 0.0
    %1145 = vmatpush1.msra.mxu0 0.0
    %1146 = vmatprep.subr.mxu0 0.0
    %1147 = vmatpush1.msra.mxu0 0.0
    %1148 = vmatprep.subr.mxu0 0.0
    %1149 = vmatpush1.msra.mxu0 0.0
    %1150 = vmatprep.subr.mxu0 0.0
    %1151 = vmatpush1.msra.mxu0 0.0
    %1152 = vmatprep.subr.mxu0 0.0
    %1153 = vmatpush1.msra.mxu0 0.0
    %1154 = vmatprep.subr.mxu0 0.0
    %1155 = vmatpush1.msra.mxu0 0.0
    %1156 = vmatprep.subr.mxu0 0.0
    %1157 = vmatpush1.msra.mxu0 0.0
    %1158 = vmatprep.subr.mxu0 0.0
    %1159 = vmatpush1.msra.mxu0 0.0
    %1160 = vmatprep.subr.mxu0 0.0
    %1161 = vmatpush1.msra.mxu0 0.0
    %1162 = vmatprep.subr.mxu0 0.0
    %1163 = vmatpush1.msra.mxu0 0.0
    %1164 = vmatprep.subr.mxu0 0.0
    %1165 = vmatpush1.msra.mxu0 0.0
    %1166 = vmatprep.subr.mxu0 0.0
    %1167 = vmatpush1.msra.mxu0 0.0
    %1168 = vmatprep.subr.mxu0 0.0
    %1169 = vmatpush1.msra.mxu0 0.0
    %1170 = vmatprep.subr.mxu0 0.0
    %1171 = vmatpush1.msra.mxu0 0.0
    %1172 = vmatprep.subr.mxu0 0.0
    %1173 = vmatpush1.msra.mxu0 0.0
    %1174 = vmatprep.subr.mxu0 0.0
    %1175 = vmatpush1.msra.mxu0 0.0
    %1176 = vmatprep.subr.mxu0 0.0
    %1177 = vmatpush1.msra.mxu0 0.0
    %1178 = vmatprep.subr.mxu0 0.0
    %1179 = vmatpush1.msra.mxu0 0.0
    %1180 = vmatprep.subr.mxu0 0.0
    %1181 = vmatpush1.msra.mxu0 0.0
    %1182 = vmatprep.subr.mxu0 0.0
    %1183 = vmatpush1.msra.mxu0 0.0
    %1184 = vmatprep.subr.mxu0 0.0
    %1185 = vmatpush1.msra.mxu0 0.0
    %1186 = vmatprep.subr.mxu0 0.0
    %1187 = vmatpush1.msra.mxu0 0.0
    %1188 = vmatprep.subr.mxu0 0.0
    %1189 = vmatpush1.msra.mxu0 0.0
    %1190 = vmatprep.subr.mxu0 0.0
    %1191 = vmatpush1.msra.mxu0 0.0
    %1192 = vmatprep.subr.mxu0 0.0
    %1193 = vmatpush1.msra.mxu0 0.0
    %1194 = vmatprep.subr.mxu0 0.0
    %1195 = vmatpush1.msra.mxu0 0.0
    %1196 = vmatprep.subr.mxu0 0.0
    %1197 = vmatpush1.msra.mxu0 0.0
    %1198 = vmatprep.subr.mxu0 0.0
    %1199 = vmatpush1.msra.mxu0 0.0
    %1200 = vmatprep.subr.mxu0 0.0
    %1201 = vmatpush1.msra.mxu0 0.0
    %1202 = vmatprep.mubr.f32.mxu0 0.0
    %1203 = vmatmul.mubr.f32.gmra.mrb[0].mxu0 %v1136
    %v1204 = vpop.f32.mrb[0].mxu0
    %v1205 = vadd.f32 0.0, %v1204
    %v1206 = vpop.f32.mrb[0].mxu0
    %1207 = vdwg.mxu0
    %1208 = vrot.lane.b32.xlu0 %v182, 96
    %v1209 = vpop.permute.xlu0 %1208
    %v1212 = vsel %vm191, %v897, 0
    %1214 = vmatprep.subr.mxu0 0.0
    %1215 = vmatpush1.msra.mxu0 %v1209
    %1216 = vmatprep.subr.mxu0 0.0
    %1217 = vmatpush1.msra.mxu0 0.0
    %1218 = vmatprep.subr.mxu0 0.0
    %1219 = vmatpush1.msra.mxu0 0.0
    %1220 = vmatprep.subr.mxu0 0.0
    %1221 = vmatpush1.msra.mxu0 0.0
    %1222 = vmatprep.subr.mxu0 0.0
    %1223 = vmatpush1.msra.mxu0 0.0
    %1224 = vmatprep.subr.mxu0 0.0
    %1225 = vmatpush1.msra.mxu0 0.0
    %1226 = vmatprep.subr.mxu0 0.0
    %1227 = vmatpush1.msra.mxu0 0.0
    %1228 = vmatprep.subr.mxu0 0.0
    %1229 = vmatpush1.msra.mxu0 0.0
    %1230 = vmatprep.subr.mxu0 0.0
    %1231 = vmatpush1.msra.mxu0 0.0
    %1232 = vmatprep.subr.mxu0 0.0
    %1233 = vmatpush1.msra.mxu0 0.0
    %1234 = vmatprep.subr.mxu0 0.0
    %1235 = vmatpush1.msra.mxu0 0.0
    %1236 = vmatprep.subr.mxu0 0.0
    %1237 = vmatpush1.msra.mxu0 0.0
    %1238 = vmatprep.subr.mxu0 0.0
    %1239 = vmatpush1.msra.mxu0 0.0
    %1240 = vmatprep.subr.mxu0 0.0
    %1241 = vmatpush1.msra.mxu0 0.0
    %1242 = vmatprep.subr.mxu0 0.0
    %1243 = vmatpush1.msra.mxu0 0.0
    %1244 = vmatprep.subr.mxu0 0.0
    %1245 = vmatpush1.msra.mxu0 0.0
    %1246 = vmatprep.subr.mxu0 0.0
    %1247 = vmatpush1.msra.mxu0 0.0
    %1248 = vmatprep.subr.mxu0 0.0
    %1249 = vmatpush1.msra.mxu0 0.0
    %1250 = vmatprep.subr.mxu0 0.0
    %1251 = vmatpush1.msra.mxu0 0.0
    %1252 = vmatprep.subr.mxu0 0.0
    %1253 = vmatpush1.msra.mxu0 0.0
    %1254 = vmatprep.subr.mxu0 0.0
    %1255 = vmatpush1.msra.mxu0 0.0
    %1256 = vmatprep.subr.mxu0 0.0
    %1257 = vmatpush1.msra.mxu0 0.0
    %1258 = vmatprep.subr.mxu0 0.0
    %1259 = vmatpush1.msra.mxu0 0.0
    %1260 = vmatprep.subr.mxu0 0.0
    %1261 = vmatpush1.msra.mxu0 0.0
    %1262 = vmatprep.subr.mxu0 0.0
    %1263 = vmatpush1.msra.mxu0 0.0
    %1264 = vmatprep.subr.mxu0 0.0
    %1265 = vmatpush1.msra.mxu0 0.0
    %1266 = vmatprep.subr.mxu0 0.0
    %1267 = vmatpush1.msra.mxu0 0.0
    %1268 = vmatprep.subr.mxu0 0.0
    %1269 = vmatpush1.msra.mxu0 0.0
    %1270 = vmatprep.subr.mxu0 0.0
    %1271 = vmatpush1.msra.mxu0 0.0
    %1272 = vmatprep.subr.mxu0 0.0
    %1273 = vmatpush1.msra.mxu0 0.0
    %1274 = vmatprep.subr.mxu0 0.0
    %1275 = vmatpush1.msra.mxu0 0.0
    %1276 = vmatprep.subr.mxu0 0.0
    %1277 = vmatpush1.msra.mxu0 0.0
    %1278 = vmatprep.mubr.f32.mxu0 0.0
    %1279 = vmatmul.mubr.f32.gmra.mrb[0].mxu0 %v1212
    %v1280 = vpop.f32.mrb[0].mxu0
    %v1281 = vadd.f32 0.0, %v1280
    %v1282 = vpop.f32.mrb[0].mxu0
    %1283 = vdwg.mxu0
    %1284 = vrot.lane.b32.xlu0 %v184, 96
    %v1285 = vpop.permute.xlu0 %1284
    %v1288 = vsel %vm191, %v899, 0
    %1290 = vmatprep.subr.mxu0 0.0
    %1291 = vmatpush1.msra.mxu0 %v1285
    %1292 = vmatprep.subr.mxu0 0.0
    %1293 = vmatpush1.msra.mxu0 0.0
    %1294 = vmatprep.subr.mxu0 0.0
    %1295 = vmatpush1.msra.mxu0 0.0
    %1296 = vmatprep.subr.mxu0 0.0
    %1297 = vmatpush1.msra.mxu0 0.0
    %1298 = vmatprep.subr.mxu0 0.0
    %1299 = vmatpush1.msra.mxu0 0.0
    %1300 = vmatprep.subr.mxu0 0.0
    %1301 = vmatpush1.msra.mxu0 0.0
    %1302 = vmatprep.subr.mxu0 0.0
    %1303 = vmatpush1.msra.mxu0 0.0
    %1304 = vmatprep.subr.mxu0 0.0
    %1305 = vmatpush1.msra.mxu0 0.0
    %1306 = vmatprep.subr.mxu0 0.0
    %1307 = vmatpush1.msra.mxu0 0.0
    %1308 = vmatprep.subr.mxu0 0.0
    %1309 = vmatpush1.msra.mxu0 0.0
    %1310 = vmatprep.subr.mxu0 0.0
    %1311 = vmatpush1.msra.mxu0 0.0
    %1312 = vmatprep.subr.mxu0 0.0
    %1313 = vmatpush1.msra.mxu0 0.0
    %1314 = vmatprep.subr.mxu0 0.0
    %1315 = vmatpush1.msra.mxu0 0.0
    %1316 = vmatprep.subr.mxu0 0.0
    %1317 = vmatpush1.msra.mxu0 0.0
    %1318 = vmatprep.subr.mxu0 0.0
    %1319 = vmatpush1.msra.mxu0 0.0
    %1320 = vmatprep.subr.mxu0 0.0
    %1321 = vmatpush1.msra.mxu0 0.0
    %1322 = vmatprep.subr.mxu0 0.0
    %1323 = vmatpush1.msra.mxu0 0.0
    %1324 = vmatprep.subr.mxu0 0.0
    %1325 = vmatpush1.msra.mxu0 0.0
    %1326 = vmatprep.subr.mxu0 0.0
    %1327 = vmatpush1.msra.mxu0 0.0
    %1328 = vmatprep.subr.mxu0 0.0
    %1329 = vmatpush1.msra.mxu0 0.0
    %1330 = vmatprep.subr.mxu0 0.0
    %1331 = vmatpush1.msra.mxu0 0.0
    %1332 = vmatprep.subr.mxu0 0.0
    %1333 = vmatpush1.msra.mxu0 0.0
    %1334 = vmatprep.subr.mxu0 0.0
    %1335 = vmatpush1.msra.mxu0 0.0
    %1336 = vmatprep.subr.mxu0 0.0
    %1337 = vmatpush1.msra.mxu0 0.0
    %1338 = vmatprep.subr.mxu0 0.0
    %1339 = vmatpush1.msra.mxu0 0.0
    %1340 = vmatprep.subr.mxu0 0.0
    %1341 = vmatpush1.msra.mxu0 0.0
    %1342 = vmatprep.subr.mxu0 0.0
    %1343 = vmatpush1.msra.mxu0 0.0
    %1344 = vmatprep.subr.mxu0 0.0
    %1345 = vmatpush1.msra.mxu0 0.0
    %1346 = vmatprep.subr.mxu0 0.0
    %1347 = vmatpush1.msra.mxu0 0.0
    %1348 = vmatprep.subr.mxu0 0.0
    %1349 = vmatpush1.msra.mxu0 0.0
    %1350 = vmatprep.subr.mxu0 0.0
    %1351 = vmatpush1.msra.mxu0 0.0
    %1352 = vmatprep.subr.mxu0 0.0
    %1353 = vmatpush1.msra.mxu0 0.0
    %1354 = vmatprep.mubr.f32.mxu0 0.0
    %1355 = vmatmul.mubr.f32.gmra.mrb[0].mxu0 %v1288
    %v1356 = vpop.f32.mrb[0].mxu0
    %v1357 = vadd.f32 0.0, %v1356
    %v1358 = vpop.f32.mrb[0].mxu0
    %1359 = vdwg.mxu0
    %1360 = vrot.lane.b32.xlu0 %v186, 96
    %v1361 = vpop.permute.xlu0 %1360
    %v1364 = vsel %vm191, %v901, 0
    %1366 = vmatprep.subr.mxu0 0.0
    %1367 = vmatpush1.msra.mxu0 %v1361
    %1368 = vmatprep.subr.mxu0 0.0
    %1369 = vmatpush1.msra.mxu0 0.0
    %1370 = vmatprep.subr.mxu0 0.0
    %1371 = vmatpush1.msra.mxu0 0.0
    %1372 = vmatprep.subr.mxu0 0.0
    %1373 = vmatpush1.msra.mxu0 0.0
    %1374 = vmatprep.subr.mxu0 0.0
    %1375 = vmatpush1.msra.mxu0 0.0
    %1376 = vmatprep.subr.mxu0 0.0
    %1377 = vmatpush1.msra.mxu0 0.0
    %1378 = vmatprep.subr.mxu0 0.0
    %1379 = vmatpush1.msra.mxu0 0.0
    %1380 = vmatprep.subr.mxu0 0.0
    %1381 = vmatpush1.msra.mxu0 0.0
    %1382 = vmatprep.subr.mxu0 0.0
    %1383 = vmatpush1.msra.mxu0 0.0
    %1384 = vmatprep.subr.mxu0 0.0
    %1385 = vmatpush1.msra.mxu0 0.0
    %1386 = vmatprep.subr.mxu0 0.0
    %1387 = vmatpush1.msra.mxu0 0.0
    %1388 = vmatprep.subr.mxu0 0.0
    %1389 = vmatpush1.msra.mxu0 0.0
    %1390 = vmatprep.subr.mxu0 0.0
    %1391 = vmatpush1.msra.mxu0 0.0
    %1392 = vmatprep.subr.mxu0 0.0
    %1393 = vmatpush1.msra.mxu0 0.0
    %1394 = vmatprep.subr.mxu0 0.0
    %1395 = vmatpush1.msra.mxu0 0.0
    %1396 = vmatprep.subr.mxu0 0.0
    %1397 = vmatpush1.msra.mxu0 0.0
    %1398 = vmatprep.subr.mxu0 0.0
    %1399 = vmatpush1.msra.mxu0 0.0
    %1400 = vmatprep.subr.mxu0 0.0
    %1401 = vmatpush1.msra.mxu0 0.0
    %1402 = vmatprep.subr.mxu0 0.0
    %1403 = vmatpush1.msra.mxu0 0.0
    %1404 = vmatprep.subr.mxu0 0.0
    %1405 = vmatpush1.msra.mxu0 0.0
    %1406 = vmatprep.subr.mxu0 0.0
    %1407 = vmatpush1.msra.mxu0 0.0
    %1408 = vmatprep.subr.mxu0 0.0
    %1409 = vmatpush1.msra.mxu0 0.0
    %1410 = vmatprep.subr.mxu0 0.0
    %1411 = vmatpush1.msra.mxu0 0.0
    %1412 = vmatprep.subr.mxu0 0.0
    %1413 = vmatpush1.msra.mxu0 0.0
    %1414 = vmatprep.subr.mxu0 0.0
    %1415 = vmatpush1.msra.mxu0 0.0
    %1416 = vmatprep.subr.mxu0 0.0
    %1417 = vmatpush1.msra.mxu0 0.0
    %1418 = vmatprep.subr.mxu0 0.0
    %1419 = vmatpush1.msra.mxu0 0.0
    %1420 = vmatprep.subr.mxu0 0.0
    %1421 = vmatpush1.msra.mxu0 0.0
    %1422 = vmatprep.subr.mxu0 0.0
    %1423 = vmatpush1.msra.mxu0 0.0
    %1424 = vmatprep.subr.mxu0 0.0
    %1425 = vmatpush1.msra.mxu0 0.0
    %1426 = vmatprep.subr.mxu0 0.0
    %1427 = vmatpush1.msra.mxu0 0.0
    %1428 = vmatprep.subr.mxu0 0.0
    %1429 = vmatpush1.msra.mxu0 0.0
    %1430 = vmatprep.mubr.f32.mxu0 0.0
    %1431 = vmatmul.mubr.f32.gmra.mrb[0].mxu0 %v1364
    %v1432 = vpop.f32.mrb[0].mxu0
    %v1433 = vadd.f32 0.0, %v1432
    %v1434 = vpop.f32.mrb[0].mxu0
    %1435 = vdwg.mxu0
    %1436 = vrot.lane.b32.xlu0 %v188, 96
    %v1437 = vpop.permute.xlu0 %1436
    %v1440 = vsel %vm191, %v903, 0
    %1442 = vmatprep.subr.mxu0 0.0
    %1443 = vmatpush1.msra.mxu0 %v1437
    %1444 = vmatprep.subr.mxu0 0.0
    %1445 = vmatpush1.msra.mxu0 0.0
    %1446 = vmatprep.subr.mxu0 0.0
    %1447 = vmatpush1.msra.mxu0 0.0
    %1448 = vmatprep.subr.mxu0 0.0
    %1449 = vmatpush1.msra.mxu0 0.0
    %1450 = vmatprep.subr.mxu0 0.0
    %1451 = vmatpush1.msra.mxu0 0.0
    %1452 = vmatprep.subr.mxu0 0.0
    %1453 = vmatpush1.msra.mxu0 0.0
    %1454 = vmatprep.subr.mxu0 0.0
    %1455 = vmatpush1.msra.mxu0 0.0
    %1456 = vmatprep.subr.mxu0 0.0
    %1457 = vmatpush1.msra.mxu0 0.0
    %1458 = vmatprep.subr.mxu0 0.0
    %1459 = vmatpush1.msra.mxu0 0.0
    %1460 = vmatprep.subr.mxu0 0.0
    %1461 = vmatpush1.msra.mxu0 0.0
    %1462 = vmatprep.subr.mxu0 0.0
    %1463 = vmatpush1.msra.mxu0 0.0
    %1464 = vmatprep.subr.mxu0 0.0
    %1465 = vmatpush1.msra.mxu0 0.0
    %1466 = vmatprep.subr.mxu0 0.0
    %1467 = vmatpush1.msra.mxu0 0.0
    %1468 = vmatprep.subr.mxu0 0.0
    %1469 = vmatpush1.msra.mxu0 0.0
    %1470 = vmatprep.subr.mxu0 0.0
    %1471 = vmatpush1.msra.mxu0 0.0
    %1472 = vmatprep.subr.mxu0 0.0
    %1473 = vmatpush1.msra.mxu0 0.0
    %1474 = vmatprep.subr.mxu0 0.0
    %1475 = vmatpush1.msra.mxu0 0.0
    %1476 = vmatprep.subr.mxu0 0.0
    %1477 = vmatpush1.msra.mxu0 0.0
    %1478 = vmatprep.subr.mxu0 0.0
    %1479 = vmatpush1.msra.mxu0 0.0
    %1480 = vmatprep.subr.mxu0 0.0
    %1481 = vmatpush1.msra.mxu0 0.0
    %1482 = vmatprep.subr.mxu0 0.0
    %1483 = vmatpush1.msra.mxu0 0.0
    %1484 = vmatprep.subr.mxu0 0.0
    %1485 = vmatpush1.msra.mxu0 0.0
    %1486 = vmatprep.subr.mxu0 0.0
    %1487 = vmatpush1.msra.mxu0 0.0
    %1488 = vmatprep.subr.mxu0 0.0
    %1489 = vmatpush1.msra.mxu0 0.0
    %1490 = vmatprep.subr.mxu0 0.0
    %1491 = vmatpush1.msra.mxu0 0.0
    %1492 = vmatprep.subr.mxu0 0.0
    %1493 = vmatpush1.msra.mxu0 0.0
    %1494 = vmatprep.subr.mxu0 0.0
    %1495 = vmatpush1.msra.mxu0 0.0
    %1496 = vmatprep.subr.mxu0 0.0
    %1497 = vmatpush1.msra.mxu0 0.0
    %1498 = vmatprep.subr.mxu0 0.0
    %1499 = vmatpush1.msra.mxu0 0.0
    %1500 = vmatprep.subr.mxu0 0.0
    %1501 = vmatpush1.msra.mxu0 0.0
    %1502 = vmatprep.subr.mxu0 0.0
    %1503 = vmatpush1.msra.mxu0 0.0
    %1504 = vmatprep.subr.mxu0 0.0
    %1505 = vmatpush1.msra.mxu0 0.0
    %1506 = vmatprep.mubr.f32.mxu0 0.0
    %1507 = vmatmul.mubr.f32.gmra.mrb[0].mxu0 %v1440
    %v1508 = vpop.f32.mrb[0].mxu0
    %v1509 = vadd.f32 0.0, %v1508
    %v1510 = vpop.f32.mrb[0].mxu0
    %1511 = vdwg.mxu0
    %1514 = vrot.lane.b32.xlu0 %v1129, 8
    %v1515 = vpop.permute.xlu0 %1514
    %1516 = vrot.lane.b32.xlu0 %v1205, 8
    %v1517 = vpop.permute.xlu0 %1516
    %1522 = vrot.lane.b32.xlu0 %v1281, 16
    %v1523 = vpop.permute.xlu0 %1522
    %1524 = vrot.lane.b32.xlu0 %v1357, 16
    %v1525 = vpop.permute.xlu0 %1524
    %1530 = vrot.lane.b32.xlu0 %v1433, 24
    %v1531 = vpop.permute.xlu0 %1530
    %1532 = vrot.lane.b32.xlu0 %v1509, 24
    %v1533 = vpop.permute.xlu0 %1532
    %v1536 = vsel %vm191, %v977, %v1515
    %v1537 = vsel %vm191, %v1053, %v1517
    %vm1538 = vcmask 130048
    %v1539 = vsel %vm1538, %v1536, %v1523
    %v1540 = vsel %vm1538, %v1537, %v1525
    %vm1541 = vcmask 195584
    %v1542 = vsel %vm1541, %v1539, %v1531
    %v1543 = vsel %vm1541, %v1540, %v1533
    %v1544 = vld [vmem:[#allocation2 + $0x8] sm:$0xff]
    %v1545 = vld [vmem:[#allocation2 + $0x38] sm:$0xff]
    %v1546 = vld [vmem:[#allocation2 + $0x68] sm:$0xff]
    %v1547 = vld [vmem:[#allocation2 + $0x98] sm:$0xff]
    %v1549 = vsel %vm53, %v1542, 0
    %v1552 = vsel %vm53, %v1543, 0
    %1554 = vmatprep.subr.mxu0 0.0
    %1555 = vmatpush1.msra.mxu0 %v1544
    %1556 = vmatprep.subr.mxu0 0.0
    %1557 = vmatpush1.msra.mxu0 %v1545
    %1558 = vmatprep.subr.mxu0 0.0
    %1559 = vmatpush1.msra.mxu0 %v1546
    %1560 = vmatprep.subr.mxu0 0.0
    %1561 = vmatpush1.msra.mxu0 %v1547
    %1562 = vmatprep.subr.mxu0 0.0
    %1563 = vmatpush1.msra.mxu0 0.0
    %1564 = vmatprep.subr.mxu0 0.0
    %1565 = vmatpush1.msra.mxu0 0.0
    %1566 = vmatprep.subr.mxu0 0.0
    %1567 = vmatpush1.msra.mxu0 0.0
    %1568 = vmatprep.subr.mxu0 0.0
    %1569 = vmatpush1.msra.mxu0 0.0
    %1570 = vmatprep.subr.mxu0 0.0
    %1571 = vmatpush1.msra.mxu0 0.0
    %1572 = vmatprep.subr.mxu0 0.0
    %1573 = vmatpush1.msra.mxu0 0.0
    %1574 = vmatprep.subr.mxu0 0.0
    %1575 = vmatpush1.msra.mxu0 0.0
    %1576 = vmatprep.subr.mxu0 0.0
    %1577 = vmatpush1.msra.mxu0 0.0
    %1578 = vmatprep.subr.mxu0 0.0
    %1579 = vmatpush1.msra.mxu0 0.0
    %1580 = vmatprep.subr.mxu0 0.0
    %1581 = vmatpush1.msra.mxu0 0.0
    %1582 = vmatprep.subr.mxu0 0.0
    %1583 = vmatpush1.msra.mxu0 0.0
    %1584 = vmatprep.subr.mxu0 0.0
    %1585 = vmatpush1.msra.mxu0 0.0
    %1586 = vmatprep.subr.mxu0 0.0
    %1587 = vmatpush1.msra.mxu0 0.0
    %1588 = vmatprep.subr.mxu0 0.0
    %1589 = vmatpush1.msra.mxu0 0.0
    %1590 = vmatprep.subr.mxu0 0.0
    %1591 = vmatpush1.msra.mxu0 0.0
    %1592 = vmatprep.subr.mxu0 0.0
    %1593 = vmatpush1.msra.mxu0 0.0
    %1594 = vmatprep.subr.mxu0 0.0
    %1595 = vmatpush1.msra.mxu0 0.0
    %1596 = vmatprep.subr.mxu0 0.0
    %1597 = vmatpush1.msra.mxu0 0.0
    %1598 = vmatprep.subr.mxu0 0.0
    %1599 = vmatpush1.msra.mxu0 0.0
    %1600 = vmatprep.subr.mxu0 0.0
    %1601 = vmatpush1.msra.mxu0 0.0
    %1602 = vmatprep.subr.mxu0 0.0
    %1603 = vmatpush1.msra.mxu0 0.0
    %1604 = vmatprep.subr.mxu0 0.0
    %1605 = vmatpush1.msra.mxu0 0.0
    %1606 = vmatprep.subr.mxu0 0.0
    %1607 = vmatpush1.msra.mxu0 0.0
    %1608 = vmatprep.subr.mxu0 0.0
    %1609 = vmatpush1.msra.mxu0 0.0
    %1610 = vmatprep.subr.mxu0 0.0
    %1611 = vmatpush1.msra.mxu0 0.0
    %1612 = vmatprep.subr.mxu0 0.0
    %1613 = vmatpush1.msra.mxu0 0.0
    %1614 = vmatprep.subr.mxu0 0.0
    %1615 = vmatpush1.msra.mxu0 0.0
    %1616 = vmatprep.subr.mxu0 0.0
    %1617 = vmatpush1.msra.mxu0 0.0
    %1618 = vmatprep.mubr.f32.mxu0 0.0
    %1619 = vmatmul.mubr.f32.gmra.mrb[0].mxu0 %v1549
    %v1620 = vpop.f32.mrb[0].mxu0
    %v1621 = vadd.f32 0.0, %v1620
    %v1622 = vpop.f32.mrb[0].mxu0
    %1623 = vmatprep.mubr.f32.mxu0 0.0
    %1624 = vmatmul.mubr.f32.gmra.mrb[0].mxu0 %v1552
    %v1625 = vpop.f32.mrb[0].mxu0
    %v1626 = vadd.f32 0.0, %v1625
    %v1627 = vpop.f32.mrb[0].mxu0
    %1628 = vdwg.mxu0
    %v1629 = vadd.f32 %v41, %v1621
    %v1630 = vadd.f32 %v42, %v1626
    %v1631 = vld [vmem:[%s6 + $0x1] sm:$0x1]
    %v1633 = vlaneseq
    %v1634 = vshrl.u32 %v1633, 7
    %v1635 = vsub.s32 0, %v1634
    %v1636 = vrot.slane %v1631, %v1635
    %v1638 = vadd.f32 %v1629, %v1636
    %v1639 = vadd.f32 %v1630, %v1636
    %v1640 = vsel %vm53, %v1638, 0.0
    %1641 = vadd.xlane.f32.xlu0 %v1640
    %v1642 = vpop.xlane.xlu0 %1641
    %v1643 = vsel %vm53, %v1639, 0.0
    %1644 = vadd.xlane.f32.xlu0 %v1643
    %v1645 = vpop.xlane.xlu0 %1644
    %v1646 = vmul.f32 %v1642, %v60
    %v1647 = vmul.f32 %v1645, %v60
    %v1648 = vsub.f32 %v1638, %v1646
    %v1649 = vsub.f32 %v1639, %v1647
    %v1650 = vmul.f32 %v1648, %v1648
    %v1651 = vmul.f32 %v1649, %v1649
    %v1652 = vsel %vm53, %v1650, 0.0
    %1653 = vadd.xlane.f32.xlu0 %v1652
    %v1654 = vpop.xlane.xlu0 %1653
    %v1655 = vsel %vm53, %v1651, 0.0
    %1656 = vadd.xlane.f32.xlu0 %v1655
    %v1657 = vpop.xlane.xlu0 %1656
    %v1658 = vmul.f32 %v1654, 0.032258064
    %v1659 = vmul.f32 %v1657, 0.032258064
    %v1660 = vrsqrt.pop %v1658
    %v1661 = vrsqrt.pop %v1659
    %v1662 = vmul.f32 %v1660, 1000000.0
    %v1663 = vmul.f32 %v1661, 1000000.0
    %v1664 = vmul.f32 %v1648, %v1662
    %v1665 = vmul.f32 %v1649, %v1663
    %v1666 = vadd.f32 %v1664, 0.0
    %v1667 = vadd.f32 %v1665, 0.0
    %v1668 = vld [vmem:[#allocation2 + $0x10] sm:$0xff]
    %v1669 = vld [vmem:[#allocation2 + $0x40] sm:$0xff]
    %v1670 = vld [vmem:[#allocation2 + $0x70] sm:$0xff]
    %v1671 = vld [vmem:[#allocation2 + $0xa0] sm:$0xff]
    %v1672 = vld [vmem:[%s6 + $0x2] sm:$0x1]
    %v1674 = vlaneseq
    %v1675 = vshrl.u32 %v1674, 7
    %v1676 = vsub.s32 0, %v1675
    %v1677 = vrot.slane %v1672, %v1676
    %v1680 = vsel %vm53, %v1666, 0
    %v1683 = vsel %vm53, %v1667, 0
    %1685 = vmatprep.subr.mxu0 0.0
    %1686 = vmatpush1.msra.mxu0 %v1668
    %1687 = vmatprep.subr.mxu0 0.0
    %1688 = vmatpush1.msra.mxu0 %v1669
    %1689 = vmatprep.subr.mxu0 0.0
    %1690 = vmatpush1.msra.mxu0 %v1670
    %1691 = vmatprep.subr.mxu0 0.0
    %1692 = vmatpush1.msra.mxu0 %v1671
    %1693 = vmatprep.subr.mxu0 0.0
    %1694 = vmatpush1.msra.mxu0 0.0
    %1695 = vmatprep.subr.mxu0 0.0
    %1696 = vmatpush1.msra.mxu0 0.0
    %1697 = vmatprep.subr.mxu0 0.0
    %1698 = vmatpush1.msra.mxu0 0.0
    %1699 = vmatprep.subr.mxu0 0.0
    %1700 = vmatpush1.msra.mxu0 0.0
    %1701 = vmatprep.subr.mxu0 0.0
    %1702 = vmatpush1.msra.mxu0 0.0
    %1703 = vmatprep.subr.mxu0 0.0
    %1704 = vmatpush1.msra.mxu0 0.0
    %1705 = vmatprep.subr.mxu0 0.0
    %1706 = vmatpush1.msra.mxu0 0.0
    %1707 = vmatprep.subr.mxu0 0.0
    %1708 = vmatpush1.msra.mxu0 0.0
    %1709 = vmatprep.subr.mxu0 0.0
    %1710 = vmatpush1.msra.mxu0 0.0
    %1711 = vmatprep.subr.mxu0 0.0
    %1712 = vmatpush1.msra.mxu0 0.0
    %1713 = vmatprep.subr.mxu0 0.0
    %1714 = vmatpush1.msra.mxu0 0.0
    %1715 = vmatprep.subr.mxu0 0.0
    %1716 = vmatpush1.msra.mxu0 0.0
    %1717 = vmatprep.subr.mxu0 0.0
    %1718 = vmatpush1.msra.mxu0 0.0
    %1719 = vmatprep.subr.mxu0 0.0
    %1720 = vmatpush1.msra.mxu0 0.0
    %1721 = vmatprep.subr.mxu0 0.0
    %1722 = vmatpush1.msra.mxu0 0.0
    %1723 = vmatprep.subr.mxu0 0.0
    %1724 = vmatpush1.msra.mxu0 0.0
    %1725 = vmatprep.subr.mxu0 0.0
    %1726 = vmatpush1.msra.mxu0 0.0
    %1727 = vmatprep.subr.mxu0 0.0
    %1728 = vmatpush1.msra.mxu0 0.0
    %1729 = vmatprep.subr.mxu0 0.0
    %1730 = vmatpush1.msra.mxu0 0.0
    %1731 = vmatprep.subr.mxu0 0.0
    %1732 = vmatpush1.msra.mxu0 0.0
    %1733 = vmatprep.subr.mxu0 0.0
    %1734 = vmatpush1.msra.mxu0 0.0
    %1735 = vmatprep.subr.mxu0 0.0
    %1736 = vmatpush1.msra.mxu0 0.0
    %1737 = vmatprep.subr.mxu0 0.0
    %1738 = vmatpush1.msra.mxu0 0.0
    %1739 = vmatprep.subr.mxu0 0.0
    %1740 = vmatpush1.msra.mxu0 0.0
    %1741 = vmatprep.subr.mxu0 0.0
    %1742 = vmatpush1.msra.mxu0 0.0
    %1743 = vmatprep.subr.mxu0 0.0
    %1744 = vmatpush1.msra.mxu0 0.0
    %1745 = vmatprep.subr.mxu0 0.0
    %1746 = vmatpush1.msra.mxu0 0.0
    %1747 = vmatprep.subr.mxu0 0.0
    %1748 = vmatpush1.msra.mxu0 0.0
    %1749 = vmatprep.mubr.f32.mxu0 0.0
    %1750 = vmatmul.mubr.f32.gmra.mrb[0].mxu0 %v1680
    %v1751 = vpop.f32.mrb[0].mxu0
    %v1752 = vadd.f32 %v1677, %v1751
    %v1753 = vpop.f32.mrb[0].mxu0
    %1754 = vmatprep.mubr.f32.mxu0 0.0
    %1755 = vmatmul.mubr.f32.gmra.mrb[0].mxu0 %v1683
    %v1756 = vpop.f32.mrb[0].mxu0
    %v1757 = vadd.f32 %v1677, %v1756
    %v1758 = vpop.f32.mrb[0].mxu0
    %1759 = vdwg.mxu0
    %v1760 = vld [vmem:[#allocation2 + $0x18] sm:$0xff]
    %v1761 = vld [vmem:[#allocation2 + $0x48] sm:$0xff]
    %v1762 = vld [vmem:[#allocation2 + $0x78] sm:$0xff]
    %v1763 = vld [vmem:[#allocation2 + $0xa8] sm:$0xff]
    %v1764 = vld [vmem:[%s6 + $0x3] sm:$0x1]
    %v1766 = vlaneseq
    %v1767 = vshrl.u32 %v1766, 7
    %v1768 = vsub.s32 0, %v1767
    %v1769 = vrot.slane %v1764, %v1768
    %v1772 = vsel %vm53, %v43, 0
    %v1775 = vsel %vm53, %v44, 0
    %1777 = vmatprep.subr.mxu0 0.0
    %1778 = vmatpush1.msra.mxu0 %v1760
    %1779 = vmatprep.subr.mxu0 0.0
    %1780 = vmatpush1.msra.mxu0 %v1761
    %1781 = vmatprep.subr.mxu0 0.0
    %1782 = vmatpush1.msra.mxu0 %v1762
    %1783 = vmatprep.subr.mxu0 0.0
    %1784 = vmatpush1.msra.mxu0 %v1763
    %1785 = vmatprep.subr.mxu0 0.0
    %1786 = vmatpush1.msra.mxu0 0.0
    %1787 = vmatprep.subr.mxu0 0.0
    %1788 = vmatpush1.msra.mxu0 0.0
    %1789 = vmatprep.subr.mxu0 0.0
    %1790 = vmatpush1.msra.mxu0 0.0
    %1791 = vmatprep.subr.mxu0 0.0
    %1792 = vmatpush1.msra.mxu0 0.0
    %1793 = vmatprep.subr.mxu0 0.0
    %1794 = vmatpush1.msra.mxu0 0.0
    %1795 = vmatprep.subr.mxu0 0.0
    %1796 = vmatpush1.msra.mxu0 0.0
    %1797 = vmatprep.subr.mxu0 0.0
    %1798 = vmatpush1.msra.mxu0 0.0
    %1799 = vmatprep.subr.mxu0 0.0
    %1800 = vmatpush1.msra.mxu0 0.0
    %1801 = vmatprep.subr.mxu0 0.0
    %1802 = vmatpush1.msra.mxu0 0.0
    %1803 = vmatprep.subr.mxu0 0.0
    %1804 = vmatpush1.msra.mxu0 0.0
    %1805 = vmatprep.subr.mxu0 0.0
    %1806 = vmatpush1.msra.mxu0 0.0
    %1807 = vmatprep.subr.mxu0 0.0
    %1808 = vmatpush1.msra.mxu0 0.0
    %1809 = vmatprep.subr.mxu0 0.0
    %1810 = vmatpush1.msra.mxu0 0.0
    %1811 = vmatprep.subr.mxu0 0.0
    %1812 = vmatpush1.msra.mxu0 0.0
    %1813 = vmatprep.subr.mxu0 0.0
    %1814 = vmatpush1.msra.mxu0 0.0
    %1815 = vmatprep.subr.mxu0 0.0
    %1816 = vmatpush1.msra.mxu0 0.0
    %1817 = vmatprep.subr.mxu0 0.0
    %1818 = vmatpush1.msra.mxu0 0.0
    %1819 = vmatprep.subr.mxu0 0.0
    %1820 = vmatpush1.msra.mxu0 0.0
    %1821 = vmatprep.subr.mxu0 0.0
    %1822 = vmatpush1.msra.mxu0 0.0
    %1823 = vmatprep.subr.mxu0 0.0
    %1824 = vmatpush1.msra.mxu0 0.0
    %1825 = vmatprep.subr.mxu0 0.0
    %1826 = vmatpush1.msra.mxu0 0.0
    %1827 = vmatprep.subr.mxu0 0.0
    %1828 = vmatpush1.msra.mxu0 0.0
    %1829 = vmatprep.subr.mxu0 0.0
    %1830 = vmatpush1.msra.mxu0 0.0
    %1831 = vmatprep.subr.mxu0 0.0
    %1832 = vmatpush1.msra.mxu0 0.0
    %1833 = vmatprep.subr.mxu0 0.0
    %1834 = vmatpush1.msra.mxu0 0.0
    %1835 = vmatprep.subr.mxu0 0.0
    %1836 = vmatpush1.msra.mxu0 0.0
    %1837 = vmatprep.subr.mxu0 0.0
    %1838 = vmatpush1.msra.mxu0 0.0
    %1839 = vmatprep.subr.mxu0 0.0
    %1840 = vmatpush1.msra.mxu0 0.0
    %1841 = vmatprep.mubr.f32.mxu0 0.0
    %1842 = vmatmul.mubr.f32.gmra.mrb[0].mxu0 %v1772
    %v1843 = vpop.f32.mrb[0].mxu0
    %v1844 = vadd.f32 %v1769, %v1843
    %v1845 = vpop.f32.mrb[0].mxu0
    %1846 = vmatprep.mubr.f32.mxu0 0.0
    %1847 = vmatmul.mubr.f32.gmra.mrb[0].mxu0 %v1775
    %v1848 = vpop.f32.mrb[0].mxu0
    %v1849 = vadd.f32 %v1769, %v1848
    %v1850 = vpop.f32.mrb[0].mxu0
    %1851 = vdwg.mxu0
    %1854 = vrot.lane.b32.xlu0 %v1752, 120
    %v1855 = vpop.permute.xlu0 %1854
    %1856 = vrot.lane.b32.xlu0 %v1757, 120
    %v1857 = vpop.permute.xlu0 %1856
    %1858 = vrot.lane.b32.xlu0 %v1752, 112
    %v1859 = vpop.permute.xlu0 %1858
    %1860 = vrot.lane.b32.xlu0 %v1757, 112
    %v1861 = vpop.permute.xlu0 %1860
    %1862 = vrot.lane.b32.xlu0 %v1752, 104
    %v1863 = vpop.permute.xlu0 %1862
    %1864 = vrot.lane.b32.xlu0 %v1757, 104
    %v1865 = vpop.permute.xlu0 %1864
    %1868 = vrot.lane.b32.xlu0 %v1844, 120
    %v1869 = vpop.permute.xlu0 %1868
    %1870 = vrot.lane.b32.xlu0 %v1849, 120
    %v1871 = vpop.permute.xlu0 %1870
    %1874 = vrot.lane.b32.xlu0 %v1844, 112
    %v1875 = vpop.permute.xlu0 %1874
    %1876 = vrot.lane.b32.xlu0 %v1849, 112
    %v1877 = vpop.permute.xlu0 %1876
    %1880 = vrot.lane.b32.xlu0 %v1844, 104
    %v1881 = vpop.permute.xlu0 %1880
    %1882 = vrot.lane.b32.xlu0 %v1849, 104
    %v1883 = vpop.permute.xlu0 %1882
    %1886 = vrot.lane.b32.xlu0 %v1844, 96
    %v1887 = vpop.permute.xlu0 %1886
    %v1888 = vsel %vm191, %v1752, 0
    %v1890 = vsel %vm191, %v1887, 0
    %1892 = vmatprep.subr.mxu0 0.0
    %1893 = vmatpush1.xpose.msra.mxu0 %v1890
    %1894 = vmatprep.subr.mxu0 0.0
    %1895 = vmatpush1.xpose.msra.mxu0 0.0
    %1896 = vmatprep.subr.mxu0 0.0
    %1897 = vmatpush1.xpose.msra.mxu0 0.0
    %1898 = vmatprep.subr.mxu0 0.0
    %1899 = vmatpush1.xpose.msra.mxu0 0.0
    %1900 = vmatprep.subr.mxu0 0.0
    %1901 = vmatpush1.xpose.msra.mxu0 0.0
    %1902 = vmatprep.subr.mxu0 0.0
    %1903 = vmatpush1.xpose.msra.mxu0 0.0
    %1904 = vmatprep.subr.mxu0 0.0
    %1905 = vmatpush1.xpose.msra.mxu0 0.0
    %1906 = vmatprep.subr.mxu0 0.0
    %1907 = vmatpush1.xpose.msra.mxu0 0.0
    %1908 = vmatprep.subr.mxu0 0.0
    %1909 = vmatpush1.xpose.msra.mxu0 0.0
    %1910 = vmatprep.subr.mxu0 0.0
    %1911 = vmatpush1.xpose.msra.mxu0 0.0
    %1912 = vmatprep.subr.mxu0 0.0
    %1913 = vmatpush1.xpose.msra.mxu0 0.0
    %1914 = vmatprep.subr.mxu0 0.0
    %1915 = vmatpush1.xpose.msra.mxu0 0.0
    %1916 = vmatprep.subr.mxu0 0.0
    %1917 = vmatpush1.xpose.msra.mxu0 0.0
    %1918 = vmatprep.subr.mxu0 0.0
    %1919 = vmatpush1.xpose.msra.mxu0 0.0
    %1920 = vmatprep.subr.mxu0 0.0
    %1921 = vmatpush1.xpose.msra.mxu0 0.0
    %1922 = vmatprep.subr.mxu0 0.0
    %1923 = vmatpush1.xpose.msra.mxu0 0.0
    %1924 = vmatprep.subr.mxu0 0.0
    %1925 = vmatpush1.xpose.msra.mxu0 0.0
    %1926 = vmatprep.subr.mxu0 0.0
    %1927 = vmatpush1.xpose.msra.mxu0 0.0
    %1928 = vmatprep.subr.mxu0 0.0
    %1929 = vmatpush1.xpose.msra.mxu0 0.0
    %1930 = vmatprep.subr.mxu0 0.0
    %1931 = vmatpush1.xpose.msra.mxu0 0.0
    %1932 = vmatprep.subr.mxu0 0.0
    %1933 = vmatpush1.xpose.msra.mxu0 0.0
    %1934 = vmatprep.subr.mxu0 0.0
    %1935 = vmatpush1.xpose.msra.mxu0 0.0
    %1936 = vmatprep.subr.mxu0 0.0
    %1937 = vmatpush1.xpose.msra.mxu0 0.0
    %1938 = vmatprep.subr.mxu0 0.0
    %1939 = vmatpush1.xpose.msra.mxu0 0.0
    %1940 = vmatprep.subr.mxu0 0.0
    %1941 = vmatpush1.xpose.msra.mxu0 0.0
    %1942 = vmatprep.subr.mxu0 0.0
    %1943 = vmatpush1.xpose.msra.mxu0 0.0
    %1944 = vmatprep.subr.mxu0 0.0
    %1945 = vmatpush1.xpose.msra.mxu0 0.0
    %1946 = vmatprep.subr.mxu0 0.0
    %1947 = vmatpush1.xpose.msra.mxu0 0.0
    %1948 = vmatprep.subr.mxu0 0.0
    %1949 = vmatpush1.xpose.msra.mxu0 0.0
    %1950 = vmatprep.subr.mxu0 0.0
    %1951 = vmatpush1.xpose.msra.mxu0 0.0
    %1952 = vmatprep.subr.mxu0 0.0
    %1953 = vmatpush1.xpose.msra.mxu0 0.0
    %1954 = vmatprep.subr.mxu0 0.0
    %1955 = vmatpush1.xpose.msra.mxu0 0.0
    %1956 = vmatprep.mubr.f32.mxu0 0.0
    %1957 = vmatmul.mubr.f32.gmra.mrb[0].mxu0 %v1888
    %v1958 = vpop.f32.mrb[0].mxu0
    %v1959 = vadd.f32 0.0, %v1958
    %v1960 = vpop.f32.mrb[0].mxu0
    %1961 = vdwg.mxu0
    %1962 = vrot.lane.b32.xlu0 %v1849, 96
    %v1963 = vpop.permute.xlu0 %1962
    %v1964 = vsel %vm191, %v1757, 0
    %v1966 = vsel %vm191, %v1963, 0
    %1968 = vmatprep.subr.mxu0 0.0
    %1969 = vmatpush1.xpose.msra.mxu0 %v1966
    %1970 = vmatprep.subr.mxu0 0.0
    %1971 = vmatpush1.xpose.msra.mxu0 0.0
    %1972 = vmatprep.subr.mxu0 0.0
    %1973 = vmatpush1.xpose.msra.mxu0 0.0
    %1974 = vmatprep.subr.mxu0 0.0
    %1975 = vmatpush1.xpose.msra.mxu0 0.0
    %1976 = vmatprep.subr.mxu0 0.0
    %1977 = vmatpush1.xpose.msra.mxu0 0.0
    %1978 = vmatprep.subr.mxu0 0.0
    %1979 = vmatpush1.xpose.msra.mxu0 0.0
    %1980 = vmatprep.subr.mxu0 0.0
    %1981 = vmatpush1.xpose.msra.mxu0 0.0
    %1982 = vmatprep.subr.mxu0 0.0
    %1983 = vmatpush1.xpose.msra.mxu0 0.0
    %1984 = vmatprep.subr.mxu0 0.0
    %1985 = vmatpush1.xpose.msra.mxu0 0.0
    %1986 = vmatprep.subr.mxu0 0.0
    %1987 = vmatpush1.xpose.msra.mxu0 0.0
    %1988 = vmatprep.subr.mxu0 0.0
    %1989 = vmatpush1.xpose.msra.mxu0 0.0
    %1990 = vmatprep.subr.mxu0 0.0
    %1991 = vmatpush1.xpose.msra.mxu0 0.0
    %1992 = vmatprep.subr.mxu0 0.0
    %1993 = vmatpush1.xpose.msra.mxu0 0.0
    %1994 = vmatprep.subr.mxu0 0.0
    %1995 = vmatpush1.xpose.msra.mxu0 0.0
    %1996 = vmatprep.subr.mxu0 0.0
    %1997 = vmatpush1.xpose.msra.mxu0 0.0
    %1998 = vmatprep.subr.mxu0 0.0
    %1999 = vmatpush1.xpose.msra.mxu0 0.0
    %2000 = vmatprep.subr.mxu0 0.0
    %2001 = vmatpush1.xpose.msra.mxu0 0.0
    %2002 = vmatprep.subr.mxu0 0.0
    %2003 = vmatpush1.xpose.msra.mxu0 0.0
    %2004 = vmatprep.subr.mxu0 0.0
    %2005 = vmatpush1.xpose.msra.mxu0 0.0
    %2006 = vmatprep.subr.mxu0 0.0
    %2007 = vmatpush1.xpose.msra.mxu0 0.0
    %2008 = vmatprep.subr.mxu0 0.0
    %2009 = vmatpush1.xpose.msra.mxu0 0.0
    %2010 = vmatprep.subr.mxu0 0.0
    %2011 = vmatpush1.xpose.msra.mxu0 0.0
    %2012 = vmatprep.subr.mxu0 0.0
    %2013 = vmatpush1.xpose.msra.mxu0 0.0
    %2014 = vmatprep.subr.mxu0 0.0
    %2015 = vmatpush1.xpose.msra.mxu0 0.0
    %2016 = vmatprep.subr.mxu0 0.0
    %2017 = vmatpush1.xpose.msra.mxu0 0.0
    %2018 = vmatprep.subr.mxu0 0.0
    %2019 = vmatpush1.xpose.msra.mxu0 0.0
    %2020 = vmatprep.subr.mxu0 0.0
    %2021 = vmatpush1.xpose.msra.mxu0 0.0
    %2022 = vmatprep.subr.mxu0 0.0
    %2023 = vmatpush1.xpose.msra.mxu0 0.0
    %2024 = vmatprep.subr.mxu0 0.0
    %2025 = vmatpush1.xpose.msra.mxu0 0.0
    %2026 = vmatprep.subr.mxu0 0.0
    %2027 = vmatpush1.xpose.msra.mxu0 0.0
    %2028 = vmatprep.subr.mxu0 0.0
    %2029 = vmatpush1.xpose.msra.mxu0 0.0
    %2030 = vmatprep.subr.mxu0 0.0
    %2031 = vmatpush1.xpose.msra.mxu0 0.0
    %2032 = vmatprep.mubr.f32.mxu0 0.0
    %2033 = vmatmul.mubr.f32.gmra.mrb[0].mxu0 %v1964
    %v2034 = vpop.f32.mrb[0].mxu0
    %v2035 = vadd.f32 0.0, %v2034
    %v2036 = vpop.f32.mrb[0].mxu0
    %2037 = vdwg.mxu0
    %2038 = vrot.lane.b32.xlu0 %v1869, 96
    %v2039 = vpop.permute.xlu0 %2038
    %v2040 = vsel %vm191, %v1855, 0
    %v2042 = vsel %vm191, %v2039, 0
    %2044 = vmatprep.subr.mxu0 0.0
    %2045 = vmatpush1.xpose.msra.mxu0 %v2042
    %2046 = vmatprep.subr.mxu0 0.0
    %2047 = vmatpush1.xpose.msra.mxu0 0.0
    %2048 = vmatprep.subr.mxu0 0.0
    %2049 = vmatpush1.xpose.msra.mxu0 0.0
    %2050 = vmatprep.subr.mxu0 0.0
    %2051 = vmatpush1.xpose.msra.mxu0 0.0
    %2052 = vmatprep.subr.mxu0 0.0
    %2053 = vmatpush1.xpose.msra.mxu0 0.0
    %2054 = vmatprep.subr.mxu0 0.0
    %2055 = vmatpush1.xpose.msra.mxu0 0.0
    %2056 = vmatprep.subr.mxu0 0.0
    %2057 = vmatpush1.xpose.msra.mxu0 0.0
    %2058 = vmatprep.subr.mxu0 0.0
    %2059 = vmatpush1.xpose.msra.mxu0 0.0
    %2060 = vmatprep.subr.mxu0 0.0
    %2061 = vmatpush1.xpose.msra.mxu0 0.0
    %2062 = vmatprep.subr.mxu0 0.0
    %2063 = vmatpush1.xpose.msra.mxu0 0.0
    %2064 = vmatprep.subr.mxu0 0.0
    %2065 = vmatpush1.xpose.msra.mxu0 0.0
    %2066 = vmatprep.subr.mxu0 0.0
    %2067 = vmatpush1.xpose.msra.mxu0 0.0
    %2068 = vmatprep.subr.mxu0 0.0
    %2069 = vmatpush1.xpose.msra.mxu0 0.0
    %2070 = vmatprep.subr.mxu0 0.0
    %2071 = vmatpush1.xpose.msra.mxu0 0.0
    %2072 = vmatprep.subr.mxu0 0.0
    %2073 = vmatpush1.xpose.msra.mxu0 0.0
    %2074 = vmatprep.subr.mxu0 0.0
    %2075 = vmatpush1.xpose.msra.mxu0 0.0
    %2076 = vmatprep.subr.mxu0 0.0
    %2077 = vmatpush1.xpose.msra.mxu0 0.0
    %2078 = vmatprep.subr.mxu0 0.0
    %2079 = vmatpush1.xpose.msra.mxu0 0.0
    %2080 = vmatprep.subr.mxu0 0.0
    %2081 = vmatpush1.xpose.msra.mxu0 0.0
    %2082 = vmatprep.subr.mxu0 0.0
    %2083 = vmatpush1.xpose.msra.mxu0 0.0
    %2084 = vmatprep.subr.mxu0 0.0
    %2085 = vmatpush1.xpose.msra.mxu0 0.0
    %2086 = vmatprep.subr.mxu0 0.0
    %2087 = vmatpush1.xpose.msra.mxu0 0.0
    %2088 = vmatprep.subr.mxu0 0.0
    %2089 = vmatpush1.xpose.msra.mxu0 0.0
    %2090 = vmatprep.subr.mxu0 0.0
    %2091 = vmatpush1.xpose.msra.mxu0 0.0
    %2092 = vmatprep.subr.mxu0 0.0
    %2093 = vmatpush1.xpose.msra.mxu0 0.0
    %2094 = vmatprep.subr.mxu0 0.0
    %2095 = vmatpush1.xpose.msra.mxu0 0.0
    %2096 = vmatprep.subr.mxu0 0.0
    %2097 = vmatpush1.xpose.msra.mxu0 0.0
    %2098 = vmatprep.subr.mxu0 0.0
    %2099 = vmatpush1.xpose.msra.mxu0 0.0
    %2100 = vmatprep.subr.mxu0 0.0
    %2101 = vmatpush1.xpose.msra.mxu0 0.0
    %2102 = vmatprep.subr.mxu0 0.0
    %2103 = vmatpush1.xpose.msra.mxu0 0.0
    %2104 = vmatprep.subr.mxu0 0.0
    %2105 = vmatpush1.xpose.msra.mxu0 0.0
    %2106 = vmatprep.subr.mxu0 0.0
    %2107 = vmatpush1.xpose.msra.mxu0 0.0
    %2108 = vmatprep.mubr.f32.mxu0 0.0
    %2109 = vmatmul.mubr.f32.gmra.mrb[0].mxu0 %v2040
    %v2110 = vpop.f32.mrb[0].mxu0
    %v2111 = vadd.f32 0.0, %v2110
    %v2112 = vpop.f32.mrb[0].mxu0
    %2113 = vdwg.mxu0
    %2114 = vrot.lane.b32.xlu0 %v1871, 96
    %v2115 = vpop.permute.xlu0 %2114
    %v2116 = vsel %vm191, %v1857, 0
    %v2118 = vsel %vm191, %v2115, 0
    %2120 = vmatprep.subr.mxu0 0.0
    %2121 = vmatpush1.xpose.msra.mxu0 %v2118
    %2122 = vmatprep.subr.mxu0 0.0
    %2123 = vmatpush1.xpose.msra.mxu0 0.0
    %2124 = vmatprep.subr.mxu0 0.0
    %2125 = vmatpush1.xpose.msra.mxu0 0.0
    %2126 = vmatprep.subr.mxu0 0.0
    %2127 = vmatpush1.xpose.msra.mxu0 0.0
    %2128 = vmatprep.subr.mxu0 0.0
    %2129 = vmatpush1.xpose.msra.mxu0 0.0
    %2130 = vmatprep.subr.mxu0 0.0
    %2131 = vmatpush1.xpose.msra.mxu0 0.0
    %2132 = vmatprep.subr.mxu0 0.0
    %2133 = vmatpush1.xpose.msra.mxu0 0.0
    %2134 = vmatprep.subr.mxu0 0.0
    %2135 = vmatpush1.xpose.msra.mxu0 0.0
    %2136 = vmatprep.subr.mxu0 0.0
    %2137 = vmatpush1.xpose.msra.mxu0 0.0
    %2138 = vmatprep.subr.mxu0 0.0
    %2139 = vmatpush1.xpose.msra.mxu0 0.0
    %2140 = vmatprep.subr.mxu0 0.0
    %2141 = vmatpush1.xpose.msra.mxu0 0.0
    %2142 = vmatprep.subr.mxu0 0.0
    %2143 = vmatpush1.xpose.msra.mxu0 0.0
    %2144 = vmatprep.subr.mxu0 0.0
    %2145 = vmatpush1.xpose.msra.mxu0 0.0
    %2146 = vmatprep.subr.mxu0 0.0
    %2147 = vmatpush1.xpose.msra.mxu0 0.0
    %2148 = vmatprep.subr.mxu0 0.0
    %2149 = vmatpush1.xpose.msra.mxu0 0.0
    %2150 = vmatprep.subr.mxu0 0.0
    %2151 = vmatpush1.xpose.msra.mxu0 0.0
    %2152 = vmatprep.subr.mxu0 0.0
    %2153 = vmatpush1.xpose.msra.mxu0 0.0
    %2154 = vmatprep.subr.mxu0 0.0
    %2155 = vmatpush1.xpose.msra.mxu0 0.0
    %2156 = vmatprep.subr.mxu0 0.0
    %2157 = vmatpush1.xpose.msra.mxu0 0.0
    %2158 = vmatprep.subr.mxu0 0.0
    %2159 = vmatpush1.xpose.msra.mxu0 0.0
    %2160 = vmatprep.subr.mxu0 0.0
    %2161 = vmatpush1.xpose.msra.mxu0 0.0
    %2162 = vmatprep.subr.mxu0 0.0
    %2163 = vmatpush1.xpose.msra.mxu0 0.0
    %2164 = vmatprep.subr.mxu0 0.0
    %2165 = vmatpush1.xpose.msra.mxu0 0.0
    %2166 = vmatprep.subr.mxu0 0.0
    %2167 = vmatpush1.xpose.msra.mxu0 0.0
    %2168 = vmatprep.subr.mxu0 0.0
    %2169 = vmatpush1.xpose.msra.mxu0 0.0
    %2170 = vmatprep.subr.mxu0 0.0
    %2171 = vmatpush1.xpose.msra.mxu0 0.0
    %2172 = vmatprep.subr.mxu0 0.0
    %2173 = vmatpush1.xpose.msra.mxu0 0.0
    %2174 = vmatprep.subr.mxu0 0.0
    %2175 = vmatpush1.xpose.msra.mxu0 0.0
    %2176 = vmatprep.subr.mxu0 0.0
    %2177 = vmatpush1.xpose.msra.mxu0 0.0
    %2178 = vmatprep.subr.mxu0 0.0
    %2179 = vmatpush1.xpose.msra.mxu0 0.0
    %2180 = vmatprep.subr.mxu0 0.0
    %2181 = vmatpush1.xpose.msra.mxu0 0.0
    %2182 = vmatprep.subr.mxu0 0.0
    %2183 = vmatpush1.xpose.msra.mxu0 0.0
    %2184 = vmatprep.mubr.f32.mxu0 0.0
    %2185 = vmatmul.mubr.f32.gmra.mrb[0].mxu0 %v2116
    %v2186 = vpop.f32.mrb[0].mxu0
    %v2187 = vadd.f32 0.0, %v2186
    %v2188 = vpop.f32.mrb[0].mxu0
    %2189 = vdwg.mxu0
    %2190 = vrot.lane.b32.xlu0 %v1875, 96
    %v2191 = vpop.permute.xlu0 %2190
    %v2192 = vsel %vm191, %v1859, 0
    %v2194 = vsel %vm191, %v2191, 0
    %2196 = vmatprep.subr.mxu0 0.0
    %2197 = vmatpush1.xpose.msra.mxu0 %v2194
    %2198 = vmatprep.subr.mxu0 0.0
    %2199 = vmatpush1.xpose.msra.mxu0 0.0
    %2200 = vmatprep.subr.mxu0 0.0
    %2201 = vmatpush1.xpose.msra.mxu0 0.0
    %2202 = vmatprep.subr.mxu0 0.0
    %2203 = vmatpush1.xpose.msra.mxu0 0.0
    %2204 = vmatprep.subr.mxu0 0.0
    %2205 = vmatpush1.xpose.msra.mxu0 0.0
    %2206 = vmatprep.subr.mxu0 0.0
    %2207 = vmatpush1.xpose.msra.mxu0 0.0
    %2208 = vmatprep.subr.mxu0 0.0
    %2209 = vmatpush1.xpose.msra.mxu0 0.0
    %2210 = vmatprep.subr.mxu0 0.0
    %2211 = vmatpush1.xpose.msra.mxu0 0.0
    %2212 = vmatprep.subr.mxu0 0.0
    %2213 = vmatpush1.xpose.msra.mxu0 0.0
    %2214 = vmatprep.subr.mxu0 0.0
    %2215 = vmatpush1.xpose.msra.mxu0 0.0
    %2216 = vmatprep.subr.mxu0 0.0
    %2217 = vmatpush1.xpose.msra.mxu0 0.0
    %2218 = vmatprep.subr.mxu0 0.0
    %2219 = vmatpush1.xpose.msra.mxu0 0.0
    %2220 = vmatprep.subr.mxu0 0.0
    %2221 = vmatpush1.xpose.msra.mxu0 0.0
    %2222 = vmatprep.subr.mxu0 0.0
    %2223 = vmatpush1.xpose.msra.mxu0 0.0
    %2224 = vmatprep.subr.mxu0 0.0
    %2225 = vmatpush1.xpose.msra.mxu0 0.0
    %2226 = vmatprep.subr.mxu0 0.0
    %2227 = vmatpush1.xpose.msra.mxu0 0.0
    %2228 = vmatprep.subr.mxu0 0.0
    %2229 = vmatpush1.xpose.msra.mxu0 0.0
    %2230 = vmatprep.subr.mxu0 0.0
    %2231 = vmatpush1.xpose.msra.mxu0 0.0
    %2232 = vmatprep.subr.mxu0 0.0
    %2233 = vmatpush1.xpose.msra.mxu0 0.0
    %2234 = vmatprep.subr.mxu0 0.0
    %2235 = vmatpush1.xpose.msra.mxu0 0.0
    %2236 = vmatprep.subr.mxu0 0.0
    %2237 = vmatpush1.xpose.msra.mxu0 0.0
    %2238 = vmatprep.subr.mxu0 0.0
    %2239 = vmatpush1.xpose.msra.mxu0 0.0
    %2240 = vmatprep.subr.mxu0 0.0
    %2241 = vmatpush1.xpose.msra.mxu0 0.0
    %2242 = vmatprep.subr.mxu0 0.0
    %2243 = vmatpush1.xpose.msra.mxu0 0.0
    %2244 = vmatprep.subr.mxu0 0.0
    %2245 = vmatpush1.xpose.msra.mxu0 0.0
    %2246 = vmatprep.subr.mxu0 0.0
    %2247 = vmatpush1.xpose.msra.mxu0 0.0
    %2248 = vmatprep.subr.mxu0 0.0
    %2249 = vmatpush1.xpose.msra.mxu0 0.0
    %2250 = vmatprep.subr.mxu0 0.0
    %2251 = vmatpush1.xpose.msra.mxu0 0.0
    %2252 = vmatprep.subr.mxu0 0.0
    %2253 = vmatpush1.xpose.msra.mxu0 0.0
    %2254 = vmatprep.subr.mxu0 0.0
    %2255 = vmatpush1.xpose.msra.mxu0 0.0
    %2256 = vmatprep.subr.mxu0 0.0
    %2257 = vmatpush1.xpose.msra.mxu0 0.0
    %2258 = vmatprep.subr.mxu0 0.0
    %2259 = vmatpush1.xpose.msra.mxu0 0.0
    %2260 = vmatprep.mubr.f32.mxu0 0.0
    %2261 = vmatmul.mubr.f32.gmra.mrb[0].mxu0 %v2192
    %v2262 = vpop.f32.mrb[0].mxu0
    %v2263 = vadd.f32 0.0, %v2262
    %v2264 = vpop.f32.mrb[0].mxu0
    %2265 = vdwg.mxu0
    %2266 = vrot.lane.b32.xlu0 %v1877, 96
    %v2267 = vpop.permute.xlu0 %2266
    %v2268 = vsel %vm191, %v1861, 0
    %v2270 = vsel %vm191, %v2267, 0
    %2272 = vmatprep.subr.mxu0 0.0
    %2273 = vmatpush1.xpose.msra.mxu0 %v2270
    %2274 = vmatprep.subr.mxu0 0.0
    %2275 = vmatpush1.xpose.msra.mxu0 0.0
    %2276 = vmatprep.subr.mxu0 0.0
    %2277 = vmatpush1.xpose.msra.mxu0 0.0
    %2278 = vmatprep.subr.mxu0 0.0
    %2279 = vmatpush1.xpose.msra.mxu0 0.0
    %2280 = vmatprep.subr.mxu0 0.0
    %2281 = vmatpush1.xpose.msra.mxu0 0.0
    %2282 = vmatprep.subr.mxu0 0.0
    %2283 = vmatpush1.xpose.msra.mxu0 0.0
    %2284 = vmatprep.subr.mxu0 0.0
    %2285 = vmatpush1.xpose.msra.mxu0 0.0
    %2286 = vmatprep.subr.mxu0 0.0
    %2287 = vmatpush1.xpose.msra.mxu0 0.0
    %2288 = vmatprep.subr.mxu0 0.0
    %2289 = vmatpush1.xpose.msra.mxu0 0.0
    %2290 = vmatprep.subr.mxu0 0.0
    %2291 = vmatpush1.xpose.msra.mxu0 0.0
    %2292 = vmatprep.subr.mxu0 0.0
    %2293 = vmatpush1.xpose.msra.mxu0 0.0
    %2294 = vmatprep.subr.mxu0 0.0
    %2295 = vmatpush1.xpose.msra.mxu0 0.0
    %2296 = vmatprep.subr.mxu0 0.0
    %2297 = vmatpush1.xpose.msra.mxu0 0.0
    %2298 = vmatprep.subr.mxu0 0.0
    %2299 = vmatpush1.xpose.msra.mxu0 0.0
    %2300 = vmatprep.subr.mxu0 0.0
    %2301 = vmatpush1.xpose.msra.mxu0 0.0
    %2302 = vmatprep.subr.mxu0 0.0
    %2303 = vmatpush1.xpose.msra.mxu0 0.0
    %2304 = vmatprep.subr.mxu0 0.0
    %2305 = vmatpush1.xpose.msra.mxu0 0.0
    %2306 = vmatprep.subr.mxu0 0.0
    %2307 = vmatpush1.xpose.msra.mxu0 0.0
    %2308 = vmatprep.subr.mxu0 0.0
    %2309 = vmatpush1.xpose.msra.mxu0 0.0
    %2310 = vmatprep.subr.mxu0 0.0
    %2311 = vmatpush1.xpose.msra.mxu0 0.0
    %2312 = vmatprep.subr.mxu0 0.0
    %2313 = vmatpush1.xpose.msra.mxu0 0.0
    %2314 = vmatprep.subr.mxu0 0.0
    %2315 = vmatpush1.xpose.msra.mxu0 0.0
    %2316 = vmatprep.subr.mxu0 0.0
    %2317 = vmatpush1.xpose.msra.mxu0 0.0
    %2318 = vmatprep.subr.mxu0 0.0
    %2319 = vmatpush1.xpose.msra.mxu0 0.0
    %2320 = vmatprep.subr.mxu0 0.0
    %2321 = vmatpush1.xpose.msra.mxu0 0.0
    %2322 = vmatprep.subr.mxu0 0.0
    %2323 = vmatpush1.xpose.msra.mxu0 0.0
    %2324 = vmatprep.subr.mxu0 0.0
    %2325 = vmatpush1.xpose.msra.mxu0 0.0
    %2326 = vmatprep.subr.mxu0 0.0
    %2327 = vmatpush1.xpose.msra.mxu0 0.0
    %2328 = vmatprep.subr.mxu0 0.0
    %2329 = vmatpush1.xpose.msra.mxu0 0.0
    %2330 = vmatprep.subr.mxu0 0.0
    %2331 = vmatpush1.xpose.msra.mxu0 0.0
    %2332 = vmatprep.subr.mxu0 0.0
    %2333 = vmatpush1.xpose.msra.mxu0 0.0
    %2334 = vmatprep.subr.mxu0 0.0
    %2335 = vmatpush1.xpose.msra.mxu0 0.0
    %2336 = vmatprep.mubr.f32.mxu0 0.0
    %2337 = vmatmul.mubr.f32.gmra.mrb[0].mxu0 %v2268
    %v2338 = vpop.f32.mrb[0].mxu0
    %v2339 = vadd.f32 0.0, %v2338
    %v2340 = vpop.f32.mrb[0].mxu0
    %2341 = vdwg.mxu0
    %2342 = vrot.lane.b32.xlu0 %v1881, 96
    %v2343 = vpop.permute.xlu0 %2342
    %v2344 = vsel %vm191, %v1863, 0
    %v2346 = vsel %vm191, %v2343, 0
    %2348 = vmatprep.subr.mxu0 0.0
    %2349 = vmatpush1.xpose.msra.mxu0 %v2346
    %2350 = vmatprep.subr.mxu0 0.0
    %2351 = vmatpush1.xpose.msra.mxu0 0.0
    %2352 = vmatprep.subr.mxu0 0.0
    %2353 = vmatpush1.xpose.msra.mxu0 0.0
    %2354 = vmatprep.subr.mxu0 0.0
    %2355 = vmatpush1.xpose.msra.mxu0 0.0
    %2356 = vmatprep.subr.mxu0 0.0
    %2357 = vmatpush1.xpose.msra.mxu0 0.0
    %2358 = vmatprep.subr.mxu0 0.0
    %2359 = vmatpush1.xpose.msra.mxu0 0.0
    %2360 = vmatprep.subr.mxu0 0.0
    %2361 = vmatpush1.xpose.msra.mxu0 0.0
    %2362 = vmatprep.subr.mxu0 0.0
    %2363 = vmatpush1.xpose.msra.mxu0 0.0
    %2364 = vmatprep.subr.mxu0 0.0
    %2365 = vmatpush1.xpose.msra.mxu0 0.0
    %2366 = vmatprep.subr.mxu0 0.0
    %2367 = vmatpush1.xpose.msra.mxu0 0.0
    %2368 = vmatprep.subr.mxu0 0.0
    %2369 = vmatpush1.xpose.msra.mxu0 0.0
    %2370 = vmatprep.subr.mxu0 0.0
    %2371 = vmatpush1.xpose.msra.mxu0 0.0
    %2372 = vmatprep.subr.mxu0 0.0
    %2373 = vmatpush1.xpose.msra.mxu0 0.0
    %2374 = vmatprep.subr.mxu0 0.0
    %2375 = vmatpush1.xpose.msra.mxu0 0.0
    %2376 = vmatprep.subr.mxu0 0.0
    %2377 = vmatpush1.xpose.msra.mxu0 0.0
    %2378 = vmatprep.subr.mxu0 0.0
    %2379 = vmatpush1.xpose.msra.mxu0 0.0
    %2380 = vmatprep.subr.mxu0 0.0
    %2381 = vmatpush1.xpose.msra.mxu0 0.0
    %2382 = vmatprep.subr.mxu0 0.0
    %2383 = vmatpush1.xpose.msra.mxu0 0.0
    %2384 = vmatprep.subr.mxu0 0.0
    %2385 = vmatpush1.xpose.msra.mxu0 0.0
    %2386 = vmatprep.subr.mxu0 0.0
    %2387 = vmatpush1.xpose.msra.mxu0 0.0
    %2388 = vmatprep.subr.mxu0 0.0
    %2389 = vmatpush1.xpose.msra.mxu0 0.0
    %2390 = vmatprep.subr.mxu0 0.0
    %2391 = vmatpush1.xpose.msra.mxu0 0.0
    %2392 = vmatprep.subr.mxu0 0.0
    %2393 = vmatpush1.xpose.msra.mxu0 0.0
    %2394 = vmatprep.subr.mxu0 0.0
    %2395 = vmatpush1.xpose.msra.mxu0 0.0
    %2396 = vmatprep.subr.mxu0 0.0
    %2397 = vmatpush1.xpose.msra.mxu0 0.0
    %2398 = vmatprep.subr.mxu0 0.0
    %2399 = vmatpush1.xpose.msra.mxu0 0.0
    %2400 = vmatprep.subr.mxu0 0.0
    %2401 = vmatpush1.xpose.msra.mxu0 0.0
    %2402 = vmatprep.subr.mxu0 0.0
    %2403 = vmatpush1.xpose.msra.mxu0 0.0
    %2404 = vmatprep.subr.mxu0 0.0
    %2405 = vmatpush1.xpose.msra.mxu0 0.0
    %2406 = vmatprep.subr.mxu0 0.0
    %2407 = vmatpush1.xpose.msra.mxu0 0.0
    %2408 = vmatprep.subr.mxu0 0.0
    %2409 = vmatpush1.xpose.msra.mxu0 0.0
    %2410 = vmatprep.subr.mxu0 0.0
    %2411 = vmatpush1.xpose.msra.mxu0 0.0
    %2412 = vmatprep.mubr.f32.mxu0 0.0
    %2413 = vmatmul.mubr.f32.gmra.mrb[0].mxu0 %v2344
    %v2414 = vpop.f32.mrb[0].mxu0
    %v2415 = vadd.f32 0.0, %v2414
    %v2416 = vpop.f32.mrb[0].mxu0
    %2417 = vdwg.mxu0
    %2418 = vrot.lane.b32.xlu0 %v1883, 96
    %v2419 = vpop.permute.xlu0 %2418
    %v2420 = vsel %vm191, %v1865, 0
    %v2422 = vsel %vm191, %v2419, 0
    %2424 = vmatprep.subr.mxu0 0.0
    %2425 = vmatpush1.xpose.msra.mxu0 %v2422
    %2426 = vmatprep.subr.mxu0 0.0
    %2427 = vmatpush1.xpose.msra.mxu0 0.0
    %2428 = vmatprep.subr.mxu0 0.0
    %2429 = vmatpush1.xpose.msra.mxu0 0.0
    %2430 = vmatprep.subr.mxu0 0.0
    %2431 = vmatpush1.xpose.msra.mxu0 0.0
    %2432 = vmatprep.subr.mxu0 0.0
    %2433 = vmatpush1.xpose.msra.mxu0 0.0
    %2434 = vmatprep.subr.mxu0 0.0
    %2435 = vmatpush1.xpose.msra.mxu0 0.0
    %2436 = vmatprep.subr.mxu0 0.0
    %2437 = vmatpush1.xpose.msra.mxu0 0.0
    %2438 = vmatprep.subr.mxu0 0.0
    %2439 = vmatpush1.xpose.msra.mxu0 0.0
    %2440 = vmatprep.subr.mxu0 0.0
    %2441 = vmatpush1.xpose.msra.mxu0 0.0
    %2442 = vmatprep.subr.mxu0 0.0
    %2443 = vmatpush1.xpose.msra.mxu0 0.0
    %2444 = vmatprep.subr.mxu0 0.0
    %2445 = vmatpush1.xpose.msra.mxu0 0.0
    %2446 = vmatprep.subr.mxu0 0.0
    %2447 = vmatpush1.xpose.msra.mxu0 0.0
    %2448 = vmatprep.subr.mxu0 0.0
    %2449 = vmatpush1.xpose.msra.mxu0 0.0
    %2450 = vmatprep.subr.mxu0 0.0
    %2451 = vmatpush1.xpose.msra.mxu0 0.0
    %2452 = vmatprep.subr.mxu0 0.0
    %2453 = vmatpush1.xpose.msra.mxu0 0.0
    %2454 = vmatprep.subr.mxu0 0.0
    %2455 = vmatpush1.xpose.msra.mxu0 0.0
    %2456 = vmatprep.subr.mxu0 0.0
    %2457 = vmatpush1.xpose.msra.mxu0 0.0
    %2458 = vmatprep.subr.mxu0 0.0
    %2459 = vmatpush1.xpose.msra.mxu0 0.0
    %2460 = vmatprep.subr.mxu0 0.0
    %2461 = vmatpush1.xpose.msra.mxu0 0.0
    %2462 = vmatprep.subr.mxu0 0.0
    %2463 = vmatpush1.xpose.msra.mxu0 0.0
    %2464 = vmatprep.subr.mxu0 0.0
    %2465 = vmatpush1.xpose.msra.mxu0 0.0
    %2466 = vmatprep.subr.mxu0 0.0
    %2467 = vmatpush1.xpose.msra.mxu0 0.0
    %2468 = vmatprep.subr.mxu0 0.0
    %2469 = vmatpush1.xpose.msra.mxu0 0.0
    %2470 = vmatprep.subr.mxu0 0.0
    %2471 = vmatpush1.xpose.msra.mxu0 0.0
    %2472 = vmatprep.subr.mxu0 0.0
    %2473 = vmatpush1.xpose.msra.mxu0 0.0
    %2474 = vmatprep.subr.mxu0 0.0
    %2475 = vmatpush1.xpose.msra.mxu0 0.0
    %2476 = vmatprep.subr.mxu0 0.0
    %2477 = vmatpush1.xpose.msra.mxu0 0.0
    %2478 = vmatprep.subr.mxu0 0.0
    %2479 = vmatpush1.xpose.msra.mxu0 0.0
    %2480 = vmatprep.subr.mxu0 0.0
    %2481 = vmatpush1.xpose.msra.mxu0 0.0
    %2482 = vmatprep.subr.mxu0 0.0
    %2483 = vmatpush1.xpose.msra.mxu0 0.0
    %2484 = vmatprep.subr.mxu0 0.0
    %2485 = vmatpush1.xpose.msra.mxu0 0.0
    %2486 = vmatprep.subr.mxu0 0.0
    %2487 = vmatpush1.xpose.msra.mxu0 0.0
    %2488 = vmatprep.mubr.f32.mxu0 0.0
    %2489 = vmatmul.mubr.f32.gmra.mrb[0].mxu0 %v2420
    %v2490 = vpop.f32.mrb[0].mxu0
    %v2491 = vadd.f32 0.0, %v2490
    %v2492 = vpop.f32.mrb[0].mxu0
    %2493 = vdwg.mxu0
    %v2494 = vmul.f32 %v1959, 0.35355338
    %v2495 = vmul.f32 %v2035, 0.35355338
    %v2496 = vmul.f32 %v2111, 0.35355338
    %v2497 = vmul.f32 %v2187, 0.35355338
    %v2498 = vmul.f32 %v2263, 0.35355338
    %v2499 = vmul.f32 %v2339, 0.35355338
    %v2500 = vmul.f32 %v2415, 0.35355338
    %v2501 = vmul.f32 %v2491, 0.35355338
    %vm2502 = vcmp.ne.s32.totalorder %v51, 0
    %vm2503 = vcmp.ne.s32.totalorder %v52, 0
    %v2504 = vsel %vm2502, -1e+09, %v2494
    %v2505 = vsel %vm2503, -1e+09, %v2495
    %v2506 = vsel %vm2502, -1e+09, %v2496
    %v2507 = vsel %vm2503, -1e+09, %v2497
    %v2508 = vsel %vm2502, -1e+09, %v2498
    %v2509 = vsel %vm2503, -1e+09, %v2499
    %v2510 = vsel %vm2502, -1e+09, %v2500
    %v2511 = vsel %vm2503, -1e+09, %v2501
    %v2512 = vsel %vm191, %v2504, -inf
    %2513 = vmax.xlane.f32.xlu0 %v2512
    %v2514 = vpop.xlane.xlu0 %2513
    %v2515 = vsel %vm191, %v2505, -inf
    %2516 = vmax.xlane.f32.xlu0 %v2515
    %v2517 = vpop.xlane.xlu0 %2516
    %v2518 = vsel %vm191, %v2506, -inf
    %2519 = vmax.xlane.f32.xlu0 %v2518
    %v2520 = vpop.xlane.xlu0 %2519
    %v2521 = vsel %vm191, %v2507, -inf
    %2522 = vmax.xlane.f32.xlu0 %v2521
    %v2523 = vpop.xlane.xlu0 %2522
    %v2524 = vsel %vm191, %v2508, -inf
    %2525 = vmax.xlane.f32.xlu0 %v2524
    %v2526 = vpop.xlane.xlu0 %2525
    %v2527 = vsel %vm191, %v2509, -inf
    %2528 = vmax.xlane.f32.xlu0 %v2527
    %v2529 = vpop.xlane.xlu0 %2528
    %v2530 = vsel %vm191, %v2510, -inf
    %2531 = vmax.xlane.f32.xlu0 %v2530
    %v2532 = vpop.xlane.xlu0 %2531
    %v2533 = vsel %vm191, %v2511, -inf
    %2534 = vmax.xlane.f32.xlu0 %v2533
    %v2535 = vpop.xlane.xlu0 %2534
    %v2536 = vsub.f32 %v2504, %v2514
    %v2537 = vsub.f32 %v2505, %v2517
    %v2538 = vsub.f32 %v2506, %v2520
    %v2539 = vsub.f32 %v2507, %v2523
    %v2540 = vsub.f32 %v2508, %v2526
    %v2541 = vsub.f32 %v2509, %v2529
    %v2542 = vsub.f32 %v2510, %v2532
    %v2543 = vsub.f32 %v2511, %v2535
    %v2544 = vmul.f32 %v2536, 1.442695
    %v2545 = vpow.pop %v2544
    %v2546 = vmul.f32 %v2537, 1.442695
    %v2547 = vpow.pop %v2546
    %v2548 = vmul.f32 %v2538, 1.442695
    %v2549 = vpow.pop %v2548
    %v2550 = vmul.f32 %v2539, 1.442695
    %v2551 = vpow.pop %v2550
    %v2552 = vmul.f32 %v2540, 1.442695
    %v2553 = vpow.pop %v2552
    %v2554 = vmul.f32 %v2541, 1.442695
    %v2555 = vpow.pop %v2554
    %v2556 = vmul.f32 %v2542, 1.442695
    %v2557 = vpow.pop %v2556
    %v2558 = vmul.f32 %v2543, 1.442695
    %v2559 = vpow.pop %v2558
    %v2560 = vsel %vm191, %v2545, 0.0
    %2561 = vadd.xlane.f32.xlu0 %v2560
    %v2562 = vpop.xlane.xlu0 %2561
    %v2563 = vsel %vm191, %v2547, 0.0
    %2564 = vadd.xlane.f32.xlu0 %v2563
    %v2565 = vpop.xlane.xlu0 %2564
    %v2566 = vsel %vm191, %v2549, 0.0
    %2567 = vadd.xlane.f32.xlu0 %v2566
    %v2568 = vpop.xlane.xlu0 %2567
    %v2569 = vsel %vm191, %v2551, 0.0
    %2570 = vadd.xlane.f32.xlu0 %v2569
    %v2571 = vpop.xlane.xlu0 %2570
    %v2572 = vsel %vm191, %v2553, 0.0
    %2573 = vadd.xlane.f32.xlu0 %v2572
    %v2574 = vpop.xlane.xlu0 %2573
    %v2575 = vsel %vm191, %v2555, 0.0
    %2576 = vadd.xlane.f32.xlu0 %v2575
    %v2577 = vpop.xlane.xlu0 %2576
    %v2578 = vsel %vm191, %v2557, 0.0
    %2579 = vadd.xlane.f32.xlu0 %v2578
    %v2580 = vpop.xlane.xlu0 %2579
    %v2581 = vsel %vm191, %v2559, 0.0
    %2582 = vadd.xlane.f32.xlu0 %v2581
    %v2583 = vpop.xlane.xlu0 %2582
    %v2584 = vrcp.pop %v2562
    %v2585 = vmul.f32 %v2545, %v2584
    %v2586 = vrcp.pop %v2565
    %v2587 = vmul.f32 %v2547, %v2586
    %v2588 = vrcp.pop %v2568
    %v2589 = vmul.f32 %v2549, %v2588
    %v2590 = vrcp.pop %v2571
    %v2591 = vmul.f32 %v2551, %v2590
    %v2592 = vrcp.pop %v2574
    %v2593 = vmul.f32 %v2553, %v2592
    %v2594 = vrcp.pop %v2577
    %v2595 = vmul.f32 %v2555, %v2594
    %v2596 = vrcp.pop %v2580
    %v2597 = vmul.f32 %v2557, %v2596
    %v2598 = vrcp.pop %v2583
    %v2599 = vmul.f32 %v2559, %v2598
    %v2601 = vsel %vm191, %v2585, 0
    %2603 = vmatprep.subr.mxu0 0.0
    %2604 = vmatpush1.msra.mxu0 %v1844
    %2605 = vmatprep.subr.mxu0 0.0
    %2606 = vmatpush1.msra.mxu0 0.0
    %2607 = vmatprep.subr.mxu0 0.0
    %2608 = vmatpush1.msra.mxu0 0.0
    %2609 = vmatprep.subr.mxu0 0.0
    %2610 = vmatpush1.msra.mxu0 0.0
    %2611 = vmatprep.subr.mxu0 0.0
    %2612 = vmatpush1.msra.mxu0 0.0
    %2613 = vmatprep.subr.mxu0 0.0
    %2614 = vmatpush1.msra.mxu0 0.0
    %2615 = vmatprep.subr.mxu0 0.0
    %2616 = vmatpush1.msra.mxu0 0.0
    %2617 = vmatprep.subr.mxu0 0.0
    %2618 = vmatpush1.msra.mxu0 0.0
    %2619 = vmatprep.subr.mxu0 0.0
    %2620 = vmatpush1.msra.mxu0 0.0
    %2621 = vmatprep.subr.mxu0 0.0
    %2622 = vmatpush1.msra.mxu0 0.0
    %2623 = vmatprep.subr.mxu0 0.0
    %2624 = vmatpush1.msra.mxu0 0.0
    %2625 = vmatprep.subr.mxu0 0.0
    %2626 = vmatpush1.msra.mxu0 0.0
    %2627 = vmatprep.subr.mxu0 0.0
    %2628 = vmatpush1.msra.mxu0 0.0
    %2629 = vmatprep.subr.mxu0 0.0
    %2630 = vmatpush1.msra.mxu0 0.0
    %2631 = vmatprep.subr.mxu0 0.0
    %2632 = vmatpush1.msra.mxu0 0.0
    %2633 = vmatprep.subr.mxu0 0.0
    %2634 = vmatpush1.msra.mxu0 0.0
    %2635 = vmatprep.subr.mxu0 0.0
    %2636 = vmatpush1.msra.mxu0 0.0
    %2637 = vmatprep.subr.mxu0 0.0
    %2638 = vmatpush1.msra.mxu0 0.0
    %2639 = vmatprep.subr.mxu0 0.0
    %2640 = vmatpush1.msra.mxu0 0.0
    %2641 = vmatprep.subr.mxu0 0.0
    %2642 = vmatpush1.msra.mxu0 0.0
    %2643 = vmatprep.subr.mxu0 0.0
    %2644 = vmatpush1.msra.mxu0 0.0
    %2645 = vmatprep.subr.mxu0 0.0
    %2646 = vmatpush1.msra.mxu0 0.0
    %2647 = vmatprep.subr.mxu0 0.0
    %2648 = vmatpush1.msra.mxu0 0.0
    %2649 = vmatprep.subr.mxu0 0.0
    %2650 = vmatpush1.msra.mxu0 0.0
    %2651 = vmatprep.subr.mxu0 0.0
    %2652 = vmatpush1.msra.mxu0 0.0
    %2653 = vmatprep.subr.mxu0 0.0
    %2654 = vmatpush1.msra.mxu0 0.0
    %2655 = vmatprep.subr.mxu0 0.0
    %2656 = vmatpush1.msra.mxu0 0.0
    %2657 = vmatprep.subr.mxu0 0.0
    %2658 = vmatpush1.msra.mxu0 0.0
    %2659 = vmatprep.subr.mxu0 0.0
    %2660 = vmatpush1.msra.mxu0 0.0
    %2661 = vmatprep.subr.mxu0 0.0
    %2662 = vmatpush1.msra.mxu0 0.0
    %2663 = vmatprep.subr.mxu0 0.0
    %2664 = vmatpush1.msra.mxu0 0.0
    %2665 = vmatprep.subr.mxu0 0.0
    %2666 = vmatpush1.msra.mxu0 0.0
    %2667 = vmatprep.mubr.f32.mxu0 0.0
    %2668 = vmatmul.mubr.f32.gmra.mrb[0].mxu0 %v2601
    %v2669 = vpop.f32.mrb[0].mxu0
    %v2670 = vadd.f32 0.0, %v2669
    %v2671 = vpop.f32.mrb[0].mxu0
    %2672 = vdwg.mxu0
    %v2674 = vsel %vm191, %v2587, 0
    %2676 = vmatprep.subr.mxu0 0.0
    %2677 = vmatpush1.msra.mxu0 %v1849
    %2678 = vmatprep.subr.mxu0 0.0
    %2679 = vmatpush1.msra.mxu0 0.0
    %2680 = vmatprep.subr.mxu0 0.0
    %2681 = vmatpush1.msra.mxu0 0.0
    %2682 = vmatprep.subr.mxu0 0.0
    %2683 = vmatpush1.msra.mxu0 0.0
    %2684 = vmatprep.subr.mxu0 0.0
    %2685 = vmatpush1.msra.mxu0 0.0
    %2686 = vmatprep.subr.mxu0 0.0
    %2687 = vmatpush1.msra.mxu0 0.0
    %2688 = vmatprep.subr.mxu0 0.0
    %2689 = vmatpush1.msra.mxu0 0.0
    %2690 = vmatprep.subr.mxu0 0.0
    %2691 = vmatpush1.msra.mxu0 0.0
    %2692 = vmatprep.subr.mxu0 0.0
    %2693 = vmatpush1.msra.mxu0 0.0
    %2694 = vmatprep.subr.mxu0 0.0
    %2695 = vmatpush1.msra.mxu0 0.0
    %2696 = vmatprep.subr.mxu0 0.0
    %2697 = vmatpush1.msra.mxu0 0.0
    %2698 = vmatprep.subr.mxu0 0.0
    %2699 = vmatpush1.msra.mxu0 0.0
    %2700 = vmatprep.subr.mxu0 0.0
    %2701 = vmatpush1.msra.mxu0 0.0
    %2702 = vmatprep.subr.mxu0 0.0
    %2703 = vmatpush1.msra.mxu0 0.0
    %2704 = vmatprep.subr.mxu0 0.0
    %2705 = vmatpush1.msra.mxu0 0.0
    %2706 = vmatprep.subr.mxu0 0.0
    %2707 = vmatpush1.msra.mxu0 0.0
    %2708 = vmatprep.subr.mxu0 0.0
    %2709 = vmatpush1.msra.mxu0 0.0
    %2710 = vmatprep.subr.mxu0 0.0
    %2711 = vmatpush1.msra.mxu0 0.0
    %2712 = vmatprep.subr.mxu0 0.0
    %2713 = vmatpush1.msra.mxu0 0.0
    %2714 = vmatprep.subr.mxu0 0.0
    %2715 = vmatpush1.msra.mxu0 0.0
    %2716 = vmatprep.subr.mxu0 0.0
    %2717 = vmatpush1.msra.mxu0 0.0
    %2718 = vmatprep.subr.mxu0 0.0
    %2719 = vmatpush1.msra.mxu0 0.0
    %2720 = vmatprep.subr.mxu0 0.0
    %2721 = vmatpush1.msra.mxu0 0.0
    %2722 = vmatprep.subr.mxu0 0.0
    %2723 = vmatpush1.msra.mxu0 0.0
    %2724 = vmatprep.subr.mxu0 0.0
    %2725 = vmatpush1.msra.mxu0 0.0
    %2726 = vmatprep.subr.mxu0 0.0
    %2727 = vmatpush1.msra.mxu0 0.0
    %2728 = vmatprep.subr.mxu0 0.0
    %2729 = vmatpush1.msra.mxu0 0.0
    %2730 = vmatprep.subr.mxu0 0.0
    %2731 = vmatpush1.msra.mxu0 0.0
    %2732 = vmatprep.subr.mxu0 0.0
    %2733 = vmatpush1.msra.mxu0 0.0
    %2734 = vmatprep.subr.mxu0 0.0
    %2735 = vmatpush1.msra.mxu0 0.0
    %2736 = vmatprep.subr.mxu0 0.0
    %2737 = vmatpush1.msra.mxu0 0.0
    %2738 = vmatprep.subr.mxu0 0.0
    %2739 = vmatpush1.msra.mxu0 0.0
    %2740 = vmatprep.mubr.f32.mxu0 0.0
    %2741 = vmatmul.mubr.f32.gmra.mrb[0].mxu0 %v2674
    %v2742 = vpop.f32.mrb[0].mxu0
    %v2743 = vadd.f32 0.0, %v2742
    %v2744 = vpop.f32.mrb[0].mxu0
    %2745 = vdwg.mxu0
    %v2747 = vsel %vm191, %v2589, 0
    %2749 = vmatprep.subr.mxu0 0.0
    %2750 = vmatpush1.msra.mxu0 %v1869
    %2751 = vmatprep.subr.mxu0 0.0
    %2752 = vmatpush1.msra.mxu0 0.0
    %2753 = vmatprep.subr.mxu0 0.0
    %2754 = vmatpush1.msra.mxu0 0.0
    %2755 = vmatprep.subr.mxu0 0.0
    %2756 = vmatpush1.msra.mxu0 0.0
    %2757 = vmatprep.subr.mxu0 0.0
    %2758 = vmatpush1.msra.mxu0 0.0
    %2759 = vmatprep.subr.mxu0 0.0
    %2760 = vmatpush1.msra.mxu0 0.0
    %2761 = vmatprep.subr.mxu0 0.0
    %2762 = vmatpush1.msra.mxu0 0.0
    %2763 = vmatprep.subr.mxu0 0.0
    %2764 = vmatpush1.msra.mxu0 0.0
    %2765 = vmatprep.subr.mxu0 0.0
    %2766 = vmatpush1.msra.mxu0 0.0
    %2767 = vmatprep.subr.mxu0 0.0
    %2768 = vmatpush1.msra.mxu0 0.0
    %2769 = vmatprep.subr.mxu0 0.0
    %2770 = vmatpush1.msra.mxu0 0.0
    %2771 = vmatprep.subr.mxu0 0.0
    %2772 = vmatpush1.msra.mxu0 0.0
    %2773 = vmatprep.subr.mxu0 0.0
    %2774 = vmatpush1.msra.mxu0 0.0
    %2775 = vmatprep.subr.mxu0 0.0
    %2776 = vmatpush1.msra.mxu0 0.0
    %2777 = vmatprep.subr.mxu0 0.0
    %2778 = vmatpush1.msra.mxu0 0.0
    %2779 = vmatprep.subr.mxu0 0.0
    %2780 = vmatpush1.msra.mxu0 0.0
    %2781 = vmatprep.subr.mxu0 0.0
    %2782 = vmatpush1.msra.mxu0 0.0
    %2783 = vmatprep.subr.mxu0 0.0
    %2784 = vmatpush1.msra.mxu0 0.0
    %2785 = vmatprep.subr.mxu0 0.0
    %2786 = vmatpush1.msra.mxu0 0.0
    %2787 = vmatprep.subr.mxu0 0.0
    %2788 = vmatpush1.msra.mxu0 0.0
    %2789 = vmatprep.subr.mxu0 0.0
    %2790 = vmatpush1.msra.mxu0 0.0
    %2791 = vmatprep.subr.mxu0 0.0
    %2792 = vmatpush1.msra.mxu0 0.0
    %2793 = vmatprep.subr.mxu0 0.0
    %2794 = vmatpush1.msra.mxu0 0.0
    %2795 = vmatprep.subr.mxu0 0.0
    %2796 = vmatpush1.msra.mxu0 0.0
    %2797 = vmatprep.subr.mxu0 0.0
    %2798 = vmatpush1.msra.mxu0 0.0
    %2799 = vmatprep.subr.mxu0 0.0
    %2800 = vmatpush1.msra.mxu0 0.0
    %2801 = vmatprep.subr.mxu0 0.0
    %2802 = vmatpush1.msra.mxu0 0.0
    %2803 = vmatprep.subr.mxu0 0.0
    %2804 = vmatpush1.msra.mxu0 0.0
    %2805 = vmatprep.subr.mxu0 0.0
    %2806 = vmatpush1.msra.mxu0 0.0
    %2807 = vmatprep.subr.mxu0 0.0
    %2808 = vmatpush1.msra.mxu0 0.0
    %2809 = vmatprep.subr.mxu0 0.0
    %2810 = vmatpush1.msra.mxu0 0.0
    %2811 = vmatprep.subr.mxu0 0.0
    %2812 = vmatpush1.msra.mxu0 0.0
    %2813 = vmatprep.mubr.f32.mxu0 0.0
    %2814 = vmatmul.mubr.f32.gmra.mrb[0].mxu0 %v2747
    %v2815 = vpop.f32.mrb[0].mxu0
    %v2816 = vadd.f32 0.0, %v2815
    %v2817 = vpop.f32.mrb[0].mxu0
    %2818 = vdwg.mxu0
    %v2820 = vsel %vm191, %v2591, 0
    %2822 = vmatprep.subr.mxu0 0.0
    %2823 = vmatpush1.msra.mxu0 %v1871
    %2824 = vmatprep.subr.mxu0 0.0
    %2825 = vmatpush1.msra.mxu0 0.0
    %2826 = vmatprep.subr.mxu0 0.0
    %2827 = vmatpush1.msra.mxu0 0.0
    %2828 = vmatprep.subr.mxu0 0.0
    %2829 = vmatpush1.msra.mxu0 0.0
    %2830 = vmatprep.subr.mxu0 0.0
    %2831 = vmatpush1.msra.mxu0 0.0
    %2832 = vmatprep.subr.mxu0 0.0
    %2833 = vmatpush1.msra.mxu0 0.0
    %2834 = vmatprep.subr.mxu0 0.0
    %2835 = vmatpush1.msra.mxu0 0.0
    %2836 = vmatprep.subr.mxu0 0.0
    %2837 = vmatpush1.msra.mxu0 0.0
    %2838 = vmatprep.subr.mxu0 0.0
    %2839 = vmatpush1.msra.mxu0 0.0
    %2840 = vmatprep.subr.mxu0 0.0
    %2841 = vmatpush1.msra.mxu0 0.0
    %2842 = vmatprep.subr.mxu0 0.0
    %2843 = vmatpush1.msra.mxu0 0.0
    %2844 = vmatprep.subr.mxu0 0.0
    %2845 = vmatpush1.msra.mxu0 0.0
    %2846 = vmatprep.subr.mxu0 0.0
    %2847 = vmatpush1.msra.mxu0 0.0
    %2848 = vmatprep.subr.mxu0 0.0
    %2849 = vmatpush1.msra.mxu0 0.0
    %2850 = vmatprep.subr.mxu0 0.0
    %2851 = vmatpush1.msra.mxu0 0.0
    %2852 = vmatprep.subr.mxu0 0.0
    %2853 = vmatpush1.msra.mxu0 0.0
    %2854 = vmatprep.subr.mxu0 0.0
    %2855 = vmatpush1.msra.mxu0 0.0
    %2856 = vmatprep.subr.mxu0 0.0
    %2857 = vmatpush1.msra.mxu0 0.0
    %2858 = vmatprep.subr.mxu0 0.0
    %2859 = vmatpush1.msra.mxu0 0.0
    %2860 = vmatprep.subr.mxu0 0.0
    %2861 = vmatpush1.msra.mxu0 0.0
    %2862 = vmatprep.subr.mxu0 0.0
    %2863 = vmatpush1.msra.mxu0 0.0
    %2864 = vmatprep.subr.mxu0 0.0
    %2865 = vmatpush1.msra.mxu0 0.0
    %2866 = vmatprep.subr.mxu0 0.0
    %2867 = vmatpush1.msra.mxu0 0.0
    %2868 = vmatprep.subr.mxu0 0.0
    %2869 = vmatpush1.msra.mxu0 0.0
    %2870 = vmatprep.subr.mxu0 0.0
    %2871 = vmatpush1.msra.mxu0 0.0
    %2872 = vmatprep.subr.mxu0 0.0
    %2873 = vmatpush1.msra.mxu0 0.0
    %2874 = vmatprep.subr.mxu0 0.0
    %2875 = vmatpush1.msra.mxu0 0.0
    %2876 = vmatprep.subr.mxu0 0.0
    %2877 = vmatpush1.msra.mxu0 0.0
    %2878 = vmatprep.subr.mxu0 0.0
    %2879 = vmatpush1.msra.mxu0 0.0
    %2880 = vmatprep.subr.mxu0 0.0
    %2881 = vmatpush1.msra.mxu0 0.0
    %2882 = vmatprep.subr.mxu0 0.0
    %2883 = vmatpush1.msra.mxu0 0.0
    %2884 = vmatprep.subr.mxu0 0.0
    %2885 = vmatpush1.msra.mxu0 0.0
    %2886 = vmatprep.mubr.f32.mxu0 0.0
    %2887 = vmatmul.mubr.f32.gmra.mrb[0].mxu0 %v2820
    %v2888 = vpop.f32.mrb[0].mxu0
    %v2889 = vadd.f32 0.0, %v2888
    %v2890 = vpop.f32.mrb[0].mxu0
    %2891 = vdwg.mxu0
    %v2893 = vsel %vm191, %v2593, 0
    %2895 = vmatprep.subr.mxu0 0.0
    %2896 = vmatpush1.msra.mxu0 %v1875
    %2897 = vmatprep.subr.mxu0 0.0
    %2898 = vmatpush1.msra.mxu0 0.0
    %2899 = vmatprep.subr.mxu0 0.0
    %2900 = vmatpush1.msra.mxu0 0.0
    %2901 = vmatprep.subr.mxu0 0.0
    %2902 = vmatpush1.msra.mxu0 0.0
    %2903 = vmatprep.subr.mxu0 0.0
    %2904 = vmatpush1.msra.mxu0 0.0
    %2905 = vmatprep.subr.mxu0 0.0
    %2906 = vmatpush1.msra.mxu0 0.0
    %2907 = vmatprep.subr.mxu0 0.0
    %2908 = vmatpush1.msra.mxu0 0.0
    %2909 = vmatprep.subr.mxu0 0.0
    %2910 = vmatpush1.msra.mxu0 0.0
    %2911 = vmatprep.subr.mxu0 0.0
    %2912 = vmatpush1.msra.mxu0 0.0
    %2913 = vmatprep.subr.mxu0 0.0
    %2914 = vmatpush1.msra.mxu0 0.0
    %2915 = vmatprep.subr.mxu0 0.0
    %2916 = vmatpush1.msra.mxu0 0.0
    %2917 = vmatprep.subr.mxu0 0.0
    %2918 = vmatpush1.msra.mxu0 0.0
    %2919 = vmatprep.subr.mxu0 0.0
    %2920 = vmatpush1.msra.mxu0 0.0
    %2921 = vmatprep.subr.mxu0 0.0
    %2922 = vmatpush1.msra.mxu0 0.0
    %2923 = vmatprep.subr.mxu0 0.0
    %2924 = vmatpush1.msra.mxu0 0.0
    %2925 = vmatprep.subr.mxu0 0.0
    %2926 = vmatpush1.msra.mxu0 0.0
    %2927 = vmatprep.subr.mxu0 0.0
    %2928 = vmatpush1.msra.mxu0 0.0
    %2929 = vmatprep.subr.mxu0 0.0
    %2930 = vmatpush1.msra.mxu0 0.0
    %2931 = vmatprep.subr.mxu0 0.0
    %2932 = vmatpush1.msra.mxu0 0.0
    %2933 = vmatprep.subr.mxu0 0.0
    %2934 = vmatpush1.msra.mxu0 0.0
    %2935 = vmatprep.subr.mxu0 0.0
    %2936 = vmatpush1.msra.mxu0 0.0
    %2937 = vmatprep.subr.mxu0 0.0
    %2938 = vmatpush1.msra.mxu0 0.0
    %2939 = vmatprep.subr.mxu0 0.0
    %2940 = vmatpush1.msra.mxu0 0.0
    %2941 = vmatprep.subr.mxu0 0.0
    %2942 = vmatpush1.msra.mxu0 0.0
    %2943 = vmatprep.subr.mxu0 0.0
    %2944 = vmatpush1.msra.mxu0 0.0
    %2945 = vmatprep.subr.mxu0 0.0
    %2946 = vmatpush1.msra.mxu0 0.0
    %2947 = vmatprep.subr.mxu0 0.0
    %2948 = vmatpush1.msra.mxu0 0.0
    %2949 = vmatprep.subr.mxu0 0.0
    %2950 = vmatpush1.msra.mxu0 0.0
    %2951 = vmatprep.subr.mxu0 0.0
    %2952 = vmatpush1.msra.mxu0 0.0
    %2953 = vmatprep.subr.mxu0 0.0
    %2954 = vmatpush1.msra.mxu0 0.0
    %2955 = vmatprep.subr.mxu0 0.0
    %2956 = vmatpush1.msra.mxu0 0.0
    %2957 = vmatprep.subr.mxu0 0.0
    %2958 = vmatpush1.msra.mxu0 0.0
    %2959 = vmatprep.mubr.f32.mxu0 0.0
    %2960 = vmatmul.mubr.f32.gmra.mrb[0].mxu0 %v2893
    %v2961 = vpop.f32.mrb[0].mxu0
    %v2962 = vadd.f32 0.0, %v2961
    %v2963 = vpop.f32.mrb[0].mxu0
    %2964 = vdwg.mxu0
    %v2966 = vsel %vm191, %v2595, 0
    %2968 = vmatprep.subr.mxu0 0.0
    %2969 = vmatpush1.msra.mxu0 %v1877
    %2970 = vmatprep.subr.mxu0 0.0
    %2971 = vmatpush1.msra.mxu0 0.0
    %2972 = vmatprep.subr.mxu0 0.0
    %2973 = vmatpush1.msra.mxu0 0.0
    %2974 = vmatprep.subr.mxu0 0.0
    %2975 = vmatpush1.msra.mxu0 0.0
    %2976 = vmatprep.subr.mxu0 0.0
    %2977 = vmatpush1.msra.mxu0 0.0
    %2978 = vmatprep.subr.mxu0 0.0
    %2979 = vmatpush1.msra.mxu0 0.0
    %2980 = vmatprep.subr.mxu0 0.0
    %2981 = vmatpush1.msra.mxu0 0.0
    %2982 = vmatprep.subr.mxu0 0.0
    %2983 = vmatpush1.msra.mxu0 0.0
    %2984 = vmatprep.subr.mxu0 0.0
    %2985 = vmatpush1.msra.mxu0 0.0
    %2986 = vmatprep.subr.mxu0 0.0
    %2987 = vmatpush1.msra.mxu0 0.0
    %2988 = vmatprep.subr.mxu0 0.0
    %2989 = vmatpush1.msra.mxu0 0.0
    %2990 = vmatprep.subr.mxu0 0.0
    %2991 = vmatpush1.msra.mxu0 0.0
    %2992 = vmatprep.subr.mxu0 0.0
    %2993 = vmatpush1.msra.mxu0 0.0
    %2994 = vmatprep.subr.mxu0 0.0
    %2995 = vmatpush1.msra.mxu0 0.0
    %2996 = vmatprep.subr.mxu0 0.0
    %2997 = vmatpush1.msra.mxu0 0.0
    %2998 = vmatprep.subr.mxu0 0.0
    %2999 = vmatpush1.msra.mxu0 0.0
    %3000 = vmatprep.subr.mxu0 0.0
    %3001 = vmatpush1.msra.mxu0 0.0
    %3002 = vmatprep.subr.mxu0 0.0
    %3003 = vmatpush1.msra.mxu0 0.0
    %3004 = vmatprep.subr.mxu0 0.0
    %3005 = vmatpush1.msra.mxu0 0.0
    %3006 = vmatprep.subr.mxu0 0.0
    %3007 = vmatpush1.msra.mxu0 0.0
    %3008 = vmatprep.subr.mxu0 0.0
    %3009 = vmatpush1.msra.mxu0 0.0
    %3010 = vmatprep.subr.mxu0 0.0
    %3011 = vmatpush1.msra.mxu0 0.0
    %3012 = vmatprep.subr.mxu0 0.0
    %3013 = vmatpush1.msra.mxu0 0.0
    %3014 = vmatprep.subr.mxu0 0.0
    %3015 = vmatpush1.msra.mxu0 0.0
    %3016 = vmatprep.subr.mxu0 0.0
    %3017 = vmatpush1.msra.mxu0 0.0
    %3018 = vmatprep.subr.mxu0 0.0
    %3019 = vmatpush1.msra.mxu0 0.0
    %3020 = vmatprep.subr.mxu0 0.0
    %3021 = vmatpush1.msra.mxu0 0.0
    %3022 = vmatprep.subr.mxu0 0.0
    %3023 = vmatpush1.msra.mxu0 0.0
    %3024 = vmatprep.subr.mxu0 0.0
    %3025 = vmatpush1.msra.mxu0 0.0
    %3026 = vmatprep.subr.mxu0 0.0
    %3027 = vmatpush1.msra.mxu0 0.0
    %3028 = vmatprep.subr.mxu0 0.0
    %3029 = vmatpush1.msra.mxu0 0.0
    %3030 = vmatprep.subr.mxu0 0.0
    %3031 = vmatpush1.msra.mxu0 0.0
    %3032 = vmatprep.mubr.f32.mxu0 0.0
    %3033 = vmatmul.mubr.f32.gmra.mrb[0].mxu0 %v2966
    %v3034 = vpop.f32.mrb[0].mxu0
    %v3035 = vadd.f32 0.0, %v3034
    %v3036 = vpop.f32.mrb[0].mxu0
    %3037 = vdwg.mxu0
    %v3039 = vsel %vm191, %v2597, 0
    %3041 = vmatprep.subr.mxu0 0.0
    %3042 = vmatpush1.msra.mxu0 %v1881
    %3043 = vmatprep.subr.mxu0 0.0
    %3044 = vmatpush1.msra.mxu0 0.0
    %3045 = vmatprep.subr.mxu0 0.0
    %3046 = vmatpush1.msra.mxu0 0.0
    %3047 = vmatprep.subr.mxu0 0.0
    %3048 = vmatpush1.msra.mxu0 0.0
    %3049 = vmatprep.subr.mxu0 0.0
    %3050 = vmatpush1.msra.mxu0 0.0
    %3051 = vmatprep.subr.mxu0 0.0
    %3052 = vmatpush1.msra.mxu0 0.0
    %3053 = vmatprep.subr.mxu0 0.0
    %3054 = vmatpush1.msra.mxu0 0.0
    %3055 = vmatprep.subr.mxu0 0.0
    %3056 = vmatpush1.msra.mxu0 0.0
    %3057 = vmatprep.subr.mxu0 0.0
    %3058 = vmatpush1.msra.mxu0 0.0
    %3059 = vmatprep.subr.mxu0 0.0
    %3060 = vmatpush1.msra.mxu0 0.0
    %3061 = vmatprep.subr.mxu0 0.0
    %3062 = vmatpush1.msra.mxu0 0.0
    %3063 = vmatprep.subr.mxu0 0.0
    %3064 = vmatpush1.msra.mxu0 0.0
    %3065 = vmatprep.subr.mxu0 0.0
    %3066 = vmatpush1.msra.mxu0 0.0
    %3067 = vmatprep.subr.mxu0 0.0
    %3068 = vmatpush1.msra.mxu0 0.0
    %3069 = vmatprep.subr.mxu0 0.0
    %3070 = vmatpush1.msra.mxu0 0.0
    %3071 = vmatprep.subr.mxu0 0.0
    %3072 = vmatpush1.msra.mxu0 0.0
    %3073 = vmatprep.subr.mxu0 0.0
    %3074 = vmatpush1.msra.mxu0 0.0
    %3075 = vmatprep.subr.mxu0 0.0
    %3076 = vmatpush1.msra.mxu0 0.0
    %3077 = vmatprep.subr.mxu0 0.0
    %3078 = vmatpush1.msra.mxu0 0.0
    %3079 = vmatprep.subr.mxu0 0.0
    %3080 = vmatpush1.msra.mxu0 0.0
    %3081 = vmatprep.subr.mxu0 0.0
    %3082 = vmatpush1.msra.mxu0 0.0
    %3083 = vmatprep.subr.mxu0 0.0
    %3084 = vmatpush1.msra.mxu0 0.0
    %3085 = vmatprep.subr.mxu0 0.0
    %3086 = vmatpush1.msra.mxu0 0.0
    %3087 = vmatprep.subr.mxu0 0.0
    %3088 = vmatpush1.msra.mxu0 0.0
    %3089 = vmatprep.subr.mxu0 0.0
    %3090 = vmatpush1.msra.mxu0 0.0
    %3091 = vmatprep.subr.mxu0 0.0
    %3092 = vmatpush1.msra.mxu0 0.0
    %3093 = vmatprep.subr.mxu0 0.0
    %3094 = vmatpush1.msra.mxu0 0.0
    %3095 = vmatprep.subr.mxu0 0.0
    %3096 = vmatpush1.msra.mxu0 0.0
    %3097 = vmatprep.subr.mxu0 0.0
    %3098 = vmatpush1.msra.mxu0 0.0
    %3099 = vmatprep.subr.mxu0 0.0
    %3100 = vmatpush1.msra.mxu0 0.0
    %3101 = vmatprep.subr.mxu0 0.0
    %3102 = vmatpush1.msra.mxu0 0.0
    %3103 = vmatprep.subr.mxu0 0.0
    %3104 = vmatpush1.msra.mxu0 0.0
    %3105 = vmatprep.mubr.f32.mxu0 0.0
    %3106 = vmatmul.mubr.f32.gmra.mrb[0].mxu0 %v3039
    %v3107 = vpop.f32.mrb[0].mxu0
    %v3108 = vadd.f32 0.0, %v3107
    %v3109 = vpop.f32.mrb[0].mxu0
    %3110 = vdwg.mxu0
    %v3112 = vsel %vm191, %v2599, 0
    %3114 = vmatprep.subr.mxu0 0.0
    %3115 = vmatpush1.msra.mxu0 %v1883
    %3116 = vmatprep.subr.mxu0 0.0
    %3117 = vmatpush1.msra.mxu0 0.0
    %3118 = vmatprep.subr.mxu0 0.0
    %3119 = vmatpush1.msra.mxu0 0.0
    %3120 = vmatprep.subr.mxu0 0.0
    %3121 = vmatpush1.msra.mxu0 0.0
    %3122 = vmatprep.subr.mxu0 0.0
    %3123 = vmatpush1.msra.mxu0 0.0
    %3124 = vmatprep.subr.mxu0 0.0
    %3125 = vmatpush1.msra.mxu0 0.0
    %3126 = vmatprep.subr.mxu0 0.0
    %3127 = vmatpush1.msra.mxu0 0.0
    %3128 = vmatprep.subr.mxu0 0.0
    %3129 = vmatpush1.msra.mxu0 0.0
    %3130 = vmatprep.subr.mxu0 0.0
    %3131 = vmatpush1.msra.mxu0 0.0
    %3132 = vmatprep.subr.mxu0 0.0
    %3133 = vmatpush1.msra.mxu0 0.0
    %3134 = vmatprep.subr.mxu0 0.0
    %3135 = vmatpush1.msra.mxu0 0.0
    %3136 = vmatprep.subr.mxu0 0.0
    %3137 = vmatpush1.msra.mxu0 0.0
    %3138 = vmatprep.subr.mxu0 0.0
    %3139 = vmatpush1.msra.mxu0 0.0
    %3140 = vmatprep.subr.mxu0 0.0
    %3141 = vmatpush1.msra.mxu0 0.0
    %3142 = vmatprep.subr.mxu0 0.0
    %3143 = vmatpush1.msra.mxu0 0.0
    %3144 = vmatprep.subr.mxu0 0.0
    %3145 = vmatpush1.msra.mxu0 0.0
    %3146 = vmatprep.subr.mxu0 0.0
    %3147 = vmatpush1.msra.mxu0 0.0
    %3148 = vmatprep.subr.mxu0 0.0
    %3149 = vmatpush1.msra.mxu0 0.0
    %3150 = vmatprep.subr.mxu0 0.0
    %3151 = vmatpush1.msra.mxu0 0.0
    %3152 = vmatprep.subr.mxu0 0.0
    %3153 = vmatpush1.msra.mxu0 0.0
    %3154 = vmatprep.subr.mxu0 0.0
    %3155 = vmatpush1.msra.mxu0 0.0
    %3156 = vmatprep.subr.mxu0 0.0
    %3157 = vmatpush1.msra.mxu0 0.0
    %3158 = vmatprep.subr.mxu0 0.0
    %3159 = vmatpush1.msra.mxu0 0.0
    %3160 = vmatprep.subr.mxu0 0.0
    %3161 = vmatpush1.msra.mxu0 0.0
    %3162 = vmatprep.subr.mxu0 0.0
    %3163 = vmatpush1.msra.mxu0 0.0
    %3164 = vmatprep.subr.mxu0 0.0
    %3165 = vmatpush1.msra.mxu0 0.0
    %3166 = vmatprep.subr.mxu0 0.0
    %3167 = vmatpush1.msra.mxu0 0.0
    %3168 = vmatprep.subr.mxu0 0.0
    %3169 = vmatpush1.msra.mxu0 0.0
    %3170 = vmatprep.subr.mxu0 0.0
    %3171 = vmatpush1.msra.mxu0 0.0
    %3172 = vmatprep.subr.mxu0 0.0
    %3173 = vmatpush1.msra.mxu0 0.0
    %3174 = vmatprep.subr.mxu0 0.0
    %3175 = vmatpush1.msra.mxu0 0.0
    %3176 = vmatprep.subr.mxu0 0.0
    %3177 = vmatpush1.msra.mxu0 0.0
    %3178 = vmatprep.mubr.f32.mxu0 0.0
    %3179 = vmatmul.mubr.f32.gmra.mrb[0].mxu0 %v3112
    %v3180 = vpop.f32.mrb[0].mxu0
    %v3181 = vadd.f32 0.0, %v3180
    %v3182 = vpop.f32.mrb[0].mxu0
    %3183 = vdwg.mxu0
    %3186 = vrot.lane.b32.xlu0 %v2816, 8
    %v3187 = vpop.permute.xlu0 %3186
    %3188 = vrot.lane.b32.xlu0 %v2889, 8
    %v3189 = vpop.permute.xlu0 %3188
    %3194 = vrot.lane.b32.xlu0 %v2962, 16
    %v3195 = vpop.permute.xlu0 %3194
    %3196 = vrot.lane.b32.xlu0 %v3035, 16
    %v3197 = vpop.permute.xlu0 %3196
    %3202 = vrot.lane.b32.xlu0 %v3108, 24
    %v3203 = vpop.permute.xlu0 %3202
    %3204 = vrot.lane.b32.xlu0 %v3181, 24
    %v3205 = vpop.permute.xlu0 %3204
    %v3208 = vsel %vm191, %v2670, %v3187
    %v3209 = vsel %vm191, %v2743, %v3189
    %v3210 = vsel %vm1538, %v3208, %v3195
    %v3211 = vsel %vm1538, %v3209, %v3197
    %v3212 = vsel %vm1541, %v3210, %v3203
    %v3213 = vsel %vm1541, %v3211, %v3205
    %v3214 = vld [vmem:[#allocation2 + $0x20] sm:$0xff]
    %v3215 = vld [vmem:[#allocation2 + $0x50] sm:$0xff]
    %v3216 = vld [vmem:[#allocation2 + $0x80] sm:$0xff]
    %v3217 = vld [vmem:[#allocation2 + $0xb0] sm:$0xff]
    %v3219 = vsel %vm53, %v3212, 0
    %v3222 = vsel %vm53, %v3213, 0
    %3224 = vmatprep.subr.mxu0 0.0
    %3225 = vmatpush1.msra.mxu0 %v3214
    %3226 = vmatprep.subr.mxu0 0.0
    %3227 = vmatpush1.msra.mxu0 %v3215
    %3228 = vmatprep.subr.mxu0 0.0
    %3229 = vmatpush1.msra.mxu0 %v3216
    %3230 = vmatprep.subr.mxu0 0.0
    %3231 = vmatpush1.msra.mxu0 %v3217
    %3232 = vmatprep.subr.mxu0 0.0
    %3233 = vmatpush1.msra.mxu0 0.0
    %3234 = vmatprep.subr.mxu0 0.0
    %3235 = vmatpush1.msra.mxu0 0.0
    %3236 = vmatprep.subr.mxu0 0.0
    %3237 = vmatpush1.msra.mxu0 0.0
    %3238 = vmatprep.subr.mxu0 0.0
    %3239 = vmatpush1.msra.mxu0 0.0
    %3240 = vmatprep.subr.mxu0 0.0
    %3241 = vmatpush1.msra.mxu0 0.0
    %3242 = vmatprep.subr.mxu0 0.0
    %3243 = vmatpush1.msra.mxu0 0.0
    %3244 = vmatprep.subr.mxu0 0.0
    %3245 = vmatpush1.msra.mxu0 0.0
    %3246 = vmatprep.subr.mxu0 0.0
    %3247 = vmatpush1.msra.mxu0 0.0
    %3248 = vmatprep.subr.mxu0 0.0
    %3249 = vmatpush1.msra.mxu0 0.0
    %3250 = vmatprep.subr.mxu0 0.0
    %3251 = vmatpush1.msra.mxu0 0.0
    %3252 = vmatprep.subr.mxu0 0.0
    %3253 = vmatpush1.msra.mxu0 0.0
    %3254 = vmatprep.subr.mxu0 0.0
    %3255 = vmatpush1.msra.mxu0 0.0
    %3256 = vmatprep.subr.mxu0 0.0
    %3257 = vmatpush1.msra.mxu0 0.0
    %3258 = vmatprep.subr.mxu0 0.0
    %3259 = vmatpush1.msra.mxu0 0.0
    %3260 = vmatprep.subr.mxu0 0.0
    %3261 = vmatpush1.msra.mxu0 0.0
    %3262 = vmatprep.subr.mxu0 0.0
    %3263 = vmatpush1.msra.mxu0 0.0
    %3264 = vmatprep.subr.mxu0 0.0
    %3265 = vmatpush1.msra.mxu0 0.0
    %3266 = vmatprep.subr.mxu0 0.0
    %3267 = vmatpush1.msra.mxu0 0.0
    %3268 = vmatprep.subr.mxu0 0.0
    %3269 = vmatpush1.msra.mxu0 0.0
    %3270 = vmatprep.subr.mxu0 0.0
    %3271 = vmatpush1.msra.mxu0 0.0
    %3272 = vmatprep.subr.mxu0 0.0
    %3273 = vmatpush1.msra.mxu0 0.0
    %3274 = vmatprep.subr.mxu0 0.0
    %3275 = vmatpush1.msra.mxu0 0.0
    %3276 = vmatprep.subr.mxu0 0.0
    %3277 = vmatpush1.msra.mxu0 0.0
    %3278 = vmatprep.subr.mxu0 0.0
    %3279 = vmatpush1.msra.mxu0 0.0
    %3280 = vmatprep.subr.mxu0 0.0
    %3281 = vmatpush1.msra.mxu0 0.0
    %3282 = vmatprep.subr.mxu0 0.0
    %3283 = vmatpush1.msra.mxu0 0.0
    %3284 = vmatprep.subr.mxu0 0.0
    %3285 = vmatpush1.msra.mxu0 0.0
    %3286 = vmatprep.subr.mxu0 0.0
    %3287 = vmatpush1.msra.mxu0 0.0
    %3288 = vmatprep.mubr.f32.mxu0 0.0
    %3289 = vmatmul.mubr.f32.gmra.mrb[0].mxu0 %v3219
    %v3290 = vpop.f32.mrb[0].mxu0
    %v3291 = vadd.f32 0.0, %v3290
    %v3292 = vpop.f32.mrb[0].mxu0
    %3293 = vmatprep.mubr.f32.mxu0 0.0
    %3294 = vmatmul.mubr.f32.gmra.mrb[0].mxu0 %v3222
    %v3295 = vpop.f32.mrb[0].mxu0
    %v3296 = vadd.f32 0.0, %v3295
    %v3297 = vpop.f32.mrb[0].mxu0
    %3298 = vdwg.mxu0
    %v3299 = vadd.f32 %v1638, %v3291
    %v3300 = vadd.f32 %v1639, %v3296
    %v3301 = vld [vmem:[%s6 + $0x4] sm:$0x1]
    %v3303 = vlaneseq
    %v3304 = vshrl.u32 %v3303, 7
    %v3305 = vsub.s32 0, %v3304
    %v3306 = vrot.slane %v3301, %v3305
    %v3308 = vadd.f32 %v3299, %v3306
    %v3309 = vadd.f32 %v3300, %v3306
    %v3310 = vsel %vm53, %v3308, 0.0
    %3311 = vadd.xlane.f32.xlu0 %v3310
    %v3312 = vpop.xlane.xlu0 %3311
    %v3313 = vsel %vm53, %v3309, 0.0
    %3314 = vadd.xlane.f32.xlu0 %v3313
    %v3315 = vpop.xlane.xlu0 %3314
    %v3316 = vmul.f32 %v3312, %v60
    %v3317 = vmul.f32 %v3315, %v60
    %v3318 = vsub.f32 %v3308, %v3316
    %v3319 = vsub.f32 %v3309, %v3317
    %v3320 = vmul.f32 %v3318, %v3318
    %v3321 = vmul.f32 %v3319, %v3319
    %v3322 = vsel %vm53, %v3320, 0.0
    %3323 = vadd.xlane.f32.xlu0 %v3322
    %v3324 = vpop.xlane.xlu0 %3323
    %v3325 = vsel %vm53, %v3321, 0.0
    %3326 = vadd.xlane.f32.xlu0 %v3325
    %v3327 = vpop.xlane.xlu0 %3326
    %v3328 = vmul.f32 %v3324, 0.032258064
    %v3329 = vmul.f32 %v3327, 0.032258064
    %v3330 = vrsqrt.pop %v3328
    %v3331 = vrsqrt.pop %v3329
    %v3332 = vmul.f32 %v3330, 1000000.0
    %v3333 = vmul.f32 %v3331, 1000000.0
    %v3334 = vmul.f32 %v3318, %v3332
    %v3335 = vmul.f32 %v3319, %v3333
    %v3336 = vadd.f32 %v3334, 0.0
    %v3337 = vadd.f32 %v3335, 0.0
    %v3338 = vld [vmem:[#allocation2 + $0x28] sm:$0xff]
    %v3339 = vld [vmem:[#allocation2 + $0x58] sm:$0xff]
    %v3340 = vld [vmem:[#allocation2 + $0x88] sm:$0xff]
    %v3341 = vld [vmem:[#allocation2 + $0xb8] sm:$0xff]
    %v3342 = vld [vmem:[%s6 + $0x5] sm:$0x1]
    %v3344 = vlaneseq
    %v3345 = vshrl.u32 %v3344, 7
    %v3346 = vsub.s32 0, %v3345
    %v3347 = vrot.slane %v3342, %v3346
    %v3350 = vsel %vm53, %v3336, 0
    %v3353 = vsel %vm53, %v3337, 0
    %3355 = vmatprep.subr.mxu0 0.0
    %3356 = vmatpush1.msra.mxu0 %v3338
    %3357 = vmatprep.subr.mxu0 0.0
    %3358 = vmatpush1.msra.mxu0 %v3339
    %3359 = vmatprep.subr.mxu0 0.0
    %3360 = vmatpush1.msra.mxu0 %v3340
    %3361 = vmatprep.subr.mxu0 0.0
    %3362 = vmatpush1.msra.mxu0 %v3341
    %3363 = vmatprep.subr.mxu0 0.0
    %3364 = vmatpush1.msra.mxu0 0.0
    %3365 = vmatprep.subr.mxu0 0.0
    %3366 = vmatpush1.msra.mxu0 0.0
    %3367 = vmatprep.subr.mxu0 0.0
    %3368 = vmatpush1.msra.mxu0 0.0
    %3369 = vmatprep.subr.mxu0 0.0
    %3370 = vmatpush1.msra.mxu0 0.0
    %3371 = vmatprep.subr.mxu0 0.0
    %3372 = vmatpush1.msra.mxu0 0.0
    %3373 = vmatprep.subr.mxu0 0.0
    %3374 = vmatpush1.msra.mxu0 0.0
    %3375 = vmatprep.subr.mxu0 0.0
    %3376 = vmatpush1.msra.mxu0 0.0
    %3377 = vmatprep.subr.mxu0 0.0
    %3378 = vmatpush1.msra.mxu0 0.0
    %3379 = vmatprep.subr.mxu0 0.0
    %3380 = vmatpush1.msra.mxu0 0.0
    %3381 = vmatprep.subr.mxu0 0.0
    %3382 = vmatpush1.msra.mxu0 0.0
    %3383 = vmatprep.subr.mxu0 0.0
    %3384 = vmatpush1.msra.mxu0 0.0
    %3385 = vmatprep.subr.mxu0 0.0
    %3386 = vmatpush1.msra.mxu0 0.0
    %3387 = vmatprep.subr.mxu0 0.0
    %3388 = vmatpush1.msra.mxu0 0.0
    %3389 = vmatprep.subr.mxu0 0.0
    %3390 = vmatpush1.msra.mxu0 0.0
    %3391 = vmatprep.subr.mxu0 0.0
    %3392 = vmatpush1.msra.mxu0 0.0
    %3393 = vmatprep.subr.mxu0 0.0
    %3394 = vmatpush1.msra.mxu0 0.0
    %3395 = vmatprep.subr.mxu0 0.0
    %3396 = vmatpush1.msra.mxu0 0.0
    %3397 = vmatprep.subr.mxu0 0.0
    %3398 = vmatpush1.msra.mxu0 0.0
    %3399 = vmatprep.subr.mxu0 0.0
    %3400 = vmatpush1.msra.mxu0 0.0
    %3401 = vmatprep.subr.mxu0 0.0
    %3402 = vmatpush1.msra.mxu0 0.0
    %3403 = vmatprep.subr.mxu0 0.0
    %3404 = vmatpush1.msra.mxu0 0.0
    %3405 = vmatprep.subr.mxu0 0.0
    %3406 = vmatpush1.msra.mxu0 0.0
    %3407 = vmatprep.subr.mxu0 0.0
    %3408 = vmatpush1.msra.mxu0 0.0
    %3409 = vmatprep.subr.mxu0 0.0
    %3410 = vmatpush1.msra.mxu0 0.0
    %3411 = vmatprep.subr.mxu0 0.0
    %3412 = vmatpush1.msra.mxu0 0.0
    %3413 = vmatprep.subr.mxu0 0.0
    %3414 = vmatpush1.msra.mxu0 0.0
    %3415 = vmatprep.subr.mxu0 0.0
    %3416 = vmatpush1.msra.mxu0 0.0
    %3417 = vmatprep.subr.mxu0 0.0
    %3418 = vmatpush1.msra.mxu0 0.0
    %3419 = vmatprep.mubr.f32.mxu0 0.0
    %3420 = vmatmul.mubr.f32.gmra.mrb[0].mxu0 %v3350
    %v3421 = vpop.f32.mrb[0].mxu0
    %v3422 = vadd.f32 %v3347, %v3421
    %v3423 = vpop.f32.mrb[0].mxu0
    %3424 = vmatprep.mubr.f32.mxu0 0.0
    %3425 = vmatmul.mubr.f32.gmra.mrb[0].mxu0 %v3353
    %v3426 = vpop.f32.mrb[0].mxu0
    %v3427 = vadd.f32 %v3347, %v3426
    %v3428 = vpop.f32.mrb[0].mxu0
    %3429 = vdwg.mxu0
    %v3430 = vmax.f32 %v3422, 0.0
    %v3431 = vmax.f32 %v3427, 0.0
    %v3432 = vld [vmem:[%s5] sm:$0xff]
    %v3433 = vld [vmem:[%s5 + $0x8] sm:$0xff]
    %v3434 = vld [vmem:[%s5 + $0x10] sm:$0xff]
    %v3435 = vld [vmem:[%s5 + $0x18] sm:$0xff]
    %v3436 = vld [vmem:[%s5 + $0x20] sm:$0xff]
    %v3437 = vld [vmem:[%s5 + $0x28] sm:$0xff]
    %v3438 = vld [vmem:[%s5 + $0x30] sm:$0xff]
    %v3439 = vld [vmem:[%s5 + $0x38] sm:$0xff]
    %vm3440 = vcmask 523264
    %v3442 = vsel %vm3440, %v3430, 0
    %v3445 = vsel %vm3440, %v3431, 0
    %3447 = vmatprep.subr.mxu0 0.0
    %3448 = vmatpush1.msra.mxu0 %v3432
    %3449 = vmatprep.subr.mxu0 0.0
    %3450 = vmatpush1.msra.mxu0 %v3433
    %3451 = vmatprep.subr.mxu0 0.0
    %3452 = vmatpush1.msra.mxu0 %v3434
    %3453 = vmatprep.subr.mxu0 0.0
    %3454 = vmatpush1.msra.mxu0 %v3435
    %3455 = vmatprep.subr.mxu0 0.0
    %3456 = vmatpush1.msra.mxu0 %v3436
    %3457 = vmatprep.subr.mxu0 0.0
    %3458 = vmatpush1.msra.mxu0 %v3437
    %3459 = vmatprep.subr.mxu0 0.0
    %3460 = vmatpush1.msra.mxu0 %v3438
    %3461 = vmatprep.subr.mxu0 0.0
    %3462 = vmatpush1.msra.mxu0 %v3439
    %3463 = vmatprep.subr.mxu0 0.0
    %3464 = vmatpush1.msra.mxu0 0.0
    %3465 = vmatprep.subr.mxu0 0.0
    %3466 = vmatpush1.msra.mxu0 0.0
    %3467 = vmatprep.subr.mxu0 0.0
    %3468 = vmatpush1.msra.mxu0 0.0
    %3469 = vmatprep.subr.mxu0 0.0
    %3470 = vmatpush1.msra.mxu0 0.0
    %3471 = vmatprep.subr.mxu0 0.0
    %3472 = vmatpush1.msra.mxu0 0.0
    %3473 = vmatprep.subr.mxu0 0.0
    %3474 = vmatpush1.msra.mxu0 0.0
    %3475 = vmatprep.subr.mxu0 0.0
    %3476 = vmatpush1.msra.mxu0 0.0
    %3477 = vmatprep.subr.mxu0 0.0
    %3478 = vmatpush1.msra.mxu0 0.0
    %3479 = vmatprep.subr.mxu0 0.0
    %3480 = vmatpush1.msra.mxu0 0.0
    %3481 = vmatprep.subr.mxu0 0.0
    %3482 = vmatpush1.msra.mxu0 0.0
    %3483 = vmatprep.subr.mxu0 0.0
    %3484 = vmatpush1.msra.mxu0 0.0
    %3485 = vmatprep.subr.mxu0 0.0
    %3486 = vmatpush1.msra.mxu0 0.0
    %3487 = vmatprep.subr.mxu0 0.0
    %3488 = vmatpush1.msra.mxu0 0.0
    %3489 = vmatprep.subr.mxu0 0.0
    %3490 = vmatpush1.msra.mxu0 0.0
    %3491 = vmatprep.subr.mxu0 0.0
    %3492 = vmatpush1.msra.mxu0 0.0
    %3493 = vmatprep.subr.mxu0 0.0
    %3494 = vmatpush1.msra.mxu0 0.0
    %3495 = vmatprep.subr.mxu0 0.0
    %3496 = vmatpush1.msra.mxu0 0.0
    %3497 = vmatprep.subr.mxu0 0.0
    %3498 = vmatpush1.msra.mxu0 0.0
    %3499 = vmatprep.subr.mxu0 0.0
    %3500 = vmatpush1.msra.mxu0 0.0
    %3501 = vmatprep.subr.mxu0 0.0
    %3502 = vmatpush1.msra.mxu0 0.0
    %3503 = vmatprep.subr.mxu0 0.0
    %3504 = vmatpush1.msra.mxu0 0.0
    %3505 = vmatprep.subr.mxu0 0.0
    %3506 = vmatpush1.msra.mxu0 0.0
    %3507 = vmatprep.subr.mxu0 0.0
    %3508 = vmatpush1.msra.mxu0 0.0
    %3509 = vmatprep.subr.mxu0 0.0
    %3510 = vmatpush1.msra.mxu0 0.0
    %3511 = vmatprep.mubr.f32.mxu0 0.0
    %3512 = vmatmul.mubr.f32.gmra.mrb[0].mxu0 %v3442
    %v3513 = vpop.f32.mrb[0].mxu0
    %v3514 = vadd.f32 0.0, %v3513
    %v3515 = vpop.f32.mrb[0].mxu0
    %3516 = vmatprep.mubr.f32.mxu0 0.0
    %3517 = vmatmul.mubr.f32.gmra.mrb[0].mxu0 %v3445
    %v3518 = vpop.f32.mrb[0].mxu0
    %v3519 = vadd.f32 0.0, %v3518
    %v3520 = vpop.f32.mrb[0].mxu0
    %3521 = vdwg.mxu0
    %v3522 = vadd.f32 %v3308, %v3514
    %v3523 = vadd.f32 %v3309, %v3519
    %v3524 = vld [vmem:[%s6 + $0x6] sm:$0x1]
    %v3526 = vlaneseq
    %v3527 = vshrl.u32 %v3526, 7
    %v3528 = vsub.s32 0, %v3527
    %v3529 = vrot.slane %v3524, %v3528
    %v3531 = vadd.f32 %v3522, %v3529
    %v3532 = vadd.f32 %v3523, %v3529
    %3533 = vst.msk [vmem:[#allocation5] sm:$0xff] %vm53, %v3531
    %3534 = vst.msk [vmem:[#allocation5 + $0x8] sm:$0xff] %vm53, %v3532
    // Predicated region
    $region34: #{tpu_custom_call.1} parent=1 // pred_check
      _
    $region35: #{tpu_custom_call.1} parent=1 // pred_check_branch
      %3536 = sbr.rel (0) target = $region37
    $region36: #{tpu_custom_call.1} parent=1 // pred_region
      %s3538 = ssub.s32 256, 256
      %3539 = vsyncadd [#allocation4], %s3538
      %s3540 = sshll.u32 [#allocation5], 4
      %s3541 = int_to_ptr.vmem [resolvable:$true] %s3540
      %3546 = dma.vmem_to_hbm [thread:$0]  %s3541, 256, %s7, [#allocation4], 128, 128, 8
    $region37: #{tpu_custom_call.1} parent=1 // pred_fallthru
      _
    // Predicated region
    $region38: #{tpu_custom_call.1} parent=1 // pred_check
      _
    $region39: #{tpu_custom_call.1} parent=1 // pred_check_branch
      %3548 = sbr.rel (0) target = $region41
    $region40: #{tpu_custom_call.1} parent=1 // pred_region
      %3549 = dma.done [#allocation4], 256
    $region41: #{tpu_custom_call.1} parent=1 // pred_fallthru
      _
    %3550 = vsyncpa [#allocation3], 1
    %3551 = vsyncpa [#allocation4], 1

</llo_original>
